<compile_context>
chip_gen: v7x
topology: tpu7x:2x2x1
jax: 0.10.0
libtpu: 0.0.40
codegen_flags: <defaults>
</compile_context>

<pallas_src>
import functools

import numpy as np
import jax
import jax.numpy as jnp
from jax import lax
from jax.experimental import pallas as pl
from jax.experimental.pallas import tpu as pltpu


# ----------------------------------------------------------------------------
# Host-side bilinear interpolation tables (F.interpolate, align_corners=False).
# Cached, so nothing is rebuilt per call / per trace.
# ----------------------------------------------------------------------------
@functools.lru_cache(maxsize=None)
def _interp_1d(n_out, n_in):
    scale = n_in / n_out
    src = np.maximum((np.arange(n_out) + 0.5) * scale - 0.5, 0.0)
    lo = np.minimum(np.floor(src).astype(np.int64), n_in - 1)
    hi = np.minimum(lo + 1, n_in - 1)
    lam = (src - lo).astype(np.float32)
    return lo, hi, lam


@functools.lru_cache(maxsize=None)
def _interp_matrix(n_out, n_in):
    lo, hi, lam = _interp_1d(n_out, n_in)
    m = np.zeros((n_out, n_in), np.float32)
    np.add.at(m, (np.arange(n_out), lo), 1.0 - lam)
    np.add.at(m, (np.arange(n_out), hi), lam)
    return m


@functools.lru_cache(maxsize=None)
def _kron_interp_t(h_out, w_out, h_in, w_in):
    """(Hin*Win, Hout*Wout) table so that up_T = f_T @ table in C-major layout."""
    # TODO(synk): this table grows as Hout*Wout*Hin*Win; at large production mask
    # resolutions switch to two separable (MH @ f, then blocked MW) matmuls.
    return np.kron(_interp_matrix(h_out, h_in),
                   _interp_matrix(w_out, w_in)).T.astype(np.float32)


# ----------------------------------------------------------------------------
# In-kernel building blocks (traced inside the fused Pallas kernel)
# ----------------------------------------------------------------------------
def _conv3x3_bias_relu(x_cg, w_packed, bias, h, w, xs_ref, patch_ref):
    """3x3 'SAME' conv + bias + ReLU in C-major layout, one im2col MXU matmul.

    x_cg: (Cin, H*W) f32; w_packed: (Cout, 9*Cin) bf16 with K order
    (ky*3+kx)*Cin + ci; bias: (Cout, 1) f32.  Returns (Cout, H*W) f32.
    """
    c, g = x_cg.shape

    # Flat padded-row buffer in a persistent bf16 scratch:
    #   [1 zero lane][W zero lanes][ x rows, H*W lanes ][W zero lanes][1 zero lane]
    # Lane q in [1, (H+2)*W] holds xpad[(q-1)//W, (q-1)%W] where xpad is x with a
    # zero row above and below; the extra end lanes make every tap below a single
    # static lane-offset slice.  Feature is cast to bf16 once, here.
    xs_ref[:, 0:w + 1] = jnp.zeros((c, w + 1), jnp.bfloat16)
    xs_ref[:, w + 1 + g:g + 2 * w + 2] = jnp.zeros((c, w + 1), jnp.bfloat16)
    xs_ref[:, w + 1:w + 1 + g] = x_cg.astype(jnp.bfloat16)

    # The flat extraction wraps across image rows at the left/right border;
    # mask those columns (lane-dense VPU selects, cheap).
    col = lax.broadcasted_iota(jnp.int32, (1, g), 1) % w
    not_first = col != 0
    not_last = col != (w - 1)

    for ky in range(3):
        for kx in range(3):
            tap = xs_ref[:, ky * w + kx:ky * w + kx + g]        # (Cin, G) bf16
            if kx == 0:
                tap = jnp.where(not_first, tap, jnp.zeros_like(tap))
            elif kx == 2:
                tap = jnp.where(not_last, tap, jnp.zeros_like(tap))
            t = ky * 3 + kx
            patch_ref[t * c:(t + 1) * c, 0:g] = tap             # im2col K-slice

    acc = jnp.dot(w_packed, patch_ref[:, 0:g],
                  preferred_element_type=jnp.float32)           # (Cout, G) f32
    return jnp.maximum(acc + bias, 0.0)


def _upsample_bilinear(f_cg, kron_t):
    """Bilinear upsample as ONE MXU matmul: (C, Gin) @ (Gin, Gout) -> (C, Gout)."""
    return jnp.dot(f_cg.astype(jnp.bfloat16), kron_t,
                   preferred_element_type=jnp.float32)


# ----------------------------------------------------------------------------
# Fused kernel: lay4 -> up+add -> lay3 -> up+add -> lay2, one frame per step
# ----------------------------------------------------------------------------
def _mask_head_kernel(x1_ref, x2_ref, x3_ref,
                      w4_ref, w3_ref, w2_ref,
                      b4_ref, b3_ref, b2_ref,
                      up21_ref, up32_ref,
                      o_ref,
                      xs_ref, patch_ref, *, hw):
    (h1, w1), (h2, w2), (h3, w3) = hw

    f = _conv3x3_bias_relu(x1_ref[0], w4_ref[...], b4_ref[...],
                           h1, w1, xs_ref, patch_ref)                    # lay4
    f = x2_ref[0] + _upsample_bilinear(f, up21_ref[...])
    f = _conv3x3_bias_relu(f, w3_ref[...], b3_ref[...],
                           h2, w2, xs_ref, patch_ref)                    # lay3
    f = x3_ref[0] + _upsample_bilinear(f, up32_ref[...])
    f = _conv3x3_bias_relu(f, w2_ref[...], b2_ref[...],
                           h3, w3, xs_ref, patch_ref)                    # lay2

    o_ref[0] = f                                  # (C, H3*W3) lane-dense store


@jax.jit
def _fused_forward(params, x1, x2, x3):
    """x1 = x[-1] (coarsest), x2 = x[-2], x3 = x[-3] (finest); all NCHW float32."""
    n, c, h1, w1 = x1.shape
    _, _, h2, w2 = x2.shape
    _, _, h3, w3 = x3.shape
    g1, g2, g3 = h1 * w1, h2 * w2, h3 * w3
    gmax = max(g1, g2, g3)
    wmax = max(w1, w2, w3)

    def pack(name):
        w_oihw, b = params[name]
        # (Cout,Cin,kh,kw) -> (Cout,kh,kw,Cin) -> (Cout, 9*Cin); bf16 MXU operand.
        wp = jnp.transpose(w_oihw, (0, 2, 3, 1)).reshape(c, 9 * c)
        return wp.astype(jnp.bfloat16), b.reshape(c, 1).astype(jnp.float32)

    w4, b4 = pack("lay4")
    w3p, b3 = pack("lay3")
    w2p, b2 = pack("lay2")

    up21 = jnp.asarray(_kron_interp_t(h2, w2, h1, w1), jnp.bfloat16)
    up32 = jnp.asarray(_kron_interp_t(h3, w3, h2, w2), jnp.bfloat16)

    # VMEM budget per grid step (double-buffered pyramid/output blocks, bf16
    # scratches, grid-invariant tables, live f32 intermediates).  Only override
    # the scoped limit when the estimate exceeds the most conservative default
    # (16 MiB, v5e) so tiny test shapes keep the stock configuration.
    vmem_est = (2 * 4 * c * (g1 + g2 + g3)
                + 2 * 4 * c * g3
                + 2 * (9 * c * gmax + c * (gmax + 2 * wmax + 2))
                + 2 * (g1 * g2 + g2 * g3 + 3 * 9 * c * c + 3 * c)
                + 8 * c * g3)
    vmem_limit = None if vmem_est < 16 * 1024 * 1024 else min(
        int(vmem_est * 3 // 2), 96 * 1024 * 1024)
    # TODO(synk): at production mask resolutions, if the finest level no longer
    # fits (v7x: 64 MiB physical), tile lay2 over H row bands with a 1-row halo.

    const = lambda i: (0, 0)
    kernel = functools.partial(_mask_head_kernel,
                               hw=((h1, w1), (h2, w2), (h3, w3)))

    out = pl.pallas_call(
        kernel,
        out_shape=jax.ShapeDtypeStruct((n, c, g3), jnp.float32),
        grid=(n,),
        in_specs=[
            pl.BlockSpec((1, c, g1), lambda i: (i, 0, 0)),
            pl.BlockSpec((1, c, g2), lambda i: (i, 0, 0)),
            pl.BlockSpec((1, c, g3), lambda i: (i, 0, 0)),
            pl.BlockSpec((c, 9 * c), const),     # grid-invariant: fetched once
            pl.BlockSpec((c, 9 * c), const),
            pl.BlockSpec((c, 9 * c), const),
            pl.BlockSpec((c, 1), const),
            pl.BlockSpec((c, 1), const),
            pl.BlockSpec((c, 1), const),
            pl.BlockSpec((g1, g2), const),
            pl.BlockSpec((g2, g3), const),
        ],
        out_specs=pl.BlockSpec((1, c, g3), lambda i: (i, 0, 0)),
        scratch_shapes=[
            pltpu.VMEM((c, gmax + 2 * wmax + 2), jnp.bfloat16),  # padded rows
            pltpu.VMEM((9 * c, gmax), jnp.bfloat16),             # im2col patches
        ],
        # Batch (frame) axis is "parallel" so v7x megacore splits it across TCs.
        compiler_params=pltpu.CompilerParams(
            dimension_semantics=("parallel",),
            vmem_limit_bytes=vmem_limit),
    )(x1.reshape(n, c, g1), x2.reshape(n, c, g2), x3.reshape(n, c, g3),
      w4, w3p, w2p, b4, b3, b2, up21, up32)

    return out.reshape(n, c, h3, w3)


# ----------------------------------------------------------------------------
# Public forward (NCHW in / NCHW out, matching the PyTorch module; no transposes)
# ----------------------------------------------------------------------------
def mask_head_small_conv_forward(params, x_nchw_list, tmp_feature=None, largef=None):
    # TODO(synk): fpn_temporal (ConvTmp) and large_feature (proj/GroupNorm/lay_up)
    # branches are disabled by the default constructor flags and not implemented.
    out = _fused_forward(params, x_nchw_list[-1], x_nchw_list[-2], x_nchw_list[-3])
    return [out], None


# ----------------------------------------------------------------------------
# Parameters (mirrors nn.Conv2d + kaiming_uniform_(a=1), bias=0)
# ----------------------------------------------------------------------------
def init_params(key, context_dim):
    params = {}
    for i, name in enumerate(("lay4", "lay3", "lay2")):
        k = jax.random.fold_in(key, i)
        fan_in = context_dim * 9
        bound = float(np.sqrt(3.0 / fan_in))            # kaiming_uniform_, a=1
        w_oihw = jax.random.uniform(k, (context_dim, context_dim, 3, 3),
                                    jnp.float32, -bound, bound)
        b = jnp.zeros((context_dim,), jnp.float32)
        params[name] = (w_oihw, b)
    return params


# ----------------------------------------------------------------------------
# Pure-JAX f32 reference (spec semantics) for the correctness check
# ----------------------------------------------------------------------------
def _ref_conv3x3_relu(x, w_oihw, b):
    y = lax.conv_general_dilated(
        x, w_oihw, (1, 1), "SAME",
        dimension_numbers=("NCHW", "OIHW", "NCHW"),
        precision=lax.Precision.HIGHEST)
    return jnp.maximum(y + b.reshape(1, -1, 1, 1), 0.0)


def _ref_upsample_add(low, skip):
    _, _, h_in, w_in = low.shape
    _, _, h_out, w_out = skip.shape
    lo, hi, lam = _interp_1d(h_out, h_in)
    lam = lam[None, None, :, None]
    g = low[:, :, lo, :] * (1.0 - lam) + low[:, :, hi, :] * lam
    lo, hi, lam = _interp_1d(w_out, w_in)
    lam = lam[None, None, None, :]
    g = g[:, :, :, lo] * (1.0 - lam) + g[:, :, :, hi] * lam
    return skip + g


def _ref_forward(params, x_nchw_list):
    f = _ref_conv3x3_relu(x_nchw_list[-1], *params["lay4"])
    f = _ref_upsample_add(f, x_nchw_list[-2])
    f = _ref_conv3x3_relu(f, *params["lay3"])
    f = _ref_upsample_add(f, x_nchw_list[-3])
    f = _ref_conv3x3_relu(f, *params["lay2"])
    return f


if __name__ == "__main__":
    key = jax.random.PRNGKey(0)
    k0, k1, k2, k3 = jax.random.split(key, 4)

    n, context_dim = 2, 32
    # FPN pyramid: x[-1] is the coarsest level (matches how VMFormer calls it).
    x3 = jax.random.normal(k0, (n, context_dim, 32, 32), jnp.float32)  # x[-3]
    x2 = jax.random.normal(k1, (n, context_dim, 16, 16), jnp.float32)  # x[-2]
    x1 = jax.random.normal(k2, (n, context_dim, 8, 8), jnp.float32)    # x[-1]
    x = [x3, x2, x1]

    params = init_params(k3, context_dim)

    out_list, cur_tmp = mask_head_small_conv_forward(params, x,
                                                     tmp_feature=None,
                                                     largef=None)
    out = jax.block_until_ready(out_list[0])
    assert out.shape == (n, context_dim, 32, 32)
    assert cur_tmp is None

    # Reference is pure f32 / HIGHEST precision; the kernel uses bf16 MXU
    # operands (convs and upsample tables) with f32 accumulation, hence the
    # loosened tolerance.
    ref = jax.block_until_ready(_ref_forward(params, x))
    np.testing.assert_allclose(np.asarray(out), np.asarray(ref),
                               rtol=3e-2, atol=5e-2)

    print("KERNEL_OK")
</pallas_src>

<mosaic_0001>
module attributes {stable_mosaic.version = 11 : i64} {
  func.func @_mask_head_kernel(%arg0: i32, %arg1: memref<1x32x64xf32, #tpu.memory_space<vmem>>, %arg2: memref<1x32x256xf32, #tpu.memory_space<vmem>>, %arg3: memref<1x32x1024xf32, #tpu.memory_space<vmem>>, %arg4: memref<32x288xbf16, #tpu.memory_space<vmem>>, %arg5: memref<32x288xbf16, #tpu.memory_space<vmem>>, %arg6: memref<32x288xbf16, #tpu.memory_space<vmem>>, %arg7: memref<32x1xf32, #tpu.memory_space<vmem>>, %arg8: memref<32x1xf32, #tpu.memory_space<vmem>>, %arg9: memref<32x1xf32, #tpu.memory_space<vmem>>, %arg10: memref<64x256xbf16, #tpu.memory_space<vmem>>, %arg11: memref<256x1024xbf16, #tpu.memory_space<vmem>>, %arg12: memref<1x32x1024xf32, #tpu.memory_space<vmem>>, %arg13: memref<32x1090xbf16, #tpu.memory_space<vmem>>, %arg14: memref<288x1024xbf16, #tpu.memory_space<vmem>>) attributes {dimension_semantics = [#tpu.dimension_semantics<parallel>], iteration_bounds = array<i64: 2>, scalar_prefetch = 0 : i64, scratch_operands = 2 : i64, tpu.core_type = #tpu.core_type<tc>, window_params = [{transform_indices = @transform_0, window_bounds = array<i64: 1, 32, 64>}, {transform_indices = @transform_1, window_bounds = array<i64: 1, 32, 256>}, {transform_indices = @transform_2, window_bounds = array<i64: 1, 32, 1024>}, {pipeline_mode = #tpu.pipeline_mode<synchronous>, transform_indices = @transform_3, window_bounds = array<i64: 32, 288>}, {pipeline_mode = #tpu.pipeline_mode<synchronous>, transform_indices = @transform_4, window_bounds = array<i64: 32, 288>}, {pipeline_mode = #tpu.pipeline_mode<synchronous>, transform_indices = @transform_5, window_bounds = array<i64: 32, 288>}, {pipeline_mode = #tpu.pipeline_mode<synchronous>, transform_indices = @transform_6, window_bounds = array<i64: 32, 1>}, {pipeline_mode = #tpu.pipeline_mode<synchronous>, transform_indices = @transform_7, window_bounds = array<i64: 32, 1>}, {pipeline_mode = #tpu.pipeline_mode<synchronous>, transform_indices = @transform_8, window_bounds = array<i64: 32, 1>}, {pipeline_mode = #tpu.pipeline_mode<synchronous>, transform_indices = @transform_9, window_bounds = array<i64: 64, 256>}, {pipeline_mode = #tpu.pipeline_mode<synchronous>, transform_indices = @transform_10, window_bounds = array<i64: 256, 1024>}, {transform_indices = @transform_11, window_bounds = array<i64: 1, 32, 1024>}]} {
    %c0 = arith.constant 0 : index
    %c0_0 = arith.constant 0 : index
    %c0_1 = arith.constant 0 : index
    %0 = vector.load %arg1[%c0, %c0_0, %c0_1] : memref<1x32x64xf32, #tpu.memory_space<vmem>>, vector<1x32x64xf32>
    %1 = vector.shape_cast %0 : vector<1x32x64xf32> to vector<32x64xf32>
    %c0_2 = arith.constant 0 : index
    %c0_3 = arith.constant 0 : index
    %2 = vector.load %arg4[%c0_2, %c0_3] : memref<32x288xbf16, #tpu.memory_space<vmem>>, vector<32x288xbf16>
    %c0_4 = arith.constant 0 : index
    %c0_5 = arith.constant 0 : index
    %3 = vector.load %arg7[%c0_4, %c0_5] : memref<32x1xf32, #tpu.memory_space<vmem>>, vector<32x1xf32>
    %cst = arith.constant 0.000000e+00 : bf16
    %4 = vector.broadcast %cst : bf16 to vector<32x9xbf16>
    %c0_6 = arith.constant 0 : index
    %c0_7 = arith.constant 0 : index
    %5 = vector.load %arg13[%c0_6, %c0_7] : memref<32x1090xbf16, #tpu.memory_space<vmem>>, vector<32x9xbf16>
    tpu.vector_store %arg13[%c0_6, %c0_7], %4 {strides = array<i32>} : memref<32x1090xbf16, #tpu.memory_space<vmem>>, vector<32x9xbf16>,
    %cst_8 = arith.constant 0.000000e+00 : bf16
    %6 = vector.broadcast %cst_8 : bf16 to vector<32x9xbf16>
    %c0_9 = arith.constant 0 : index
    %c73 = arith.constant 73 : index
    %7 = vector.load %arg13[%c0_9, %c73] : memref<32x1090xbf16, #tpu.memory_space<vmem>>, vector<32x9xbf16>
    tpu.vector_store %arg13[%c0_9, %c73], %6 {strides = array<i32>} : memref<32x1090xbf16, #tpu.memory_space<vmem>>, vector<32x9xbf16>,
    %8 = arith.truncf %1 : vector<32x64xf32> to vector<32x64xbf16>
    %c0_10 = arith.constant 0 : index
    %c9 = arith.constant 9 : index
    %9 = vector.load %arg13[%c0_10, %c9] : memref<32x1090xbf16, #tpu.memory_space<vmem>>, vector<32x64xbf16>
    tpu.vector_store %arg13[%c0_10, %c9], %8 {strides = array<i32>} : memref<32x1090xbf16, #tpu.memory_space<vmem>>, vector<32x64xbf16>,
    %10 = tpu.iota {dimensions = array<i32: 1>} : vector<1x64xi32>
    %c8_i32 = arith.constant 8 : i32
    %c0_i32 = arith.constant 0 : i32
    %11 = arith.cmpi eq, %c8_i32, %c0_i32 : i32
    %c1_i32 = arith.constant 1 : i32
    %12 = arith.select %11, %c1_i32, %c8_i32 : i32
    %13 = vector.broadcast %12 : i32 to vector<1x64xi32>
    %14 = arith.remsi %10, %13 : vector<1x64xi32>
    %c0_i32_11 = arith.constant 0 : i32
    %15 = vector.broadcast %c0_i32_11 : i32 to vector<1x64xi32>
    %16 = arith.cmpi ne, %14, %15 : vector<1x64xi32>
    %c0_i32_12 = arith.constant 0 : i32
    %17 = vector.broadcast %c0_i32_12 : i32 to vector<1x64xi32>
    %18 = arith.cmpi slt, %14, %17 : vector<1x64xi32>
    %c0_i32_13 = arith.constant 0 : i32
    %19 = arith.cmpi slt, %12, %c0_i32_13 : i32
    %20 = vector.broadcast %19 : i1 to vector<1x64xi1>
    %21 = vector.broadcast %20 : vector<1x64xi1> to vector<1x64xi1>
    %22 = arith.xori %18, %21 : vector<1x64xi1>
    %23 = arith.andi %22, %16 : vector<1x64xi1>
    %24 = vector.broadcast %12 : i32 to vector<1x64xi32>
    %25 = arith.addi %14, %24 : vector<1x64xi32>
    %26 = arith.select %23, %25, %14 : vector<1x64xi1>, vector<1x64xi32>
    %c0_i32_14 = arith.constant 0 : i32
    %27 = vector.broadcast %c0_i32_14 : i32 to vector<1x64xi32>
    %28 = arith.cmpi ne, %26, %27 : vector<1x64xi32>
    %c7_i32 = arith.constant 7 : i32
    %29 = vector.broadcast %c7_i32 : i32 to vector<1x64xi32>
    %30 = arith.cmpi ne, %26, %29 : vector<1x64xi32>
    %c0_15 = arith.constant 0 : index
    %c0_16 = arith.constant 0 : index
    %31 = vector.load %arg13[%c0_15, %c0_16] : memref<32x1090xbf16, #tpu.memory_space<vmem>>, vector<32x64xbf16>
    %cst_17 = arith.constant 0.000000e+00 : bf16
    %32 = vector.broadcast %cst_17 : bf16 to vector<32x64xbf16>
    %33 = vector.shape_cast %28 : vector<1x64xi1> to vector<1x64xi1>
    %34 = vector.broadcast %33 : vector<1x64xi1> to vector<32x64xi1>
    %35 = arith.select %34, %31, %32 : vector<32x64xi1>, vector<32x64xbf16>
    %c0_18 = arith.constant 0 : index
    %c0_19 = arith.constant 0 : index
    %36 = vector.load %arg14[%c0_18, %c0_19] : memref<288x1024xbf16, #tpu.memory_space<vmem>>, vector<32x64xbf16>
    tpu.vector_store %arg14[%c0_18, %c0_19], %35 {strides = array<i32>} : memref<288x1024xbf16, #tpu.memory_space<vmem>>, vector<32x64xbf16>,
    %c0_20 = arith.constant 0 : index
    %c1 = arith.constant 1 : index
    %37 = vector.load %arg13[%c0_20, %c1] : memref<32x1090xbf16, #tpu.memory_space<vmem>>, vector<32x64xbf16>
    %c32 = arith.constant 32 : index
    %c0_21 = arith.constant 0 : index
    %38 = vector.load %arg14[%c32, %c0_21] : memref<288x1024xbf16, #tpu.memory_space<vmem>>, vector<32x64xbf16>
    tpu.vector_store %arg14[%c32, %c0_21], %37 {strides = array<i32>} : memref<288x1024xbf16, #tpu.memory_space<vmem>>, vector<32x64xbf16>,
    %c0_22 = arith.constant 0 : index
    %c2 = arith.constant 2 : index
    %39 = vector.load %arg13[%c0_22, %c2] : memref<32x1090xbf16, #tpu.memory_space<vmem>>, vector<32x64xbf16>
    %cst_23 = arith.constant 0.000000e+00 : bf16
    %40 = vector.broadcast %cst_23 : bf16 to vector<32x64xbf16>
    %41 = vector.shape_cast %30 : vector<1x64xi1> to vector<1x64xi1>
    %42 = vector.broadcast %41 : vector<1x64xi1> to vector<32x64xi1>
    %43 = arith.select %42, %39, %40 : vector<32x64xi1>, vector<32x64xbf16>
    %c64 = arith.constant 64 : index
    %c0_24 = arith.constant 0 : index
    %44 = vector.load %arg14[%c64, %c0_24] : memref<288x1024xbf16, #tpu.memory_space<vmem>>, vector<32x64xbf16>
    tpu.vector_store %arg14[%c64, %c0_24], %43 {strides = array<i32>} : memref<288x1024xbf16, #tpu.memory_space<vmem>>, vector<32x64xbf16>,
    %c0_25 = arith.constant 0 : index
    %c8 = arith.constant 8 : index
    %45 = vector.load %arg13[%c0_25, %c8] : memref<32x1090xbf16, #tpu.memory_space<vmem>>, vector<32x64xbf16>
    %cst_26 = arith.constant 0.000000e+00 : bf16
    %46 = vector.broadcast %cst_26 : bf16 to vector<32x64xbf16>
    %47 = vector.shape_cast %28 : vector<1x64xi1> to vector<1x64xi1>
    %48 = vector.broadcast %47 : vector<1x64xi1> to vector<32x64xi1>
    %49 = arith.select %48, %45, %46 : vector<32x64xi1>, vector<32x64xbf16>
    %c96 = arith.constant 96 : index
    %c0_27 = arith.constant 0 : index
    %50 = vector.load %arg14[%c96, %c0_27] : memref<288x1024xbf16, #tpu.memory_space<vmem>>, vector<32x64xbf16>
    tpu.vector_store %arg14[%c96, %c0_27], %49 {strides = array<i32>} : memref<288x1024xbf16, #tpu.memory_space<vmem>>, vector<32x64xbf16>,
    %c0_28 = arith.constant 0 : index
    %c9_29 = arith.constant 9 : index
    %51 = vector.load %arg13[%c0_28, %c9_29] : memref<32x1090xbf16, #tpu.memory_space<vmem>>, vector<32x64xbf16>
    %c128 = arith.constant 128 : index
    %c0_30 = arith.constant 0 : index
    %52 = vector.load %arg14[%c128, %c0_30] : memref<288x1024xbf16, #tpu.memory_space<vmem>>, vector<32x64xbf16>
    tpu.vector_store %arg14[%c128, %c0_30], %51 {strides = array<i32>} : memref<288x1024xbf16, #tpu.memory_space<vmem>>, vector<32x64xbf16>,
    %c0_31 = arith.constant 0 : index
    %c10 = arith.constant 10 : index
    %53 = vector.load %arg13[%c0_31, %c10] : memref<32x1090xbf16, #tpu.memory_space<vmem>>, vector<32x64xbf16>
    %cst_32 = arith.constant 0.000000e+00 : bf16
    %54 = vector.broadcast %cst_32 : bf16 to vector<32x64xbf16>
    %55 = vector.shape_cast %30 : vector<1x64xi1> to vector<1x64xi1>
    %56 = vector.broadcast %55 : vector<1x64xi1> to vector<32x64xi1>
    %57 = arith.select %56, %53, %54 : vector<32x64xi1>, vector<32x64xbf16>
    %c160 = arith.constant 160 : index
    %c0_33 = arith.constant 0 : index
    %58 = vector.load %arg14[%c160, %c0_33] : memref<288x1024xbf16, #tpu.memory_space<vmem>>, vector<32x64xbf16>
    tpu.vector_store %arg14[%c160, %c0_33], %57 {strides = array<i32>} : memref<288x1024xbf16, #tpu.memory_space<vmem>>, vector<32x64xbf16>,
    %c0_34 = arith.constant 0 : index
    %c16 = arith.constant 16 : index
    %59 = vector.load %arg13[%c0_34, %c16] : memref<32x1090xbf16, #tpu.memory_space<vmem>>, vector<32x64xbf16>
    %cst_35 = arith.constant 0.000000e+00 : bf16
    %60 = vector.broadcast %cst_35 : bf16 to vector<32x64xbf16>
    %61 = vector.shape_cast %28 : vector<1x64xi1> to vector<1x64xi1>
    %62 = vector.broadcast %61 : vector<1x64xi1> to vector<32x64xi1>
    %63 = arith.select %62, %59, %60 : vector<32x64xi1>, vector<32x64xbf16>
    %c192 = arith.constant 192 : index
    %c0_36 = arith.constant 0 : index
    %64 = vector.load %arg14[%c192, %c0_36] : memref<288x1024xbf16, #tpu.memory_space<vmem>>, vector<32x64xbf16>
    tpu.vector_store %arg14[%c192, %c0_36], %63 {strides = array<i32>} : memref<288x1024xbf16, #tpu.memory_space<vmem>>, vector<32x64xbf16>,
    %c0_37 = arith.constant 0 : index
    %c17 = arith.constant 17 : index
    %65 = vector.load %arg13[%c0_37, %c17] : memref<32x1090xbf16, #tpu.memory_space<vmem>>, vector<32x64xbf16>
    %c224 = arith.constant 224 : index
    %c0_38 = arith.constant 0 : index
    %66 = vector.load %arg14[%c224, %c0_38] : memref<288x1024xbf16, #tpu.memory_space<vmem>>, vector<32x64xbf16>
    tpu.vector_store %arg14[%c224, %c0_38], %65 {strides = array<i32>} : memref<288x1024xbf16, #tpu.memory_space<vmem>>, vector<32x64xbf16>,
    %c0_39 = arith.constant 0 : index
    %c18 = arith.constant 18 : index
    %67 = vector.load %arg13[%c0_39, %c18] : memref<32x1090xbf16, #tpu.memory_space<vmem>>, vector<32x64xbf16>
    %cst_40 = arith.constant 0.000000e+00 : bf16
    %68 = vector.broadcast %cst_40 : bf16 to vector<32x64xbf16>
    %69 = vector.shape_cast %30 : vector<1x64xi1> to vector<1x64xi1>
    %70 = vector.broadcast %69 : vector<1x64xi1> to vector<32x64xi1>
    %71 = arith.select %70, %67, %68 : vector<32x64xi1>, vector<32x64xbf16>
    %c256 = arith.constant 256 : index
    %c0_41 = arith.constant 0 : index
    %72 = vector.load %arg14[%c256, %c0_41] : memref<288x1024xbf16, #tpu.memory_space<vmem>>, vector<32x64xbf16>
    tpu.vector_store %arg14[%c256, %c0_41], %71 {strides = array<i32>} : memref<288x1024xbf16, #tpu.memory_space<vmem>>, vector<32x64xbf16>,
    %c0_42 = arith.constant 0 : index
    %c0_43 = arith.constant 0 : index
    %73 = vector.load %arg14[%c0_42, %c0_43] : memref<288x1024xbf16, #tpu.memory_space<vmem>>, vector<288x64xbf16>
    %cst_44 = arith.constant dense<0.000000e+00> : vector<32x64xf32>
    %74 = tpu.matmul %2, %73, %cst_44 {dimension_numbers = #tpu.dot_dimension_numbers<[1], [0], [0], [1], [0, 0, 1, 1], [], []>} : vector<32x288xbf16>, vector<288x64xbf16>, vector<32x64xf32> -> vector<32x64xf32>
    %75 = vector.broadcast %3 : vector<32x1xf32> to vector<32x64xf32>
    %76 = arith.addf %74, %75 : vector<32x64xf32>
    %cst_45 = arith.constant 0.000000e+00 : f32
    %77 = vector.broadcast %cst_45 : f32 to vector<32x64xf32>
    %78 = arith.maximumf %76, %77 : vector<32x64xf32>
    %c0_46 = arith.constant 0 : index
    %c0_47 = arith.constant 0 : index
    %c0_48 = arith.constant 0 : index
    %79 = vector.load %arg2[%c0_46, %c0_47, %c0_48] : memref<1x32x256xf32, #tpu.memory_space<vmem>>, vector<1x32x256xf32>
    %80 = vector.shape_cast %79 : vector<1x32x256xf32> to vector<32x256xf32>
    %c0_49 = arith.constant 0 : index
    %c0_50 = arith.constant 0 : index
    %81 = vector.load %arg10[%c0_49, %c0_50] : memref<64x256xbf16, #tpu.memory_space<vmem>>, vector<64x256xbf16>
    %82 = arith.truncf %78 : vector<32x64xf32> to vector<32x64xbf16>
    %cst_51 = arith.constant dense<0.000000e+00> : vector<32x256xf32>
    %83 = tpu.matmul %82, %81, %cst_51 {dimension_numbers = #tpu.dot_dimension_numbers<[1], [0], [0], [1], [0, 0, 1, 1], [], []>} : vector<32x64xbf16>, vector<64x256xbf16>, vector<32x256xf32> -> vector<32x256xf32>
    %84 = arith.addf %80, %83 : vector<32x256xf32>
    %c0_52 = arith.constant 0 : index
    %c0_53 = arith.constant 0 : index
    %85 = vector.load %arg5[%c0_52, %c0_53] : memref<32x288xbf16, #tpu.memory_space<vmem>>, vector<32x288xbf16>
    %c0_54 = arith.constant 0 : index
    %c0_55 = arith.constant 0 : index
    %86 = vector.load %arg8[%c0_54, %c0_55] : memref<32x1xf32, #tpu.memory_space<vmem>>, vector<32x1xf32>
    %cst_56 = arith.constant 0.000000e+00 : bf16
    %87 = vector.broadcast %cst_56 : bf16 to vector<32x17xbf16>
    %c0_57 = arith.constant 0 : index
    %c0_58 = arith.constant 0 : index
    %88 = vector.load %arg13[%c0_57, %c0_58] : memref<32x1090xbf16, #tpu.memory_space<vmem>>, vector<32x17xbf16>
    tpu.vector_store %arg13[%c0_57, %c0_58], %87 {strides = array<i32>} : memref<32x1090xbf16, #tpu.memory_space<vmem>>, vector<32x17xbf16>,
    %cst_59 = arith.constant 0.000000e+00 : bf16
    %89 = vector.broadcast %cst_59 : bf16 to vector<32x17xbf16>
    %c0_60 = arith.constant 0 : index
    %c273 = arith.constant 273 : index
    %90 = vector.load %arg13[%c0_60, %c273] : memref<32x1090xbf16, #tpu.memory_space<vmem>>, vector<32x17xbf16>
    tpu.vector_store %arg13[%c0_60, %c273], %89 {strides = array<i32>} : memref<32x1090xbf16, #tpu.memory_space<vmem>>, vector<32x17xbf16>,
    %91 = arith.truncf %84 : vector<32x256xf32> to vector<32x256xbf16>
    %c0_61 = arith.constant 0 : index
    %c17_62 = arith.constant 17 : index
    %92 = vector.load %arg13[%c0_61, %c17_62] : memref<32x1090xbf16, #tpu.memory_space<vmem>>, vector<32x256xbf16>
    tpu.vector_store %arg13[%c0_61, %c17_62], %91 {strides = array<i32>} : memref<32x1090xbf16, #tpu.memory_space<vmem>>, vector<32x256xbf16>,
    %93 = tpu.iota {dimensions = array<i32: 1>} : vector<1x256xi32>
    %c16_i32 = arith.constant 16 : i32
    %c0_i32_63 = arith.constant 0 : i32
    %94 = arith.cmpi eq, %c16_i32, %c0_i32_63 : i32
    %c1_i32_64 = arith.constant 1 : i32
    %95 = arith.select %94, %c1_i32_64, %c16_i32 : i32
    %96 = vector.broadcast %95 : i32 to vector<1x256xi32>
    %97 = arith.remsi %93, %96 : vector<1x256xi32>
    %c0_i32_65 = arith.constant 0 : i32
    %98 = vector.broadcast %c0_i32_65 : i32 to vector<1x256xi32>
    %99 = arith.cmpi ne, %97, %98 : vector<1x256xi32>
    %c0_i32_66 = arith.constant 0 : i32
    %100 = vector.broadcast %c0_i32_66 : i32 to vector<1x256xi32>
    %101 = arith.cmpi slt, %97, %100 : vector<1x256xi32>
    %c0_i32_67 = arith.constant 0 : i32
    %102 = arith.cmpi slt, %95, %c0_i32_67 : i32
    %103 = vector.broadcast %102 : i1 to vector<1x256xi1>
    %104 = vector.broadcast %103 : vector<1x256xi1> to vector<1x256xi1>
    %105 = arith.xori %101, %104 : vector<1x256xi1>
    %106 = arith.andi %105, %99 : vector<1x256xi1>
    %107 = vector.broadcast %95 : i32 to vector<1x256xi32>
    %108 = arith.addi %97, %107 : vector<1x256xi32>
    %109 = arith.select %106, %108, %97 : vector<1x256xi1>, vector<1x256xi32>
    %c0_i32_68 = arith.constant 0 : i32
    %110 = vector.broadcast %c0_i32_68 : i32 to vector<1x256xi32>
    %111 = arith.cmpi ne, %109, %110 : vector<1x256xi32>
    %c15_i32 = arith.constant 15 : i32
    %112 = vector.broadcast %c15_i32 : i32 to vector<1x256xi32>
    %113 = arith.cmpi ne, %109, %112 : vector<1x256xi32>
    %c0_69 = arith.constant 0 : index
    %c0_70 = arith.constant 0 : index
    %114 = vector.load %arg13[%c0_69, %c0_70] : memref<32x1090xbf16, #tpu.memory_space<vmem>>, vector<32x256xbf16>
    %cst_71 = arith.constant 0.000000e+00 : bf16
    %115 = vector.broadcast %cst_71 : bf16 to vector<32x256xbf16>
    %116 = vector.shape_cast %111 : vector<1x256xi1> to vector<1x256xi1>
    %117 = vector.broadcast %116 : vector<1x256xi1> to vector<32x256xi1>
    %118 = arith.select %117, %114, %115 : vector<32x256xi1>, vector<32x256xbf16>
    %c0_72 = arith.constant 0 : index
    %c0_73 = arith.constant 0 : index
    %119 = vector.load %arg14[%c0_72, %c0_73] : memref<288x1024xbf16, #tpu.memory_space<vmem>>, vector<32x256xbf16>
    tpu.vector_store %arg14[%c0_72, %c0_73], %118 {strides = array<i32>} : memref<288x1024xbf16, #tpu.memory_space<vmem>>, vector<32x256xbf16>,
    %c0_74 = arith.constant 0 : index
    %c1_75 = arith.constant 1 : index
    %120 = vector.load %arg13[%c0_74, %c1_75] : memref<32x1090xbf16, #tpu.memory_space<vmem>>, vector<32x256xbf16>
    %c32_76 = arith.constant 32 : index
    %c0_77 = arith.constant 0 : index
    %121 = vector.load %arg14[%c32_76, %c0_77] : memref<288x1024xbf16, #tpu.memory_space<vmem>>, vector<32x256xbf16>
    tpu.vector_store %arg14[%c32_76, %c0_77], %120 {strides = array<i32>} : memref<288x1024xbf16, #tpu.memory_space<vmem>>, vector<32x256xbf16>,
    %c0_78 = arith.constant 0 : index
    %c2_79 = arith.constant 2 : index
    %122 = vector.load %arg13[%c0_78, %c2_79] : memref<32x1090xbf16, #tpu.memory_space<vmem>>, vector<32x256xbf16>
    %cst_80 = arith.constant 0.000000e+00 : bf16
    %123 = vector.broadcast %cst_80 : bf16 to vector<32x256xbf16>
    %124 = vector.shape_cast %113 : vector<1x256xi1> to vector<1x256xi1>
    %125 = vector.broadcast %124 : vector<1x256xi1> to vector<32x256xi1>
    %126 = arith.select %125, %122, %123 : vector<32x256xi1>, vector<32x256xbf16>
    %c64_81 = arith.constant 64 : index
    %c0_82 = arith.constant 0 : index
    %127 = vector.load %arg14[%c64_81, %c0_82] : memref<288x1024xbf16, #tpu.memory_space<vmem>>, vector<32x256xbf16>
    tpu.vector_store %arg14[%c64_81, %c0_82], %126 {strides = array<i32>} : memref<288x1024xbf16, #tpu.memory_space<vmem>>, vector<32x256xbf16>,
    %c0_83 = arith.constant 0 : index
    %c16_84 = arith.constant 16 : index
    %128 = vector.load %arg13[%c0_83, %c16_84] : memref<32x1090xbf16, #tpu.memory_space<vmem>>, vector<32x256xbf16>
    %cst_85 = arith.constant 0.000000e+00 : bf16
    %129 = vector.broadcast %cst_85 : bf16 to vector<32x256xbf16>
    %130 = vector.shape_cast %111 : vector<1x256xi1> to vector<1x256xi1>
    %131 = vector.broadcast %130 : vector<1x256xi1> to vector<32x256xi1>
    %132 = arith.select %131, %128, %129 : vector<32x256xi1>, vector<32x256xbf16>
    %c96_86 = arith.constant 96 : index
    %c0_87 = arith.constant 0 : index
    %133 = vector.load %arg14[%c96_86, %c0_87] : memref<288x1024xbf16, #tpu.memory_space<vmem>>, vector<32x256xbf16>
    tpu.vector_store %arg14[%c96_86, %c0_87], %132 {strides = array<i32>} : memref<288x1024xbf16, #tpu.memory_space<vmem>>, vector<32x256xbf16>,
    %c0_88 = arith.constant 0 : index
    %c17_89 = arith.constant 17 : index
    %134 = vector.load %arg13[%c0_88, %c17_89] : memref<32x1090xbf16, #tpu.memory_space<vmem>>, vector<32x256xbf16>
    %c128_90 = arith.constant 128 : index
    %c0_91 = arith.constant 0 : index
    %135 = vector.load %arg14[%c128_90, %c0_91] : memref<288x1024xbf16, #tpu.memory_space<vmem>>, vector<32x256xbf16>
    tpu.vector_store %arg14[%c128_90, %c0_91], %134 {strides = array<i32>} : memref<288x1024xbf16, #tpu.memory_space<vmem>>, vector<32x256xbf16>,
    %c0_92 = arith.constant 0 : index
    %c18_93 = arith.constant 18 : index
    %136 = vector.load %arg13[%c0_92, %c18_93] : memref<32x1090xbf16, #tpu.memory_space<vmem>>, vector<32x256xbf16>
    %cst_94 = arith.constant 0.000000e+00 : bf16
    %137 = vector.broadcast %cst_94 : bf16 to vector<32x256xbf16>
    %138 = vector.shape_cast %113 : vector<1x256xi1> to vector<1x256xi1>
    %139 = vector.broadcast %138 : vector<1x256xi1> to vector<32x256xi1>
    %140 = arith.select %139, %136, %137 : vector<32x256xi1>, vector<32x256xbf16>
    %c160_95 = arith.constant 160 : index
    %c0_96 = arith.constant 0 : index
    %141 = vector.load %arg14[%c160_95, %c0_96] : memref<288x1024xbf16, #tpu.memory_space<vmem>>, vector<32x256xbf16>
    tpu.vector_store %arg14[%c160_95, %c0_96], %140 {strides = array<i32>} : memref<288x1024xbf16, #tpu.memory_space<vmem>>, vector<32x256xbf16>,
    %c0_97 = arith.constant 0 : index
    %c32_98 = arith.constant 32 : index
    %142 = vector.load %arg13[%c0_97, %c32_98] : memref<32x1090xbf16, #tpu.memory_space<vmem>>, vector<32x256xbf16>
    %cst_99 = arith.constant 0.000000e+00 : bf16
    %143 = vector.broadcast %cst_99 : bf16 to vector<32x256xbf16>
    %144 = vector.shape_cast %111 : vector<1x256xi1> to vector<1x256xi1>
    %145 = vector.broadcast %144 : vector<1x256xi1> to vector<32x256xi1>
    %146 = arith.select %145, %142, %143 : vector<32x256xi1>, vector<32x256xbf16>
    %c192_100 = arith.constant 192 : index
    %c0_101 = arith.constant 0 : index
    %147 = vector.load %arg14[%c192_100, %c0_101] : memref<288x1024xbf16, #tpu.memory_space<vmem>>, vector<32x256xbf16>
    tpu.vector_store %arg14[%c192_100, %c0_101], %146 {strides = array<i32>} : memref<288x1024xbf16, #tpu.memory_space<vmem>>, vector<32x256xbf16>,
    %c0_102 = arith.constant 0 : index
    %c33 = arith.constant 33 : index
    %148 = vector.load %arg13[%c0_102, %c33] : memref<32x1090xbf16, #tpu.memory_space<vmem>>, vector<32x256xbf16>
    %c224_103 = arith.constant 224 : index
    %c0_104 = arith.constant 0 : index
    %149 = vector.load %arg14[%c224_103, %c0_104] : memref<288x1024xbf16, #tpu.memory_space<vmem>>, vector<32x256xbf16>
    tpu.vector_store %arg14[%c224_103, %c0_104], %148 {strides = array<i32>} : memref<288x1024xbf16, #tpu.memory_space<vmem>>, vector<32x256xbf16>,
    %c0_105 = arith.constant 0 : index
    %c34 = arith.constant 34 : index
    %150 = vector.load %arg13[%c0_105, %c34] : memref<32x1090xbf16, #tpu.memory_space<vmem>>, vector<32x256xbf16>
    %cst_106 = arith.constant 0.000000e+00 : bf16
    %151 = vector.broadcast %cst_106 : bf16 to vector<32x256xbf16>
    %152 = vector.shape_cast %113 : vector<1x256xi1> to vector<1x256xi1>
    %153 = vector.broadcast %152 : vector<1x256xi1> to vector<32x256xi1>
    %154 = arith.select %153, %150, %151 : vector<32x256xi1>, vector<32x256xbf16>
    %c256_107 = arith.constant 256 : index
    %c0_108 = arith.constant 0 : index
    %155 = vector.load %arg14[%c256_107, %c0_108] : memref<288x1024xbf16, #tpu.memory_space<vmem>>, vector<32x256xbf16>
    tpu.vector_store %arg14[%c256_107, %c0_108], %154 {strides = array<i32>} : memref<288x1024xbf16, #tpu.memory_space<vmem>>, vector<32x256xbf16>,
    %c0_109 = arith.constant 0 : index
    %c0_110 = arith.constant 0 : index
    %156 = vector.load %arg14[%c0_109, %c0_110] : memref<288x1024xbf16, #tpu.memory_space<vmem>>, vector<288x256xbf16>
    %cst_111 = arith.constant dense<0.000000e+00> : vector<32x256xf32>
    %157 = tpu.matmul %85, %156, %cst_111 {dimension_numbers = #tpu.dot_dimension_numbers<[1], [0], [0], [1], [0, 0, 1, 1], [], []>} : vector<32x288xbf16>, vector<288x256xbf16>, vector<32x256xf32> -> vector<32x256xf32>
    %158 = vector.broadcast %86 : vector<32x1xf32> to vector<32x256xf32>
    %159 = arith.addf %157, %158 : vector<32x256xf32>
    %cst_112 = arith.constant 0.000000e+00 : f32
    %160 = vector.broadcast %cst_112 : f32 to vector<32x256xf32>
    %161 = arith.maximumf %159, %160 : vector<32x256xf32>
    %c0_113 = arith.constant 0 : index
    %c0_114 = arith.constant 0 : index
    %c0_115 = arith.constant 0 : index
    %162 = vector.load %arg3[%c0_113, %c0_114, %c0_115] : memref<1x32x1024xf32, #tpu.memory_space<vmem>>, vector<1x32x1024xf32>
    %163 = vector.shape_cast %162 : vector<1x32x1024xf32> to vector<32x1024xf32>
    %c0_116 = arith.constant 0 : index
    %c0_117 = arith.constant 0 : index
    %164 = vector.load %arg11[%c0_116, %c0_117] : memref<256x1024xbf16, #tpu.memory_space<vmem>>, vector<256x1024xbf16>
    %165 = arith.truncf %161 : vector<32x256xf32> to vector<32x256xbf16>
    %cst_118 = arith.constant dense<0.000000e+00> : vector<32x1024xf32>
    %166 = tpu.matmul %165, %164, %cst_118 {dimension_numbers = #tpu.dot_dimension_numbers<[1], [0], [0], [1], [0, 0, 1, 1], [], []>} : vector<32x256xbf16>, vector<256x1024xbf16>, vector<32x1024xf32> -> vector<32x1024xf32>
    %167 = arith.addf %163, %166 : vector<32x1024xf32>
    %c0_119 = arith.constant 0 : index
    %c0_120 = arith.constant 0 : index
    %168 = vector.load %arg6[%c0_119, %c0_120] : memref<32x288xbf16, #tpu.memory_space<vmem>>, vector<32x288xbf16>
    %c0_121 = arith.constant 0 : index
    %c0_122 = arith.constant 0 : index
    %169 = vector.load %arg9[%c0_121, %c0_122] : memref<32x1xf32, #tpu.memory_space<vmem>>, vector<32x1xf32>
    %cst_123 = arith.constant 0.000000e+00 : bf16
    %170 = vector.broadcast %cst_123 : bf16 to vector<32x33xbf16>
    %c0_124 = arith.constant 0 : index
    %c0_125 = arith.constant 0 : index
    %171 = vector.load %arg13[%c0_124, %c0_125] : memref<32x1090xbf16, #tpu.memory_space<vmem>>, vector<32x33xbf16>
    tpu.vector_store %arg13[%c0_124, %c0_125], %170 {strides = array<i32>} : memref<32x1090xbf16, #tpu.memory_space<vmem>>, vector<32x33xbf16>,
    %cst_126 = arith.constant 0.000000e+00 : bf16
    %172 = vector.broadcast %cst_126 : bf16 to vector<32x33xbf16>
    %c0_127 = arith.constant 0 : index
    %c1057 = arith.constant 1057 : index
    %173 = vector.load %arg13[%c0_127, %c1057] : memref<32x1090xbf16, #tpu.memory_space<vmem>>, vector<32x33xbf16>
    tpu.vector_store %arg13[%c0_127, %c1057], %172 {strides = array<i32>} : memref<32x1090xbf16, #tpu.memory_space<vmem>>, vector<32x33xbf16>,
    %174 = arith.truncf %167 : vector<32x1024xf32> to vector<32x1024xbf16>
    %c0_128 = arith.constant 0 : index
    %c33_129 = arith.constant 33 : index
    %175 = vector.load %arg13[%c0_128, %c33_129] : memref<32x1090xbf16, #tpu.memory_space<vmem>>, vector<32x1024xbf16>
    tpu.vector_store %arg13[%c0_128, %c33_129], %174 {strides = array<i32>} : memref<32x1090xbf16, #tpu.memory_space<vmem>>, vector<32x1024xbf16>,
    %176 = tpu.iota {dimensions = array<i32: 1>} : vector<1x1024xi32>
    %c32_i32 = arith.constant 32 : i32
    %c0_i32_130 = arith.constant 0 : i32
    %177 = arith.cmpi eq, %c32_i32, %c0_i32_130 : i32
    %c1_i32_131 = arith.constant 1 : i32
    %178 = arith.select %177, %c1_i32_131, %c32_i32 : i32
    %179 = vector.broadcast %178 : i32 to vector<1x1024xi32>
    %180 = arith.remsi %176, %179 : vector<1x1024xi32>
    %c0_i32_132 = arith.constant 0 : i32
    %181 = vector.broadcast %c0_i32_132 : i32 to vector<1x1024xi32>
    %182 = arith.cmpi ne, %180, %181 : vector<1x1024xi32>
    %c0_i32_133 = arith.constant 0 : i32
    %183 = vector.broadcast %c0_i32_133 : i32 to vector<1x1024xi32>
    %184 = arith.cmpi slt, %180, %183 : vector<1x1024xi32>
    %c0_i32_134 = arith.constant 0 : i32
    %185 = arith.cmpi slt, %178, %c0_i32_134 : i32
    %186 = vector.broadcast %185 : i1 to vector<1x1024xi1>
    %187 = vector.broadcast %186 : vector<1x1024xi1> to vector<1x1024xi1>
    %188 = arith.xori %184, %187 : vector<1x1024xi1>
    %189 = arith.andi %188, %182 : vector<1x1024xi1>
    %190 = vector.broadcast %178 : i32 to vector<1x1024xi32>
    %191 = arith.addi %180, %190 : vector<1x1024xi32>
    %192 = arith.select %189, %191, %180 : vector<1x1024xi1>, vector<1x1024xi32>
    %c0_i32_135 = arith.constant 0 : i32
    %193 = vector.broadcast %c0_i32_135 : i32 to vector<1x1024xi32>
    %194 = arith.cmpi ne, %192, %193 : vector<1x1024xi32>
    %c31_i32 = arith.constant 31 : i32
    %195 = vector.broadcast %c31_i32 : i32 to vector<1x1024xi32>
    %196 = arith.cmpi ne, %192, %195 : vector<1x1024xi32>
    %c0_136 = arith.constant 0 : index
    %c0_137 = arith.constant 0 : index
    %197 = vector.load %arg13[%c0_136, %c0_137] : memref<32x1090xbf16, #tpu.memory_space<vmem>>, vector<32x1024xbf16>
    %cst_138 = arith.constant 0.000000e+00 : bf16
    %198 = vector.broadcast %cst_138 : bf16 to vector<32x1024xbf16>
    %199 = vector.shape_cast %194 : vector<1x1024xi1> to vector<1x1024xi1>
    %200 = vector.broadcast %199 : vector<1x1024xi1> to vector<32x1024xi1>
    %201 = arith.select %200, %197, %198 : vector<32x1024xi1>, vector<32x1024xbf16>
    %c0_139 = arith.constant 0 : index
    %c0_140 = arith.constant 0 : index
    %202 = vector.load %arg14[%c0_139, %c0_140] : memref<288x1024xbf16, #tpu.memory_space<vmem>>, vector<32x1024xbf16>
    tpu.vector_store %arg14[%c0_139, %c0_140], %201 {strides = array<i32>} : memref<288x1024xbf16, #tpu.memory_space<vmem>>, vector<32x1024xbf16>,
    %c0_141 = arith.constant 0 : index
    %c1_142 = arith.constant 1 : index
    %203 = vector.load %arg13[%c0_141, %c1_142] : memref<32x1090xbf16, #tpu.memory_space<vmem>>, vector<32x1024xbf16>
    %c32_143 = arith.constant 32 : index
    %c0_144 = arith.constant 0 : index
    %204 = vector.load %arg14[%c32_143, %c0_144] : memref<288x1024xbf16, #tpu.memory_space<vmem>>, vector<32x1024xbf16>
    tpu.vector_store %arg14[%c32_143, %c0_144], %203 {strides = array<i32>} : memref<288x1024xbf16, #tpu.memory_space<vmem>>, vector<32x1024xbf16>,
    %c0_145 = arith.constant 0 : index
    %c2_146 = arith.constant 2 : index
    %205 = vector.load %arg13[%c0_145, %c2_146] : memref<32x1090xbf16, #tpu.memory_space<vmem>>, vector<32x1024xbf16>
    %cst_147 = arith.constant 0.000000e+00 : bf16
    %206 = vector.broadcast %cst_147 : bf16 to vector<32x1024xbf16>
    %207 = vector.shape_cast %196 : vector<1x1024xi1> to vector<1x1024xi1>
    %208 = vector.broadcast %207 : vector<1x1024xi1> to vector<32x1024xi1>
    %209 = arith.select %208, %205, %206 : vector<32x1024xi1>, vector<32x1024xbf16>
    %c64_148 = arith.constant 64 : index
    %c0_149 = arith.constant 0 : index
    %210 = vector.load %arg14[%c64_148, %c0_149] : memref<288x1024xbf16, #tpu.memory_space<vmem>>, vector<32x1024xbf16>
    tpu.vector_store %arg14[%c64_148, %c0_149], %209 {strides = array<i32>} : memref<288x1024xbf16, #tpu.memory_space<vmem>>, vector<32x1024xbf16>,
    %c0_150 = arith.constant 0 : index
    %c32_151 = arith.constant 32 : index
    %211 = vector.load %arg13[%c0_150, %c32_151] : memref<32x1090xbf16, #tpu.memory_space<vmem>>, vector<32x1024xbf16>
    %cst_152 = arith.constant 0.000000e+00 : bf16
    %212 = vector.broadcast %cst_152 : bf16 to vector<32x1024xbf16>
    %213 = vector.shape_cast %194 : vector<1x1024xi1> to vector<1x1024xi1>
    %214 = vector.broadcast %213 : vector<1x1024xi1> to vector<32x1024xi1>
    %215 = arith.select %214, %211, %212 : vector<32x1024xi1>, vector<32x1024xbf16>
    %c96_153 = arith.constant 96 : index
    %c0_154 = arith.constant 0 : index
    %216 = vector.load %arg14[%c96_153, %c0_154] : memref<288x1024xbf16, #tpu.memory_space<vmem>>, vector<32x1024xbf16>
    tpu.vector_store %arg14[%c96_153, %c0_154], %215 {strides = array<i32>} : memref<288x1024xbf16, #tpu.memory_space<vmem>>, vector<32x1024xbf16>,
    %c0_155 = arith.constant 0 : index
    %c33_156 = arith.constant 33 : index
    %217 = vector.load %arg13[%c0_155, %c33_156] : memref<32x1090xbf16, #tpu.memory_space<vmem>>, vector<32x1024xbf16>
    %c128_157 = arith.constant 128 : index
    %c0_158 = arith.constant 0 : index
    %218 = vector.load %arg14[%c128_157, %c0_158] : memref<288x1024xbf16, #tpu.memory_space<vmem>>, vector<32x1024xbf16>
    tpu.vector_store %arg14[%c128_157, %c0_158], %217 {strides = array<i32>} : memref<288x1024xbf16, #tpu.memory_space<vmem>>, vector<32x1024xbf16>,
    %c0_159 = arith.constant 0 : index
    %c34_160 = arith.constant 34 : index
    %219 = vector.load %arg13[%c0_159, %c34_160] : memref<32x1090xbf16, #tpu.memory_space<vmem>>, vector<32x1024xbf16>
    %cst_161 = arith.constant 0.000000e+00 : bf16
    %220 = vector.broadcast %cst_161 : bf16 to vector<32x1024xbf16>
    %221 = vector.shape_cast %196 : vector<1x1024xi1> to vector<1x1024xi1>
    %222 = vector.broadcast %221 : vector<1x1024xi1> to vector<32x1024xi1>
    %223 = arith.select %222, %219, %220 : vector<32x1024xi1>, vector<32x1024xbf16>
    %c160_162 = arith.constant 160 : index
    %c0_163 = arith.constant 0 : index
    %224 = vector.load %arg14[%c160_162, %c0_163] : memref<288x1024xbf16, #tpu.memory_space<vmem>>, vector<32x1024xbf16>
    tpu.vector_store %arg14[%c160_162, %c0_163], %223 {strides = array<i32>} : memref<288x1024xbf16, #tpu.memory_space<vmem>>, vector<32x1024xbf16>,
    %c0_164 = arith.constant 0 : index
    %c64_165 = arith.constant 64 : index
    %225 = vector.load %arg13[%c0_164, %c64_165] : memref<32x1090xbf16, #tpu.memory_space<vmem>>, vector<32x1024xbf16>
    %cst_166 = arith.constant 0.000000e+00 : bf16
    %226 = vector.broadcast %cst_166 : bf16 to vector<32x1024xbf16>
    %227 = vector.shape_cast %194 : vector<1x1024xi1> to vector<1x1024xi1>
    %228 = vector.broadcast %227 : vector<1x1024xi1> to vector<32x1024xi1>
    %229 = arith.select %228, %225, %226 : vector<32x1024xi1>, vector<32x1024xbf16>
    %c192_167 = arith.constant 192 : index
    %c0_168 = arith.constant 0 : index
    %230 = vector.load %arg14[%c192_167, %c0_168] : memref<288x1024xbf16, #tpu.memory_space<vmem>>, vector<32x1024xbf16>
    tpu.vector_store %arg14[%c192_167, %c0_168], %229 {strides = array<i32>} : memref<288x1024xbf16, #tpu.memory_space<vmem>>, vector<32x1024xbf16>,
    %c0_169 = arith.constant 0 : index
    %c65 = arith.constant 65 : index
    %231 = vector.load %arg13[%c0_169, %c65] : memref<32x1090xbf16, #tpu.memory_space<vmem>>, vector<32x1024xbf16>
    %c224_170 = arith.constant 224 : index
    %c0_171 = arith.constant 0 : index
    %232 = vector.load %arg14[%c224_170, %c0_171] : memref<288x1024xbf16, #tpu.memory_space<vmem>>, vector<32x1024xbf16>
    tpu.vector_store %arg14[%c224_170, %c0_171], %231 {strides = array<i32>} : memref<288x1024xbf16, #tpu.memory_space<vmem>>, vector<32x1024xbf16>,
    %c0_172 = arith.constant 0 : index
    %c66 = arith.constant 66 : index
    %233 = vector.load %arg13[%c0_172, %c66] : memref<32x1090xbf16, #tpu.memory_space<vmem>>, vector<32x1024xbf16>
    %cst_173 = arith.constant 0.000000e+00 : bf16
    %234 = vector.broadcast %cst_173 : bf16 to vector<32x1024xbf16>
    %235 = vector.shape_cast %196 : vector<1x1024xi1> to vector<1x1024xi1>
    %236 = vector.broadcast %235 : vector<1x1024xi1> to vector<32x1024xi1>
    %237 = arith.select %236, %233, %234 : vector<32x1024xi1>, vector<32x1024xbf16>
    %c256_174 = arith.constant 256 : index
    %c0_175 = arith.constant 0 : index
    %238 = vector.load %arg14[%c256_174, %c0_175] : memref<288x1024xbf16, #tpu.memory_space<vmem>>, vector<32x1024xbf16>
    tpu.vector_store %arg14[%c256_174, %c0_175], %237 {strides = array<i32>} : memref<288x1024xbf16, #tpu.memory_space<vmem>>, vector<32x1024xbf16>,
    %c0_176 = arith.constant 0 : index
    %c0_177 = arith.constant 0 : index
    %239 = vector.load %arg14[%c0_176, %c0_177] : memref<288x1024xbf16, #tpu.memory_space<vmem>>, vector<288x1024xbf16>
    %cst_178 = arith.constant dense<0.000000e+00> : vector<32x1024xf32>
    %240 = tpu.matmul %168, %239, %cst_178 {dimension_numbers = #tpu.dot_dimension_numbers<[1], [0], [0], [1], [0, 0, 1, 1], [], []>} : vector<32x288xbf16>, vector<288x1024xbf16>, vector<32x1024xf32> -> vector<32x1024xf32>
    %241 = vector.broadcast %169 : vector<32x1xf32> to vector<32x1024xf32>
    %242 = arith.addf %240, %241 : vector<32x1024xf32>
    %cst_179 = arith.constant 0.000000e+00 : f32
    %243 = vector.broadcast %cst_179 : f32 to vector<32x1024xf32>
    %244 = arith.maximumf %242, %243 : vector<32x1024xf32>
    %c0_180 = arith.constant 0 : index
    %c0_181 = arith.constant 0 : index
    %c0_182 = arith.constant 0 : index
    %245 = vector.load %arg12[%c0_180, %c0_181, %c0_182] : memref<1x32x1024xf32, #tpu.memory_space<vmem>>, vector<1x32x1024xf32>
    %246 = vector.shape_cast %245 : vector<1x32x1024xf32> to vector<32x1024xf32>
    %247 = vector.shape_cast %244 : vector<32x1024xf32> to vector<1x32x1024xf32>
    tpu.vector_store %arg12[%c0_180, %c0_181, %c0_182], %247 {strides = array<i32>} : memref<1x32x1024xf32, #tpu.memory_space<vmem>>, vector<1x32x1024xf32>,
    return
  }
  func.func @transform_0(%arg0: i32) -> (i32, i32, i32) {
    %c0_i32 = arith.constant 0 : i32
    %c0_i32_0 = arith.constant 0 : i32
    %c0_i32_1 = arith.constant 0 : i32
    return %arg0, %c0_i32, %c0_i32_0 : i32, i32, i32
  }
  func.func @transform_1(%arg0: i32) -> (i32, i32, i32) {
    %c0_i32 = arith.constant 0 : i32
    %c0_i32_0 = arith.constant 0 : i32
    %c0_i32_1 = arith.constant 0 : i32
    return %arg0, %c0_i32, %c0_i32_0 : i32, i32, i32
  }
  func.func @transform_2(%arg0: i32) -> (i32, i32, i32) {
    %c0_i32 = arith.constant 0 : i32
    %c0_i32_0 = arith.constant 0 : i32
    %c0_i32_1 = arith.constant 0 : i32
    return %arg0, %c0_i32, %c0_i32_0 : i32, i32, i32
  }
  func.func @transform_3(%arg0: i32) -> (i32, i32) {
    %c0_i32 = arith.constant 0 : i32
    %c0_i32_0 = arith.constant 0 : i32
    %c0_i32_1 = arith.constant 0 : i32
    return %c0_i32, %c0_i32_0 : i32, i32
  }
  func.func @transform_4(%arg0: i32) -> (i32, i32) {
    %c0_i32 = arith.constant 0 : i32
    %c0_i32_0 = arith.constant 0 : i32
    %c0_i32_1 = arith.constant 0 : i32
    return %c0_i32, %c0_i32_0 : i32, i32
  }
  func.func @transform_5(%arg0: i32) -> (i32, i32) {
    %c0_i32 = arith.constant 0 : i32
    %c0_i32_0 = arith.constant 0 : i32
    %c0_i32_1 = arith.constant 0 : i32
    return %c0_i32, %c0_i32_0 : i32, i32
  }
  func.func @transform_6(%arg0: i32) -> (i32, i32) {
    %c0_i32 = arith.constant 0 : i32
    %c0_i32_0 = arith.constant 0 : i32
    %c0_i32_1 = arith.constant 0 : i32
    return %c0_i32, %c0_i32_0 : i32, i32
  }
  func.func @transform_7(%arg0: i32) -> (i32, i32) {
    %c0_i32 = arith.constant 0 : i32
    %c0_i32_0 = arith.constant 0 : i32
    %c0_i32_1 = arith.constant 0 : i32
    return %c0_i32, %c0_i32_0 : i32, i32
  }
  func.func @transform_8(%arg0: i32) -> (i32, i32) {
    %c0_i32 = arith.constant 0 : i32
    %c0_i32_0 = arith.constant 0 : i32
    %c0_i32_1 = arith.constant 0 : i32
    return %c0_i32, %c0_i32_0 : i32, i32
  }
  func.func @transform_9(%arg0: i32) -> (i32, i32) {
    %c0_i32 = arith.constant 0 : i32
    %c0_i32_0 = arith.constant 0 : i32
    %c0_i32_1 = arith.constant 0 : i32
    return %c0_i32, %c0_i32_0 : i32, i32
  }
  func.func @transform_10(%arg0: i32) -> (i32, i32) {
    %c0_i32 = arith.constant 0 : i32
    %c0_i32_0 = arith.constant 0 : i32
    %c0_i32_1 = arith.constant 0 : i32
    return %c0_i32, %c0_i32_0 : i32, i32
  }
  func.func @transform_11(%arg0: i32) -> (i32, i32, i32) {
    %c0_i32 = arith.constant 0 : i32
    %c0_i32_0 = arith.constant 0 : i32
    %c0_i32_1 = arith.constant 0 : i32
    return %arg0, %c0_i32, %c0_i32_0 : i32, i32, i32
  }
}

</mosaic_0001>

<llo_original>
// kernel: _fused_forward.1
$region0: #{_fused_forward.1}
  #allocation0 [shape = 'u32[]', space=smem, size = 0x4, offset = 0x4, fixed_abs, tag = 'smem constant byte address 0x4 - core index']
  #allocation1 [shape = 'u32[144,128]{1,0:T(1,128)}', space=vmem, size = 0x12000, scoped, tag = 'internal scratch']
  #allocation2 [shape = 'bf16[32,1090]{1,0:T(16,128)(2,1)}', space=vmem, size = 0x12000, scoped, tag = 'scratch operand']
  #allocation3 [shape = 'bf16[288,1024]{1,0:T(16,128)(2,1)}', space=vmem, size = 0x90000, scoped, tag = 'scratch operand']
  %s0 = inlined_call_operand.vmem [shape: f32[2,32,64], index: 0, kind: input, shape index: {}]
  %s1 = inlined_call_operand.vmem [shape: f32[2,32,256], index: 1, kind: input, shape index: {}]
  %s2 = inlined_call_operand.vmem [shape: f32[2,32,1024], index: 2, kind: input, shape index: {}]
  %s3 = inlined_call_operand.vmem [shape: bf16[32,288], index: 3, kind: input, shape index: {}]
  %s4 = inlined_call_operand.vmem [shape: bf16[32,288], index: 4, kind: input, shape index: {}]
  %s5 = inlined_call_operand.vmem [shape: bf16[32,288], index: 5, kind: input, shape index: {}]
  %s6 = inlined_call_operand.vmem [shape: f32[32,1], index: 6, kind: input, shape index: {}]
  %s7 = inlined_call_operand.vmem [shape: f32[32,1], index: 7, kind: input, shape index: {}]
  %s8 = inlined_call_operand.vmem [shape: f32[32,1], index: 8, kind: input, shape index: {}]
  %s9 = inlined_call_operand.vmem [shape: bf16[64,256], index: 9, kind: input, shape index: {}]
  %s10 = inlined_call_operand.vmem [shape: bf16[256,1024], index: 10, kind: input, shape index: {}]
  %s11 = inlined_call_operand.vmem [shape: f32[2,32,1024], index: 11, kind: output, shape index: {}]
  %s12 = sld [smem:[#allocation0]]
  $region77: #{_fused_forward.1} parent=0
    _
  %s14 = ssub.s32 1, %s12
  %s15 = scalar_select 0, %s14, %s12
  loop: start=0, step=1, limit=4
  $region2: #{_fused_forward.1} parent=0 // loop_pre_header
    _
  $region3: #{_fused_forward.1} parent=0 // loop_header
    %s17 = sphi 0, %s21
    %p18 = scmp.ge.s32.totalorder %s17, 4
    %s27 = sphi 0, %s29
    %s30 = sphi 0, %s27
    %s31 = sphi 0, %s30
    %s47 = sphi 0, %s31
    %s53 = sphi 0, %s55
    %s56 = sphi 0, %s53
    %s57 = sphi 0, %s56
    %s73 = sphi 0, %s57
    %s79 = sphi 0, %s81
    %s82 = sphi 0, %s79
    %s83 = sphi 0, %s82
    %s99 = sphi 0, %s83
    %s103 = sphi 0, %s103
    %s105 = sphi 0, %s103
    %s106 = sphi 0, %s105
    %s120 = sphi 0, %s106
    %s124 = sphi 0, %s124
    %s126 = sphi 0, %s124
    %s127 = sphi 0, %s126
    %s141 = sphi 0, %s127
    %s145 = sphi 0, %s145
    %s147 = sphi 0, %s145
    %s148 = sphi 0, %s147
    %s162 = sphi 0, %s148
    %s166 = sphi 0, %s166
    %s168 = sphi 0, %s166
    %s169 = sphi 0, %s168
    %s183 = sphi 0, %s169
    %s187 = sphi 0, %s187
    %s189 = sphi 0, %s187
    %s190 = sphi 0, %s189
    %s204 = sphi 0, %s190
    %s208 = sphi 0, %s208
    %s210 = sphi 0, %s208
    %s211 = sphi 0, %s210
    %s225 = sphi 0, %s211
    %s229 = sphi 0, %s229
    %s231 = sphi 0, %s229
    %s232 = sphi 0, %s231
    %s246 = sphi 0, %s232
    %s250 = sphi 0, %s250
    %s252 = sphi 0, %s250
    %s253 = sphi 0, %s252
    %s267 = sphi 0, %s253
    %s273 = sphi 0, %s275
    %s276 = sphi 0, %s273
    %s277 = sphi 0, %s276
    %s293 = sphi 0, %s277
  $region4: #{_fused_forward.1} parent=0 // loop_header_branch
    %20 = sbr.rel (%p18) target = $region8
  $region5: #{_fused_forward.1} parent=0 // loop_body
    %s22 = ssub.s32 %s17, 1
    %s23 = ssub.s32 %s17, 2
    %s24 = sadd.s32 %s17, 1
    %s25 = ssub.s32 %s17, %s24
    %p26 = scmp.eq.s32.totalorder %s25, 0
    %s28 = sadd.s32 %s27, 1
    %s29 = scalar_select %p26, %s27, %s28
    %p32 = pneg %p26
    %p33 = scmp.eq.s32.totalorder %s17, 1
    %p34 = por %p32, %p33
    %p35 = scmp.ne.s32.totalorder %s27, %s30
    %p36 = scmp.eq.s32.totalorder %s17, 0
    %p37 = por %p35, %p36
    %p38 = scmp.ne.s32.totalorder %s27, %s30
    %p39 = scmp.eq.s32.totalorder %s22, 1
    %p40 = por %p38, %p39
    %p41 = scmp.ne.s32.totalorder %s30, %s31
    %p42 = scmp.eq.s32.totalorder %s22, 0
    %p43 = por %p41, %p42
    %p44 = scmp.ne.s32.totalorder %s30, %s31
    %p45 = scmp.eq.s32.totalorder %s23, 1
    %p46 = por %p44, %p45
    %p48 = scmp.ne.s32.totalorder %s31, %s47
    %p49 = scmp.eq.s32.totalorder %s23, 0
    %p50 = por %p48, %p49
    %s51 = ssub.s32 %s17, %s24
    %p52 = scmp.eq.s32.totalorder %s51, 0
    %s54 = sadd.s32 %s53, 1
    %s55 = scalar_select %p52, %s53, %s54
    %p58 = pneg %p52
    %p59 = scmp.eq.s32.totalorder %s17, 1
    %p60 = por %p58, %p59
    %p61 = scmp.ne.s32.totalorder %s53, %s56
    %p62 = scmp.eq.s32.totalorder %s17, 0
    %p63 = por %p61, %p62
    %p64 = scmp.ne.s32.totalorder %s53, %s56
    %p65 = scmp.eq.s32.totalorder %s22, 1
    %p66 = por %p64, %p65
    %p67 = scmp.ne.s32.totalorder %s56, %s57
    %p68 = scmp.eq.s32.totalorder %s22, 0
    %p69 = por %p67, %p68
    %p70 = scmp.ne.s32.totalorder %s56, %s57
    %p71 = scmp.eq.s32.totalorder %s23, 1
    %p72 = por %p70, %p71
    %p74 = scmp.ne.s32.totalorder %s57, %s73
    %p75 = scmp.eq.s32.totalorder %s23, 0
    %p76 = por %p74, %p75
    %s77 = ssub.s32 %s17, %s24
    %p78 = scmp.eq.s32.totalorder %s77, 0
    %s80 = sadd.s32 %s79, 1
    %s81 = scalar_select %p78, %s79, %s80
    %p84 = pneg %p78
    %p85 = scmp.eq.s32.totalorder %s17, 1
    %p86 = por %p84, %p85
    %p87 = scmp.ne.s32.totalorder %s79, %s82
    %p88 = scmp.eq.s32.totalorder %s17, 0
    %p89 = por %p87, %p88
    %p90 = scmp.ne.s32.totalorder %s79, %s82
    %p91 = scmp.eq.s32.totalorder %s22, 1
    %p92 = por %p90, %p91
    %p93 = scmp.ne.s32.totalorder %s82, %s83
    %p94 = scmp.eq.s32.totalorder %s22, 0
    %p95 = por %p93, %p94
    %p96 = scmp.ne.s32.totalorder %s82, %s83
    %p97 = scmp.eq.s32.totalorder %s23, 1
    %p98 = por %p96, %p97
    %p100 = scmp.ne.s32.totalorder %s83, %s99
    %p101 = scmp.eq.s32.totalorder %s23, 0
    %p102 = por %p100, %p101
    %s104 = sadd.s32 %s103, 1
    %p107 = scmp.eq.s32.totalorder %s17, 1
    %p108 = scmp.ne.s32.totalorder %s103, %s105
    %p109 = scmp.eq.s32.totalorder %s17, 0
    %p110 = por %p108, %p109
    %p111 = scmp.ne.s32.totalorder %s103, %s105
    %p112 = scmp.eq.s32.totalorder %s22, 1
    %p113 = por %p111, %p112
    %p114 = scmp.ne.s32.totalorder %s105, %s106
    %p115 = scmp.eq.s32.totalorder %s22, 0
    %p116 = por %p114, %p115
    %p117 = scmp.ne.s32.totalorder %s105, %s106
    %p118 = scmp.eq.s32.totalorder %s23, 1
    %p119 = por %p117, %p118
    %p121 = scmp.ne.s32.totalorder %s106, %s120
    %p122 = scmp.eq.s32.totalorder %s23, 0
    %p123 = por %p121, %p122
    %s125 = sadd.s32 %s124, 1
    %p128 = scmp.eq.s32.totalorder %s17, 1
    %p129 = scmp.ne.s32.totalorder %s124, %s126
    %p130 = scmp.eq.s32.totalorder %s17, 0
    %p131 = por %p129, %p130
    %p132 = scmp.ne.s32.totalorder %s124, %s126
    %p133 = scmp.eq.s32.totalorder %s22, 1
    %p134 = por %p132, %p133
    %p135 = scmp.ne.s32.totalorder %s126, %s127
    %p136 = scmp.eq.s32.totalorder %s22, 0
    %p137 = por %p135, %p136
    %p138 = scmp.ne.s32.totalorder %s126, %s127
    %p139 = scmp.eq.s32.totalorder %s23, 1
    %p140 = por %p138, %p139
    %p142 = scmp.ne.s32.totalorder %s127, %s141
    %p143 = scmp.eq.s32.totalorder %s23, 0
    %p144 = por %p142, %p143
    %s146 = sadd.s32 %s145, 1
    %p149 = scmp.eq.s32.totalorder %s17, 1
    %p150 = scmp.ne.s32.totalorder %s145, %s147
    %p151 = scmp.eq.s32.totalorder %s17, 0
    %p152 = por %p150, %p151
    %p153 = scmp.ne.s32.totalorder %s145, %s147
    %p154 = scmp.eq.s32.totalorder %s22, 1
    %p155 = por %p153, %p154
    %p156 = scmp.ne.s32.totalorder %s147, %s148
    %p157 = scmp.eq.s32.totalorder %s22, 0
    %p158 = por %p156, %p157
    %p159 = scmp.ne.s32.totalorder %s147, %s148
    %p160 = scmp.eq.s32.totalorder %s23, 1
    %p161 = por %p159, %p160
    %p163 = scmp.ne.s32.totalorder %s148, %s162
    %p164 = scmp.eq.s32.totalorder %s23, 0
    %p165 = por %p163, %p164
    %s167 = sadd.s32 %s166, 1
    %p170 = scmp.eq.s32.totalorder %s17, 1
    %p171 = scmp.ne.s32.totalorder %s166, %s168
    %p172 = scmp.eq.s32.totalorder %s17, 0
    %p173 = por %p171, %p172
    %p174 = scmp.ne.s32.totalorder %s166, %s168
    %p175 = scmp.eq.s32.totalorder %s22, 1
    %p176 = por %p174, %p175
    %p177 = scmp.ne.s32.totalorder %s168, %s169
    %p178 = scmp.eq.s32.totalorder %s22, 0
    %p179 = por %p177, %p178
    %p180 = scmp.ne.s32.totalorder %s168, %s169
    %p181 = scmp.eq.s32.totalorder %s23, 1
    %p182 = por %p180, %p181
    %p184 = scmp.ne.s32.totalorder %s169, %s183
    %p185 = scmp.eq.s32.totalorder %s23, 0
    %p186 = por %p184, %p185
    %s188 = sadd.s32 %s187, 1
    %p191 = scmp.eq.s32.totalorder %s17, 1
    %p192 = scmp.ne.s32.totalorder %s187, %s189
    %p193 = scmp.eq.s32.totalorder %s17, 0
    %p194 = por %p192, %p193
    %p195 = scmp.ne.s32.totalorder %s187, %s189
    %p196 = scmp.eq.s32.totalorder %s22, 1
    %p197 = por %p195, %p196
    %p198 = scmp.ne.s32.totalorder %s189, %s190
    %p199 = scmp.eq.s32.totalorder %s22, 0
    %p200 = por %p198, %p199
    %p201 = scmp.ne.s32.totalorder %s189, %s190
    %p202 = scmp.eq.s32.totalorder %s23, 1
    %p203 = por %p201, %p202
    %p205 = scmp.ne.s32.totalorder %s190, %s204
    %p206 = scmp.eq.s32.totalorder %s23, 0
    %p207 = por %p205, %p206
    %s209 = sadd.s32 %s208, 1
    %p212 = scmp.eq.s32.totalorder %s17, 1
    %p213 = scmp.ne.s32.totalorder %s208, %s210
    %p214 = scmp.eq.s32.totalorder %s17, 0
    %p215 = por %p213, %p214
    %p216 = scmp.ne.s32.totalorder %s208, %s210
    %p217 = scmp.eq.s32.totalorder %s22, 1
    %p218 = por %p216, %p217
    %p219 = scmp.ne.s32.totalorder %s210, %s211
    %p220 = scmp.eq.s32.totalorder %s22, 0
    %p221 = por %p219, %p220
    %p222 = scmp.ne.s32.totalorder %s210, %s211
    %p223 = scmp.eq.s32.totalorder %s23, 1
    %p224 = por %p222, %p223
    %p226 = scmp.ne.s32.totalorder %s211, %s225
    %p227 = scmp.eq.s32.totalorder %s23, 0
    %p228 = por %p226, %p227
    %s230 = sadd.s32 %s229, 1
    %p233 = scmp.eq.s32.totalorder %s17, 1
    %p234 = scmp.ne.s32.totalorder %s229, %s231
    %p235 = scmp.eq.s32.totalorder %s17, 0
    %p236 = por %p234, %p235
    %p237 = scmp.ne.s32.totalorder %s229, %s231
    %p238 = scmp.eq.s32.totalorder %s22, 1
    %p239 = por %p237, %p238
    %p240 = scmp.ne.s32.totalorder %s231, %s232
    %p241 = scmp.eq.s32.totalorder %s22, 0
    %p242 = por %p240, %p241
    %p243 = scmp.ne.s32.totalorder %s231, %s232
    %p244 = scmp.eq.s32.totalorder %s23, 1
    %p245 = por %p243, %p244
    %p247 = scmp.ne.s32.totalorder %s232, %s246
    %p248 = scmp.eq.s32.totalorder %s23, 0
    %p249 = por %p247, %p248
    %s251 = sadd.s32 %s250, 1
    %p254 = scmp.eq.s32.totalorder %s17, 1
    %p255 = scmp.ne.s32.totalorder %s250, %s252
    %p256 = scmp.eq.s32.totalorder %s17, 0
    %p257 = por %p255, %p256
    %p258 = scmp.ne.s32.totalorder %s250, %s252
    %p259 = scmp.eq.s32.totalorder %s22, 1
    %p260 = por %p258, %p259
    %p261 = scmp.ne.s32.totalorder %s252, %s253
    %p262 = scmp.eq.s32.totalorder %s22, 0
    %p263 = por %p261, %p262
    %p264 = scmp.ne.s32.totalorder %s252, %s253
    %p265 = scmp.eq.s32.totalorder %s23, 1
    %p266 = por %p264, %p265
    %p268 = scmp.ne.s32.totalorder %s253, %s267
    %p269 = scmp.eq.s32.totalorder %s23, 0
    %p270 = por %p268, %p269
    %s271 = ssub.s32 %s17, %s24
    %p272 = scmp.eq.s32.totalorder %s271, 0
    %s274 = sadd.s32 %s273, 1
    %s275 = scalar_select %p272, %s273, %s274
    %p278 = pneg %p272
    %p279 = scmp.eq.s32.totalorder %s17, 1
    %p280 = por %p278, %p279
    %p281 = scmp.ne.s32.totalorder %s273, %s276
    %p282 = scmp.eq.s32.totalorder %s17, 0
    %p283 = por %p281, %p282
    %p284 = scmp.ne.s32.totalorder %s273, %s276
    %p285 = scmp.eq.s32.totalorder %s22, 1
    %p286 = por %p284, %p285
    %p287 = scmp.ne.s32.totalorder %s276, %s277
    %p288 = scmp.eq.s32.totalorder %s22, 0
    %p289 = por %p287, %p288
    %p290 = scmp.ne.s32.totalorder %s276, %s277
    %p291 = scmp.eq.s32.totalorder %s23, 1
    %p292 = por %p290, %p291
    %p294 = scmp.ne.s32.totalorder %s277, %s293
    %p295 = scmp.eq.s32.totalorder %s23, 0
    %p296 = por %p294, %p295
    %p297 = scmp.le.s32.totalorder 1, %s17
    %p298 = scmp.lt.s32.totalorder %s17, 3
    %p299 = pnand %p297, %p298
    %p300 = pneg %p299
    // Predicated region
    $region9: #{_fused_forward.1} parent=5 // pred_check
      _
    $region10: #{_fused_forward.1} parent=5 // pred_check_branch
      %302 = sbr.rel (%p299) target = $region12
    $region11: #{_fused_forward.1} parent=5 // pred_region
      %s303 = ssub.s32 %s17, 1
      // Predicated region
      $region13: #{_fused_forward.1} parent=11 // pred_check
        %p304 = pneg %p116
      $region14: #{_fused_forward.1} parent=11 // pred_check_branch
        %306 = sbr.rel (%p304) target = $region16
      $region15: #{_fused_forward.1} parent=11 // pred_region
        _
      $region16: #{_fused_forward.1} parent=11 // pred_fallthru
        _
      // Predicated region
      $region17: #{_fused_forward.1} parent=11 // pred_check
        %p307 = pneg %p137
      $region18: #{_fused_forward.1} parent=11 // pred_check_branch
        %309 = sbr.rel (%p307) target = $region20
      $region19: #{_fused_forward.1} parent=11 // pred_region
        _
      $region20: #{_fused_forward.1} parent=11 // pred_fallthru
        _
      // Predicated region
      $region21: #{_fused_forward.1} parent=11 // pred_check
        %p310 = pneg %p158
      $region22: #{_fused_forward.1} parent=11 // pred_check_branch
        %312 = sbr.rel (%p310) target = $region24
      $region23: #{_fused_forward.1} parent=11 // pred_region
        _
      $region24: #{_fused_forward.1} parent=11 // pred_fallthru
        _
      // Predicated region
      $region25: #{_fused_forward.1} parent=11 // pred_check
        %p313 = pneg %p179
      $region26: #{_fused_forward.1} parent=11 // pred_check_branch
        %315 = sbr.rel (%p313) target = $region28
      $region27: #{_fused_forward.1} parent=11 // pred_region
        _
      $region28: #{_fused_forward.1} parent=11 // pred_fallthru
        _
      // Predicated region
      $region29: #{_fused_forward.1} parent=11 // pred_check
        %p316 = pneg %p200
      $region30: #{_fused_forward.1} parent=11 // pred_check_branch
        %318 = sbr.rel (%p316) target = $region32
      $region31: #{_fused_forward.1} parent=11 // pred_region
        _
      $region32: #{_fused_forward.1} parent=11 // pred_fallthru
        _
      // Predicated region
      $region33: #{_fused_forward.1} parent=11 // pred_check
        %p319 = pneg %p221
      $region34: #{_fused_forward.1} parent=11 // pred_check_branch
        %321 = sbr.rel (%p319) target = $region36
      $region35: #{_fused_forward.1} parent=11 // pred_region
        _
      $region36: #{_fused_forward.1} parent=11 // pred_fallthru
        _
      // Predicated region
      $region37: #{_fused_forward.1} parent=11 // pred_check
        %p322 = pneg %p242
      $region38: #{_fused_forward.1} parent=11 // pred_check_branch
        %324 = sbr.rel (%p322) target = $region40
      $region39: #{_fused_forward.1} parent=11 // pred_region
        _
      $region40: #{_fused_forward.1} parent=11 // pred_fallthru
        _
      // Predicated region
      $region41: #{_fused_forward.1} parent=11 // pred_check
        %p325 = pneg %p263
      $region42: #{_fused_forward.1} parent=11 // pred_check_branch
        %327 = sbr.rel (%p325) target = $region44
      $region43: #{_fused_forward.1} parent=11 // pred_region
        _
      $region44: #{_fused_forward.1} parent=11 // pred_fallthru
        _
    $region12: #{_fused_forward.1} parent=5 // pred_fallthru
      _
    %p328 = scmp.lt.s32.totalorder %s17, 2
    // Predicated region
    $region45: #{_fused_forward.1} parent=5 // pred_check
      %p329 = pneg %p328
    $region46: #{_fused_forward.1} parent=5 // pred_check_branch
      %331 = sbr.rel (%p329) target = $region48
    $region47: #{_fused_forward.1} parent=5 // pred_region
      // Predicated region
      $region49: #{_fused_forward.1} parent=47 // pred_check
        %p332 = pneg %p37
      $region50: #{_fused_forward.1} parent=47 // pred_check_branch
        %334 = sbr.rel (%p332) target = $region52
      $region51: #{_fused_forward.1} parent=47 // pred_region
        %p335 = scmp.lt.s32.totalorder %s17, 1
        %s336 = scalar_select %p335, %s17, 1
        %s337 = smul.addr %s336, 4
        %s338 = smul.addr %s337, 8
        %s339 = scalar_lea.vmem %s0, %s338
      $region52: #{_fused_forward.1} parent=47 // pred_fallthru
        _
      // Predicated region
      $region53: #{_fused_forward.1} parent=47 // pred_check
        %p340 = pneg %p63
      $region54: #{_fused_forward.1} parent=47 // pred_check_branch
        %342 = sbr.rel (%p340) target = $region56
      $region55: #{_fused_forward.1} parent=47 // pred_region
        %p343 = scmp.lt.s32.totalorder %s17, 1
        %s344 = scalar_select %p343, %s17, 1
        %s345 = smul.addr %s344, 8
        %s346 = smul.addr %s345, 8
        %s347 = scalar_lea.vmem %s1, %s346
      $region56: #{_fused_forward.1} parent=47 // pred_fallthru
        _
      // Predicated region
      $region57: #{_fused_forward.1} parent=47 // pred_check
        %p348 = pneg %p89
      $region58: #{_fused_forward.1} parent=47 // pred_check_branch
        %350 = sbr.rel (%p348) target = $region60
      $region59: #{_fused_forward.1} parent=47 // pred_region
        %p351 = scmp.lt.s32.totalorder %s17, 1
        %s352 = scalar_select %p351, %s17, 1
        %s353 = smul.addr %s352, 32
        %s354 = smul.addr %s353, 8
        %s355 = scalar_lea.vmem %s2, %s354
      $region60: #{_fused_forward.1} parent=47 // pred_fallthru
        _
    $region48: #{_fused_forward.1} parent=5 // pred_fallthru
      _
    %p356 = scmp.le.s32.totalorder 1, %s17
    %p357 = scmp.lt.s32.totalorder %s17, 3
    %p358 = pnand %p356, %p357
    %p359 = pneg %p358
    // Predicated region
    $region61: #{_fused_forward.1} parent=5 // pred_check
      _
    $region62: #{_fused_forward.1} parent=5 // pred_check_branch
      %361 = sbr.rel (%p358) target = $region64
    $region63: #{_fused_forward.1} parent=5 // pred_region
      %s362 = ssub.s32 %s17, 1
      %p363 = scmp.lt.s32.totalorder %s22, 1
      %s364 = scalar_select %p363, %s22, 1
      %s365 = smul.addr %s364, 4
      %s366 = smul.addr %s365, 8
      %s367 = scalar_lea.vmem %s0, %s366
      %p368 = pneg %p43
      %p369 = pneg %p40
      %p370 = scmp.lt.s32.totalorder %s22, 1
      %s371 = scalar_select %p370, %s22, 1
      %s372 = smul.addr %s371, 8
      %s373 = smul.addr %s372, 8
      %s374 = scalar_lea.vmem %s1, %s373
      %p375 = pneg %p69
      %p376 = pneg %p66
      %p377 = scmp.lt.s32.totalorder %s22, 1
      %s378 = scalar_select %p377, %s22, 1
      %s379 = smul.addr %s378, 32
      %s380 = smul.addr %s379, 8
      %s381 = scalar_lea.vmem %s2, %s380
      %p382 = pneg %p95
      %p383 = pneg %p92
      %p384 = pneg %p116
      %p385 = pneg %p113
      %p386 = pneg %p137
      %p387 = pneg %p134
      %p388 = pneg %p158
      %p389 = pneg %p155
      %p390 = pneg %p179
      %p391 = pneg %p176
      %p392 = pneg %p200
      %p393 = pneg %p197
      %p394 = pneg %p221
      %p395 = pneg %p218
      %p396 = pneg %p242
      %p397 = pneg %p239
      %p398 = pneg %p263
      %p399 = pneg %p260
      %p400 = pneg %p289
      %p401 = pneg %p286
      %p402 = scmp.lt.s32.totalorder %s22, 1
      %s403 = scalar_select %p402, %s22, 1
      %s404 = smul.addr %s403, 32
      %s405 = smul.addr %s404, 8
      %s406 = scalar_lea.vmem %s11, %s405
      %p407 = scmp.lt.s32.totalorder %s22, 1
      %s408 = scalar_select %p407, %s22, 1
      %s409 = smul.addr %s408, 4
      %s410 = smul.addr %s409, 8
      %s411 = scalar_lea.vmem %s0, %s410
      %p412 = scmp.lt.s32.totalorder %s22, 1
      %s413 = scalar_select %p412, %s22, 1
      %s414 = smul.addr %s413, 8
      %s415 = smul.addr %s414, 8
      %s416 = scalar_lea.vmem %s1, %s415
      %p417 = scmp.lt.s32.totalorder %s22, 1
      %s418 = scalar_select %p417, %s22, 1
      %s419 = smul.addr %s418, 32
      %s420 = smul.addr %s419, 8
      %s421 = scalar_lea.vmem %s2, %s420
      %p422 = scmp.lt.s32.totalorder %s22, 1
      %s423 = scalar_select %p422, %s22, 1
      %s424 = smul.addr %s423, 32
      %s425 = smul.addr %s424, 8
      %s426 = scalar_lea.vmem %s11, %s425
      %v430 = vld [vmem:[%s411] sm:$0xff]
      %v431 = vld [vmem:[%s411 + $0x8] sm:$0xff]
      %v432 = vld [vmem:[%s411 + $0x10] sm:$0xff]
      %v433 = vld [vmem:[%s411 + $0x18] sm:$0xff]
      %v434 = vld [vmem:[%s3] sm:$0xff]
      %v435 = vld [vmem:[%s3 + $0x8] sm:$0xf]
      %v436 = vld [vmem:[%s3 + $0xc] sm:$0xff]
      %v437 = vld [vmem:[%s3 + $0x14] sm:$0xf]
      %v438 = vld [vmem:[%s3 + $0x18] sm:$0xff]
      %v439 = vld [vmem:[%s3 + $0x20] sm:$0xf]
      %v440 = vld [vmem:[%s3 + $0x24] sm:$0xff]
      %v441 = vld [vmem:[%s3 + $0x2c] sm:$0xf]
      %v442 = vld [vmem:[%s6] sm:$0xff]
      %v443 = vld [vmem:[%s6 + $0x8] sm:$0xff]
      %v444 = vld [vmem:[%s6 + $0x10] sm:$0xff]
      %v445 = vld [vmem:[%s6 + $0x18] sm:$0xff]
      %vm446 = vcmask 72704
      %447 = vst.msk [vmem:[#allocation2] sm:$0xff] %vm446, 0
      %448 = vst.msk [vmem:[#allocation2 + $0x48] sm:$0xff] %vm446, 0
      %vm449 = vcmask 671304
      %450 = vst.msk [vmem:[#allocation2] sm:$0xff] %vm449, 0
      %451 = vst.msk [vmem:[#allocation2 + $0x48] sm:$0xff] %vm449, 0
      %v452 = vpack.c.bf16 %v431, %v430
      %v453 = vpack.c.bf16 %v433, %v432
      %456 = vrot.lane.b32.xlu0 %v452, 9
      %v457 = vpop.permute.xlu0 %456
      %458 = vrot.lane.b32.xlu0 %v453, 9
      %v459 = vpop.permute.xlu0 %458
      %vm462 = vcmask 597064
      %463 = vst.msk [vmem:[#allocation2] sm:$0xff] %vm462, %v457
      %464 = vst.msk [vmem:[#allocation2 + $0x48] sm:$0xff] %vm462, %v459
      %v465 = vlaneseq
      %v466 = vand.u32 %v465, 127
      %vm467 = vcmp.lt.s32.totalorder %v466, 0
      %v468 = vsub.s32 0, %v466
      %v469 = vsel %vm467, %v468, %v466
      %v470 = vshrl.u32 %v469, 3
      %v471 = vand.u32 %v469, 7
      %v472 = vsub.s32 0, %v471
      %v473 = vsel %vm467, %v472, %v471
      %vm474 = vcmp.ne.s32.totalorder %v473, 0
      %vm475 = vcmp.lt.s32.totalorder %v473, 0
      %vm476 = vmand %vm475, %vm474
      %v477 = vadd.s32 %v473, 8
      %v478 = vsel %vm476, %v477, %v473
      %vm479 = vcmp.ne.s32.totalorder %v478, 0
      %vm480 = vcmp.ne.s32.totalorder %v478, 7
      %v481 = vld [vmem:[#allocation2] sm:$0xff]
      %v482 = vld [vmem:[#allocation2 + $0x48] sm:$0xff]
      %v483 = vsel %vm479, 1, 0
      %vm484 = vcmp.eq.s32.totalorder %v483, 1
      %vm485 = vmpackc.low %vm484, %vm484
      %v486 = vsel %vm485, 65537, 0
      %v487 = vlaneseq
      %v488 = vshrl.u32 %v487, 7
      %v489 = vsub.s32 0, %v488
      %v490 = vrot.slane %v486, %v489
      %vm491 = vcmp.ne.s16.totalorder %v490, 0
      %v492 = vsel %vm491, %v481, 0
      %v493 = vsel %vm491, %v482, 0
      %vm494 = vcmask 523264
      %495 = vst.msk [vmem:[#allocation3] sm:$0xff] %vm494, %v492
      %496 = vst.msk [vmem:[#allocation3 + $0x40] sm:$0xff] %vm494, %v493
      %v497 = vld [vmem:[#allocation2] sm:$0xff]
      %v498 = vld [vmem:[#allocation2 + $0x48] sm:$0xff]
      %501 = vrot.lane.b32.xlu0 %v497, 127
      %v502 = vpop.permute.xlu0 %501
      %503 = vrot.lane.b32.xlu0 %v498, 127
      %v504 = vpop.permute.xlu0 %503
      %507 = vst.msk [vmem:[#allocation3 + $0x80] sm:$0xff] %vm494, %v502
      %508 = vst.msk [vmem:[#allocation3 + $0xc0] sm:$0xff] %vm494, %v504
      %v509 = vld [vmem:[#allocation2] sm:$0xff]
      %v510 = vld [vmem:[#allocation2 + $0x48] sm:$0xff]
      %v511 = vsel %vm480, 1, 0
      %vm512 = vcmp.eq.s32.totalorder %v511, 1
      %vm513 = vmpackc.low %vm512, %vm512
      %v514 = vsel %vm513, 65537, 0
      %v515 = vlaneseq
      %v516 = vshrl.u32 %v515, 7
      %v517 = vsub.s32 0, %v516
      %v518 = vrot.slane %v514, %v517
      %519 = vrot.lane.b32.xlu0 %v518, 2
      %v520 = vpop.permute.xlu0 %519
      %vm521 = vcmp.ne.s16.totalorder %v520, 0
      %v522 = vsel %vm521, %v509, 0
      %v523 = vsel %vm521, %v510, 0
      %526 = vrot.lane.b32.xlu0 %v522, 126
      %v527 = vpop.permute.xlu0 %526
      %528 = vrot.lane.b32.xlu0 %v523, 126
      %v529 = vpop.permute.xlu0 %528
      %532 = vst.msk [vmem:[#allocation3 + $0x100] sm:$0xff] %vm494, %v527
      %533 = vst.msk [vmem:[#allocation3 + $0x140] sm:$0xff] %vm494, %v529
      %v534 = vld [vmem:[#allocation2] sm:$0xff]
      %v535 = vld [vmem:[#allocation2 + $0x48] sm:$0xff]
      %536 = vrot.lane.b32.xlu0 %v490, 8
      %v537 = vpop.permute.xlu0 %536
      %vm538 = vcmp.ne.s16.totalorder %v537, 0
      %v539 = vsel %vm538, %v534, 0
      %v540 = vsel %vm538, %v535, 0
      %543 = vrot.lane.b32.xlu0 %v539, 120
      %v544 = vpop.permute.xlu0 %543
      %545 = vrot.lane.b32.xlu0 %v540, 120
      %v546 = vpop.permute.xlu0 %545
      %549 = vst.msk [vmem:[#allocation3 + $0x180] sm:$0xff] %vm494, %v544
      %550 = vst.msk [vmem:[#allocation3 + $0x1c0] sm:$0xff] %vm494, %v546
      %v551 = vld [vmem:[#allocation2] sm:$0xff]
      %v552 = vld [vmem:[#allocation2 + $0x48] sm:$0xff]
      %555 = vrot.lane.b32.xlu0 %v551, 119
      %v556 = vpop.permute.xlu0 %555
      %557 = vrot.lane.b32.xlu0 %v552, 119
      %v558 = vpop.permute.xlu0 %557
      %561 = vst.msk [vmem:[#allocation3 + $0x200] sm:$0xff] %vm494, %v556
      %562 = vst.msk [vmem:[#allocation3 + $0x240] sm:$0xff] %vm494, %v558
      %v563 = vld [vmem:[#allocation2] sm:$0xff]
      %v564 = vld [vmem:[#allocation2 + $0x48] sm:$0xff]
      %565 = vrot.lane.b32.xlu0 %v518, 10
      %v566 = vpop.permute.xlu0 %565
      %vm567 = vcmp.ne.s16.totalorder %v566, 0
      %v568 = vsel %vm567, %v563, 0
      %v569 = vsel %vm567, %v564, 0
      %572 = vrot.lane.b32.xlu0 %v568, 118
      %v573 = vpop.permute.xlu0 %572
      %574 = vrot.lane.b32.xlu0 %v569, 118
      %v575 = vpop.permute.xlu0 %574
      %578 = vst.msk [vmem:[#allocation3 + $0x280] sm:$0xff] %vm494, %v573
      %579 = vst.msk [vmem:[#allocation3 + $0x2c0] sm:$0xff] %vm494, %v575
      %v580 = vld [vmem:[#allocation2] sm:$0xff]
      %v581 = vld [vmem:[#allocation2 + $0x48] sm:$0xff]
      %582 = vrot.lane.b32.xlu0 %v490, 16
      %v583 = vpop.permute.xlu0 %582
      %vm584 = vcmp.ne.s16.totalorder %v583, 0
      %v585 = vsel %vm584, %v580, 0
      %v586 = vsel %vm584, %v581, 0
      %589 = vrot.lane.b32.xlu0 %v585, 112
      %v590 = vpop.permute.xlu0 %589
      %591 = vrot.lane.b32.xlu0 %v586, 112
      %v592 = vpop.permute.xlu0 %591
      %595 = vst.msk [vmem:[#allocation3 + $0x300] sm:$0xff] %vm494, %v590
      %596 = vst.msk [vmem:[#allocation3 + $0x340] sm:$0xff] %vm494, %v592
      %v597 = vld [vmem:[#allocation2] sm:$0xff]
      %v598 = vld [vmem:[#allocation2 + $0x48] sm:$0xff]
      %601 = vrot.lane.b32.xlu0 %v597, 111
      %v602 = vpop.permute.xlu0 %601
      %603 = vrot.lane.b32.xlu0 %v598, 111
      %v604 = vpop.permute.xlu0 %603
      %607 = vst.msk [vmem:[#allocation3 + $0x380] sm:$0xff] %vm494, %v602
      %608 = vst.msk [vmem:[#allocation3 + $0x3c0] sm:$0xff] %vm494, %v604
      %v609 = vld [vmem:[#allocation2] sm:$0xff]
      %v610 = vld [vmem:[#allocation2 + $0x48] sm:$0xff]
      %611 = vrot.lane.b32.xlu0 %v518, 18
      %v612 = vpop.permute.xlu0 %611
      %vm613 = vcmp.ne.s16.totalorder %v612, 0
      %v614 = vsel %vm613, %v609, 0
      %v615 = vsel %vm613, %v610, 0
      %618 = vrot.lane.b32.xlu0 %v614, 110
      %v619 = vpop.permute.xlu0 %618
      %620 = vrot.lane.b32.xlu0 %v615, 110
      %v621 = vpop.permute.xlu0 %620
      %624 = vst.msk [vmem:[#allocation3 + $0x400] sm:$0xff] %vm494, %v619
      %625 = vst.msk [vmem:[#allocation3 + $0x440] sm:$0xff] %vm494, %v621
      %v626 = vld [vmem:[#allocation3] sm:$0xff]
      %v627 = vld [vmem:[#allocation3 + $0x40] sm:$0xff]
      %v628 = vld [vmem:[#allocation3 + $0x80] sm:$0xff]
      %v629 = vld [vmem:[#allocation3 + $0xc0] sm:$0xff]
      %v630 = vld [vmem:[#allocation3 + $0x100] sm:$0xff]
      %v631 = vld [vmem:[#allocation3 + $0x140] sm:$0xff]
      %v632 = vld [vmem:[#allocation3 + $0x180] sm:$0xff]
      %v633 = vld [vmem:[#allocation3 + $0x1c0] sm:$0xff]
      %v634 = vld [vmem:[#allocation3 + $0x200] sm:$0xff]
      %v635 = vld [vmem:[#allocation3 + $0x240] sm:$0xff]
      %v636 = vld [vmem:[#allocation3 + $0x280] sm:$0xff]
      %v637 = vld [vmem:[#allocation3 + $0x2c0] sm:$0xff]
      %v638 = vld [vmem:[#allocation3 + $0x300] sm:$0xff]
      %v639 = vld [vmem:[#allocation3 + $0x340] sm:$0xff]
      %v640 = vld [vmem:[#allocation3 + $0x380] sm:$0xff]
      %v641 = vld [vmem:[#allocation3 + $0x3c0] sm:$0xff]
      %v642 = vld [vmem:[#allocation3 + $0x400] sm:$0xff]
      %v643 = vld [vmem:[#allocation3 + $0x440] sm:$0xff]
      %645 = vset.pattern.permute.xlu0 0
      %646 = vperm.xlu0 %645, %v442
      %v647 = vpop.permute.xlu0 %646
      %650 = vset.pattern.permute.xlu0 0
      %651 = vperm.xlu0 %650, %v443
      %v652 = vpop.permute.xlu0 %651
      %655 = vset.pattern.permute.xlu0 0
      %656 = vperm.xlu0 %655, %v444
      %v657 = vpop.permute.xlu0 %656
      %660 = vset.pattern.permute.xlu0 0
      %661 = vperm.xlu0 %660, %v445
      %v662 = vpop.permute.xlu0 %661
      %v672 = vunpack.c.l.b16 %v434
      %v673 = vunpack.c.h.b16 %v434
      %v674 = vunpack.c.l.b16 %v435
      %v675 = vunpack.c.l.b16 %v436
      %v676 = vunpack.c.h.b16 %v436
      %v677 = vunpack.c.l.b16 %v437
      %v678 = vunpack.c.l.b16 %v438
      %v679 = vunpack.c.h.b16 %v438
      %v680 = vunpack.c.l.b16 %v439
      %v681 = vunpack.c.l.b16 %v440
      %v682 = vunpack.c.h.b16 %v440
      %v683 = vunpack.c.l.b16 %v441
      %v684 = vpack.c.b16 %v675, %v672
      %v685 = vpack.c.b16 %v676, %v673
      %v686 = vpack.c.b16 %v677, %v674
      %v687 = vpack.c.b16 %v681, %v678
      %v688 = vpack.c.b16 %v682, %v679
      %v689 = vpack.c.b16 %v683, %v680
      %vm694 = vcmask 261120
      %v696 = vsel %vm694, %v686, 0
      %v699 = vsel %vm694, %v689, 0
      %701 = vmatprep.subr.bf16.mxu0 0
      %702 = vmatpush1.bf16.msra.mxu0 %v626
      %703 = vmatprep.subr.bf16.mxu0 0
      %704 = vmatpush1.bf16.msra.mxu0 %v627
      %705 = vmatprep.subr.bf16.mxu0 0
      %706 = vmatpush1.bf16.msra.mxu0 %v628
      %707 = vmatprep.subr.bf16.mxu0 0
      %708 = vmatpush1.bf16.msra.mxu0 %v629
      %709 = vmatprep.subr.bf16.mxu0 0
      %710 = vmatpush1.bf16.msra.mxu0 %v630
      %711 = vmatprep.subr.bf16.mxu0 0
      %712 = vmatpush1.bf16.msra.mxu0 %v631
      %713 = vmatprep.subr.bf16.mxu0 0
      %714 = vmatpush1.bf16.msra.mxu0 %v632
      %715 = vmatprep.subr.bf16.mxu0 0
      %716 = vmatpush1.bf16.msra.mxu0 %v633
      %717 = vmatprep.subr.bf16.mxu0 0
      %718 = vmatpush1.bf16.msra.mxu0 %v634
      %719 = vmatprep.subr.bf16.mxu0 0
      %720 = vmatpush1.bf16.msra.mxu0 %v635
      %721 = vmatprep.subr.bf16.mxu0 0
      %722 = vmatpush1.bf16.msra.mxu0 %v636
      %723 = vmatprep.subr.bf16.mxu0 0
      %724 = vmatpush1.bf16.msra.mxu0 %v637
      %725 = vmatprep.subr.bf16.mxu0 0
      %726 = vmatpush1.bf16.msra.mxu0 %v638
      %727 = vmatprep.subr.bf16.mxu0 0
      %728 = vmatpush1.bf16.msra.mxu0 %v639
      %729 = vmatprep.subr.bf16.mxu0 0
      %730 = vmatpush1.bf16.msra.mxu0 %v640
      %731 = vmatprep.subr.bf16.mxu0 0
      %732 = vmatpush1.bf16.msra.mxu0 %v641
      %733 = vmatprep.mubr.bf16.mxu0 %v685
      %734 = vmatmul.mubr.bf16.gmra.mrb[0].mxu0 %v684
      %v735 = vpop.f32.mrb[0].mxu0
      %v736 = vadd.f32 %v647, %v735
      %v737 = vpop.f32.mrb[0].mxu0
      %v738 = vpop.f32.mrb[0].mxu0
      %v739 = vadd.f32 %v652, %v738
      %v740 = vpop.f32.mrb[0].mxu0
      %741 = vmatprep.mubr.bf16.mxu0 %v688
      %742 = vmatmul.mubr.bf16.gmra.mrb[0].mxu0 %v687
      %v743 = vpop.f32.mrb[0].mxu0
      %v744 = vadd.f32 %v657, %v743
      %v745 = vpop.f32.mrb[0].mxu0
      %v746 = vpop.f32.mrb[0].mxu0
      %v747 = vadd.f32 %v662, %v746
      %v748 = vpop.f32.mrb[0].mxu0
      %749 = vdwg.mxu0
      %750 = vmatprep.subr.bf16.mxu0 0
      %751 = vmatpush1.bf16.msra.mxu0 %v642
      %752 = vmatprep.subr.bf16.mxu0 0
      %753 = vmatpush1.bf16.msra.mxu0 %v643
      %754 = vmatprep.subr.bf16.mxu0 0
      %755 = vmatpush1.bf16.msra.mxu0 0
      %756 = vmatprep.subr.bf16.mxu0 0
      %757 = vmatpush1.bf16.msra.mxu0 0
      %758 = vmatprep.subr.bf16.mxu0 0
      %759 = vmatpush1.bf16.msra.mxu0 0
      %760 = vmatprep.subr.bf16.mxu0 0
      %761 = vmatpush1.bf16.msra.mxu0 0
      %762 = vmatprep.subr.bf16.mxu0 0
      %763 = vmatpush1.bf16.msra.mxu0 0
      %764 = vmatprep.subr.bf16.mxu0 0
      %765 = vmatpush1.bf16.msra.mxu0 0
      %766 = vmatprep.subr.bf16.mxu0 0
      %767 = vmatpush1.bf16.msra.mxu0 0
      %768 = vmatprep.subr.bf16.mxu0 0
      %769 = vmatpush1.bf16.msra.mxu0 0
      %770 = vmatprep.subr.bf16.mxu0 0
      %771 = vmatpush1.bf16.msra.mxu0 0
      %772 = vmatprep.subr.bf16.mxu0 0
      %773 = vmatpush1.bf16.msra.mxu0 0
      %774 = vmatprep.subr.bf16.mxu0 0
      %775 = vmatpush1.bf16.msra.mxu0 0
      %776 = vmatprep.subr.bf16.mxu0 0
      %777 = vmatpush1.bf16.msra.mxu0 0
      %778 = vmatprep.subr.bf16.mxu0 0
      %779 = vmatpush1.bf16.msra.mxu0 0
      %780 = vmatprep.subr.bf16.mxu0 0
      %781 = vmatpush1.bf16.msra.mxu0 0
      %782 = vmatprep.mubr.bf16.mxu0 0
      %783 = vmatmul.mubr.bf16.gmra.mrb[0].mxu0 %v696
      %v784 = vpop.f32.mrb[0].mxu0
      %v785 = vadd.f32 %v736, %v784
      %v786 = vpop.f32.mrb[0].mxu0
      %v787 = vpop.f32.mrb[0].mxu0
      %v788 = vadd.f32 %v739, %v787
      %v789 = vpop.f32.mrb[0].mxu0
      %790 = vmatprep.mubr.bf16.mxu0 0
      %791 = vmatmul.mubr.bf16.gmra.mrb[0].mxu0 %v699
      %v792 = vpop.f32.mrb[0].mxu0
      %v793 = vadd.f32 %v744, %v792
      %v794 = vpop.f32.mrb[0].mxu0
      %v795 = vpop.f32.mrb[0].mxu0
      %v796 = vadd.f32 %v747, %v795
      %v797 = vpop.f32.mrb[0].mxu0
      %798 = vdwg.mxu0
      %v799 = vmax.f32 %v785, 0.0
      %v800 = vmax.f32 %v788, 0.0
      %v801 = vmax.f32 %v793, 0.0
      %v802 = vmax.f32 %v796, 0.0
      %v803 = vld [vmem:[%s416] sm:$0xff]
      %v804 = vld [vmem:[%s416 + $0x8] sm:$0xff]
      %v805 = vld [vmem:[%s416 + $0x10] sm:$0xff]
      %v806 = vld [vmem:[%s416 + $0x18] sm:$0xff]
      %v807 = vld [vmem:[%s416 + $0x20] sm:$0xff]
      %v808 = vld [vmem:[%s416 + $0x28] sm:$0xff]
      %v809 = vld [vmem:[%s416 + $0x30] sm:$0xff]
      %v810 = vld [vmem:[%s416 + $0x38] sm:$0xff]
      %v811 = vld [vmem:[%s9] sm:$0xff]
      %v812 = vld [vmem:[%s9 + $0x8] sm:$0xff]
      %v813 = vld [vmem:[%s9 + $0x10] sm:$0xff]
      %v814 = vld [vmem:[%s9 + $0x18] sm:$0xff]
      %v815 = vld [vmem:[%s9 + $0x20] sm:$0xff]
      %v816 = vld [vmem:[%s9 + $0x28] sm:$0xff]
      %v817 = vld [vmem:[%s9 + $0x30] sm:$0xff]
      %v818 = vld [vmem:[%s9 + $0x38] sm:$0xff]
      %v819 = vpack.c.bf16 %v800, %v799
      %v820 = vpack.c.bf16 %v802, %v801
      %v829 = vunpack.c.l.b16 %v811
      %v830 = vunpack.c.h.b16 %v811
      %v831 = vunpack.c.l.b16 %v812
      %v832 = vunpack.c.h.b16 %v812
      %v833 = vunpack.c.l.b16 %v813
      %v834 = vunpack.c.h.b16 %v813
      %v835 = vunpack.c.l.b16 %v814
      %v836 = vunpack.c.h.b16 %v814
      %v837 = vunpack.c.l.b16 %v815
      %v838 = vunpack.c.h.b16 %v815
      %v839 = vunpack.c.l.b16 %v816
      %v840 = vunpack.c.h.b16 %v816
      %v841 = vunpack.c.l.b16 %v817
      %v842 = vunpack.c.h.b16 %v817
      %v843 = vunpack.c.l.b16 %v818
      %v844 = vunpack.c.h.b16 %v818
      %v845 = vpack.c.b16 %v831, %v829
      %v846 = vpack.c.b16 %v832, %v830
      %v847 = vpack.c.b16 %v835, %v833
      %v848 = vpack.c.b16 %v836, %v834
      %v849 = vpack.c.b16 %v839, %v837
      %v850 = vpack.c.b16 %v840, %v838
      %v851 = vpack.c.b16 %v843, %v841
      %v852 = vpack.c.b16 %v844, %v842
      %v862 = vsel %vm494, %v819, 0
      %v865 = vsel %vm494, %v820, 0
      %867 = vmatprep.subr.bf16.mxu0 %v846
      %868 = vmatpush1.bf16.msra.mxu0 %v845
      %869 = vmatprep.subr.bf16.mxu0 %v848
      %870 = vmatpush1.bf16.msra.mxu0 %v847
      %871 = vmatprep.subr.bf16.mxu0 %v850
      %872 = vmatpush1.bf16.msra.mxu0 %v849
      %873 = vmatprep.subr.bf16.mxu0 %v852
      %874 = vmatpush1.bf16.msra.mxu0 %v851
      %875 = vmatprep.subr.bf16.mxu0 0
      %876 = vmatpush1.bf16.msra.mxu0 0
      %877 = vmatprep.subr.bf16.mxu0 0
      %878 = vmatpush1.bf16.msra.mxu0 0
      %879 = vmatprep.subr.bf16.mxu0 0
      %880 = vmatpush1.bf16.msra.mxu0 0
      %881 = vmatprep.subr.bf16.mxu0 0
      %882 = vmatpush1.bf16.msra.mxu0 0
      %883 = vmatprep.subr.bf16.mxu0 0
      %884 = vmatpush1.bf16.msra.mxu0 0
      %885 = vmatprep.subr.bf16.mxu0 0
      %886 = vmatpush1.bf16.msra.mxu0 0
      %887 = vmatprep.subr.bf16.mxu0 0
      %888 = vmatpush1.bf16.msra.mxu0 0
      %889 = vmatprep.subr.bf16.mxu0 0
      %890 = vmatpush1.bf16.msra.mxu0 0
      %891 = vmatprep.subr.bf16.mxu0 0
      %892 = vmatpush1.bf16.msra.mxu0 0
      %893 = vmatprep.subr.bf16.mxu0 0
      %894 = vmatpush1.bf16.msra.mxu0 0
      %895 = vmatprep.subr.bf16.mxu0 0
      %896 = vmatpush1.bf16.msra.mxu0 0
      %897 = vmatprep.subr.bf16.mxu0 0
      %898 = vmatpush1.bf16.msra.mxu0 0
      %899 = vmatprep.mubr.bf16.mxu0 0
      %900 = vmatmul.mubr.bf16.gmra.mrb[0].mxu0 %v862
      %v901 = vpop.f32.mrb[0].mxu0
      %v902 = vadd.f32 0.0, %v901
      %v903 = vpop.f32.mrb[0].mxu0
      %v904 = vadd.f32 0.0, %v903
      %v905 = vpop.f32.mrb[0].mxu0
      %v906 = vadd.f32 0.0, %v905
      %v907 = vpop.f32.mrb[0].mxu0
      %v908 = vadd.f32 0.0, %v907
      %909 = vmatprep.mubr.bf16.mxu0 0
      %910 = vmatmul.mubr.bf16.gmra.mrb[0].mxu0 %v865
      %v911 = vpop.f32.mrb[0].mxu0
      %v912 = vadd.f32 0.0, %v911
      %v913 = vpop.f32.mrb[0].mxu0
      %v914 = vadd.f32 0.0, %v913
      %v915 = vpop.f32.mrb[0].mxu0
      %v916 = vadd.f32 0.0, %v915
      %v917 = vpop.f32.mrb[0].mxu0
      %v918 = vadd.f32 0.0, %v917
      %919 = vdwg.mxu0
      %v920 = vadd.f32 %v803, %v902
      %v921 = vadd.f32 %v804, %v904
      %v922 = vadd.f32 %v805, %v906
      %v923 = vadd.f32 %v806, %v908
      %v924 = vadd.f32 %v807, %v912
      %v925 = vadd.f32 %v808, %v914
      %v926 = vadd.f32 %v809, %v916
      %v927 = vadd.f32 %v810, %v918
      %v928 = vld [vmem:[%s4] sm:$0xff]
      %v929 = vld [vmem:[%s4 + $0x8] sm:$0xf]
      %v930 = vld [vmem:[%s4 + $0xc] sm:$0xff]
      %v931 = vld [vmem:[%s4 + $0x14] sm:$0xf]
      %v932 = vld [vmem:[%s4 + $0x18] sm:$0xff]
      %v933 = vld [vmem:[%s4 + $0x20] sm:$0xf]
      %v934 = vld [vmem:[%s4 + $0x24] sm:$0xff]
      %v935 = vld [vmem:[%s4 + $0x2c] sm:$0xf]
      %v936 = vld [vmem:[%s7] sm:$0xff]
      %v937 = vld [vmem:[%s7 + $0x8] sm:$0xff]
      %v938 = vld [vmem:[%s7 + $0x10] sm:$0xff]
      %v939 = vld [vmem:[%s7 + $0x18] sm:$0xff]
      %vm940 = vcmask 138240
      %941 = vst.msk [vmem:[#allocation2] sm:$0xff] %vm940, 0
      %942 = vst.msk [vmem:[#allocation2 + $0x48] sm:$0xff] %vm940, 0
      %vm943 = vcmask 277640
      %944 = vst.msk [vmem:[#allocation2 + $0x10] sm:$0xff] %vm943, 0
      %945 = vst.msk [vmem:[#allocation2 + $0x58] sm:$0xff] %vm943, 0
      %v946 = vpack.c.bf16 %v922, %v920
      %v947 = vpack.c.bf16 %v923, %v921
      %v948 = vpack.c.bf16 %v926, %v924
      %v949 = vpack.c.bf16 %v927, %v925
      %954 = vrot.lane.b32.xlu0 %v946, 17
      %v955 = vpop.permute.xlu0 %954
      %956 = vrot.lane.b32.xlu0 %v947, 17
      %v957 = vpop.permute.xlu0 %956
      %958 = vrot.lane.b32.xlu0 %v948, 17
      %v959 = vpop.permute.xlu0 %958
      %960 = vrot.lane.b32.xlu0 %v949, 17
      %v961 = vpop.permute.xlu0 %960
      %vm962 = vcmask 138240
      %v963 = vsel %vm962, %v955, %v957
      %v964 = vsel %vm962, %v959, %v961
      %vm971 = vcmask 1047688
      %972 = vst.msk [vmem:[#allocation2] sm:$0xff] %vm971, %v955
      %973 = vst [vmem:[#allocation2 + $0x8] sm:$0xff] %v963
      %974 = vst.msk [vmem:[#allocation2 + $0x10] sm:$0xff] %vm940, %v957
      %975 = vst.msk [vmem:[#allocation2 + $0x48] sm:$0xff] %vm971, %v959
      %976 = vst [vmem:[#allocation2 + $0x50] sm:$0xff] %v964
      %977 = vst.msk [vmem:[#allocation2 + $0x58] sm:$0xff] %vm940, %v961
      %v978 = vadd.s32 %v466, 128
      %vm979 = vcmp.lt.s32.totalorder %v466, 0
      %v980 = vsub.s32 0, %v466
      %v981 = vsel %vm979, %v980, %v466
      %v982 = vshrl.u32 %v981, 4
      %v983 = vand.u32 %v981, 15
      %v984 = vsub.s32 0, %v983
      %v985 = vsel %vm979, %v984, %v983
      %vm986 = vcmp.lt.s32.totalorder %v978, 0
      %v987 = vsub.s32 0, %v978
      %v988 = vsel %vm986, %v987, %v978
      %v989 = vshrl.u32 %v988, 4
      %v990 = vand.u32 %v988, 15
      %v991 = vsub.s32 0, %v990
      %v992 = vsel %vm986, %v991, %v990
      %vm993 = vcmp.ne.s32.totalorder %v985, 0
      %vm994 = vcmp.ne.s32.totalorder %v992, 0
      %vm995 = vcmp.lt.s32.totalorder %v985, 0
      %vm996 = vcmp.lt.s32.totalorder %v992, 0
      %vm997 = vmand %vm995, %vm993
      %vm998 = vmand %vm996, %vm994
      %v999 = vadd.s32 %v985, 16
      %v1000 = vadd.s32 %v992, 16
      %v1001 = vsel %vm997, %v999, %v985
      %v1002 = vsel %vm998, %v1000, %v992
      %vm1003 = vcmp.ne.s32.totalorder %v1001, 0
      %vm1004 = vcmp.ne.s32.totalorder %v1002, 0
      %vm1005 = vcmp.ne.s32.totalorder %v1001, 15
      %vm1006 = vcmp.ne.s32.totalorder %v1002, 15
      %v1007 = vld [vmem:[#allocation2] sm:$0xff]
      %v1008 = vld [vmem:[#allocation2 + $0x8] sm:$0xff]
      %v1009 = vld [vmem:[#allocation2 + $0x48] sm:$0xff]
      %v1010 = vld [vmem:[#allocation2 + $0x50] sm:$0xff]
      %v1011 = vsel %vm1003, 1, 0
      %v1012 = vsel %vm1004, 1, 0
      %vm1013 = vcmp.eq.s32.totalorder %v1011, 1
      %vm1014 = vcmp.eq.s32.totalorder %v1012, 1
      %vm1015 = vmpackc.low %vm1014, %vm1013
      %v1016 = vsel %vm1015, 65537, 0
      %v1017 = vlaneseq
      %v1018 = vshrl.u32 %v1017, 7
      %v1019 = vsub.s32 0, %v1018
      %v1020 = vrot.slane %v1016, %v1019
      %v1021 = vlaneseq
      %v1022 = vshrl.u32 %v1021, 7
      %v1023 = vsub.s32 4, %v1022
      %v1024 = vrot.slane %v1016, %v1023
      %vm1025 = vcmp.ne.s16.totalorder %v1020, 0
      %vm1026 = vcmp.ne.s16.totalorder %v1024, 0
      %v1027 = vsel %vm1025, %v1007, 0
      %v1028 = vsel %vm1026, %v1008, 0
      %v1029 = vsel %vm1025, %v1009, 0
      %v1030 = vsel %vm1026, %v1010, 0
      %1031 = vst [vmem:[#allocation3] sm:$0xff] %v1027
      %1032 = vst [vmem:[#allocation3 + $0x8] sm:$0xff] %v1028
      %1033 = vst [vmem:[#allocation3 + $0x40] sm:$0xff] %v1029
      %1034 = vst [vmem:[#allocation3 + $0x48] sm:$0xff] %v1030
      %v1035 = vld [vmem:[#allocation2] sm:$0xff]
      %v1036 = vld [vmem:[#allocation2 + $0x8] sm:$0xff]
      %v1037 = vld [vmem:[#allocation2 + $0x10] sm:$0xff]
      %v1038 = vld [vmem:[#allocation2 + $0x48] sm:$0xff]
      %v1039 = vld [vmem:[#allocation2 + $0x50] sm:$0xff]
      %v1040 = vld [vmem:[#allocation2 + $0x58] sm:$0xff]
      %1047 = vrot.lane.b32.xlu0 %v1035, 127
      %v1048 = vpop.permute.xlu0 %1047
      %1049 = vrot.lane.b32.xlu0 %v1036, 127
      %v1050 = vpop.permute.xlu0 %1049
      %1051 = vrot.lane.b32.xlu0 %v1037, 127
      %v1052 = vpop.permute.xlu0 %1051
      %1053 = vrot.lane.b32.xlu0 %v1038, 127
      %v1054 = vpop.permute.xlu0 %1053
      %1055 = vrot.lane.b32.xlu0 %v1039, 127
      %v1056 = vpop.permute.xlu0 %1055
      %1057 = vrot.lane.b32.xlu0 %v1040, 127
      %v1058 = vpop.permute.xlu0 %1057
      %vm1059 = vcmask 1039360
      %v1060 = vsel %vm1059, %v1048, %v1050
      %v1061 = vsel %vm1059, %v1050, %v1052
      %v1062 = vsel %vm1059, %v1054, %v1056
      %v1063 = vsel %vm1059, %v1056, %v1058
      %1068 = vst [vmem:[#allocation3 + $0x80] sm:$0xff] %v1060
      %1069 = vst [vmem:[#allocation3 + $0x88] sm:$0xff] %v1061
      %1070 = vst [vmem:[#allocation3 + $0xc0] sm:$0xff] %v1062
      %1071 = vst [vmem:[#allocation3 + $0xc8] sm:$0xff] %v1063
      %v1072 = vld [vmem:[#allocation2] sm:$0xff]
      %v1073 = vld [vmem:[#allocation2 + $0x8] sm:$0xff]
      %v1074 = vld [vmem:[#allocation2 + $0x10] sm:$0xff]
      %v1075 = vld [vmem:[#allocation2 + $0x48] sm:$0xff]
      %v1076 = vld [vmem:[#allocation2 + $0x50] sm:$0xff]
      %v1077 = vld [vmem:[#allocation2 + $0x58] sm:$0xff]
      %v1078 = vsel %vm1005, 1, 0
      %v1079 = vsel %vm1006, 1, 0
      %vm1080 = vcmp.eq.s32.totalorder %v1078, 1
      %vm1081 = vcmp.eq.s32.totalorder %v1079, 1
      %vm1082 = vmpackc.low %vm1081, %vm1080
      %v1083 = vsel %vm1082, 65537, 0
      %v1084 = vlaneseq
      %v1085 = vshrl.u32 %v1084, 7
      %v1086 = vsub.s32 0, %v1085
      %v1087 = vrot.slane %v1083, %v1086
      %v1088 = vlaneseq
      %v1089 = vshrl.u32 %v1088, 7
      %v1090 = vsub.s32 4, %v1089
      %v1091 = vrot.slane %v1083, %v1090
      %1092 = vrot.lane.b32.xlu0 %v1087, 2
      %v1093 = vpop.permute.xlu0 %1092
      %1094 = vrot.lane.b32.xlu0 %v1091, 2
      %v1095 = vpop.permute.xlu0 %1094
      %vm1096 = vcmask 15360
      %v1097 = vsel %vm1096, %v1093, %v1095
      %vm1098 = vcmp.ne.s16.totalorder %v1093, 0
      %vm1099 = vcmp.ne.s16.totalorder %v1097, 0
      %vm1100 = vcmp.ne.s16.totalorder %v1095, 0
      %v1101 = vsel %vm1098, %v1072, 0
      %v1102 = vsel %vm1099, %v1073, 0
      %v1103 = vsel %vm1100, %v1074, 0
      %v1104 = vsel %vm1098, %v1075, 0
      %v1105 = vsel %vm1099, %v1076, 0
      %v1106 = vsel %vm1100, %v1077, 0
      %1113 = vrot.lane.b32.xlu0 %v1101, 126
      %v1114 = vpop.permute.xlu0 %1113
      %1115 = vrot.lane.b32.xlu0 %v1102, 126
      %v1116 = vpop.permute.xlu0 %1115
      %1117 = vrot.lane.b32.xlu0 %v1103, 126
      %v1118 = vpop.permute.xlu0 %1117
      %1119 = vrot.lane.b32.xlu0 %v1104, 126
      %v1120 = vpop.permute.xlu0 %1119
      %1121 = vrot.lane.b32.xlu0 %v1105, 126
      %v1122 = vpop.permute.xlu0 %1121
      %1123 = vrot.lane.b32.xlu0 %v1106, 126
      %v1124 = vpop.permute.xlu0 %1123
      %vm1125 = vcmask 1031168
      %v1126 = vsel %vm1125, %v1114, %v1116
      %v1127 = vsel %vm1125, %v1116, %v1118
      %v1128 = vsel %vm1125, %v1120, %v1122
      %v1129 = vsel %vm1125, %v1122, %v1124
      %1134 = vst [vmem:[#allocation3 + $0x100] sm:$0xff] %v1126
      %1135 = vst [vmem:[#allocation3 + $0x108] sm:$0xff] %v1127
      %1136 = vst [vmem:[#allocation3 + $0x140] sm:$0xff] %v1128
      %1137 = vst [vmem:[#allocation3 + $0x148] sm:$0xff] %v1129
      %v1138 = vld [vmem:[#allocation2] sm:$0xff]
      %v1139 = vld [vmem:[#allocation2 + $0x8] sm:$0xff]
      %v1140 = vld [vmem:[#allocation2 + $0x10] sm:$0xff]
      %v1141 = vld [vmem:[#allocation2 + $0x48] sm:$0xff]
      %v1142 = vld [vmem:[#allocation2 + $0x50] sm:$0xff]
      %v1143 = vld [vmem:[#allocation2 + $0x58] sm:$0xff]
      %1144 = vrot.lane.b32.xlu0 %v1020, 16
      %v1145 = vpop.permute.xlu0 %1144
      %1146 = vrot.lane.b32.xlu0 %v1024, 16
      %v1147 = vpop.permute.xlu0 %1146
      %vm1148 = vcmask 130048
      %v1149 = vsel %vm1148, %v1145, %v1147
      %vm1150 = vcmp.ne.s16.totalorder %v1145, 0
      %vm1151 = vcmp.ne.s16.totalorder %v1149, 0
      %vm1152 = vcmp.ne.s16.totalorder %v1147, 0
      %v1153 = vsel %vm1150, %v1138, 0
      %v1154 = vsel %vm1151, %v1139, 0
      %v1155 = vsel %vm1152, %v1140, 0
      %v1156 = vsel %vm1150, %v1141, 0
      %v1157 = vsel %vm1151, %v1142, 0
      %v1158 = vsel %vm1152, %v1143, 0
      %1165 = vrot.lane.b32.xlu0 %v1153, 112
      %v1166 = vpop.permute.xlu0 %1165
      %1167 = vrot.lane.b32.xlu0 %v1154, 112
      %v1168 = vpop.permute.xlu0 %1167
      %1169 = vrot.lane.b32.xlu0 %v1155, 112
      %v1170 = vpop.permute.xlu0 %1169
      %1171 = vrot.lane.b32.xlu0 %v1156, 112
      %v1172 = vpop.permute.xlu0 %1171
      %1173 = vrot.lane.b32.xlu0 %v1157, 112
      %v1174 = vpop.permute.xlu0 %1173
      %1175 = vrot.lane.b32.xlu0 %v1158, 112
      %v1176 = vpop.permute.xlu0 %1175
      %vm1177 = vcmask 916480
      %v1178 = vsel %vm1177, %v1166, %v1168
      %v1179 = vsel %vm1177, %v1168, %v1170
      %v1180 = vsel %vm1177, %v1172, %v1174
      %v1181 = vsel %vm1177, %v1174, %v1176
      %1186 = vst [vmem:[#allocation3 + $0x180] sm:$0xff] %v1178
      %1187 = vst [vmem:[#allocation3 + $0x188] sm:$0xff] %v1179
      %1188 = vst [vmem:[#allocation3 + $0x1c0] sm:$0xff] %v1180
      %1189 = vst [vmem:[#allocation3 + $0x1c8] sm:$0xff] %v1181
      %v1190 = vld [vmem:[#allocation2] sm:$0xff]
      %v1191 = vld [vmem:[#allocation2 + $0x8] sm:$0xff]
      %v1192 = vld [vmem:[#allocation2 + $0x10] sm:$0xff]
      %v1193 = vld [vmem:[#allocation2 + $0x48] sm:$0xff]
      %v1194 = vld [vmem:[#allocation2 + $0x50] sm:$0xff]
      %v1195 = vld [vmem:[#allocation2 + $0x58] sm:$0xff]
      %1202 = vrot.lane.b32.xlu0 %v1190, 111
      %v1203 = vpop.permute.xlu0 %1202
      %1204 = vrot.lane.b32.xlu0 %v1191, 111
      %v1205 = vpop.permute.xlu0 %1204
      %1206 = vrot.lane.b32.xlu0 %v1192, 111
      %v1207 = vpop.permute.xlu0 %1206
      %1208 = vrot.lane.b32.xlu0 %v1193, 111
      %v1209 = vpop.permute.xlu0 %1208
      %1210 = vrot.lane.b32.xlu0 %v1194, 111
      %v1211 = vpop.permute.xlu0 %1210
      %1212 = vrot.lane.b32.xlu0 %v1195, 111
      %v1213 = vpop.permute.xlu0 %1212
      %vm1214 = vcmask 908288
      %v1215 = vsel %vm1214, %v1203, %v1205
      %v1216 = vsel %vm1214, %v1205, %v1207
      %v1217 = vsel %vm1214, %v1209, %v1211
      %v1218 = vsel %vm1214, %v1211, %v1213
      %1223 = vst [vmem:[#allocation3 + $0x200] sm:$0xff] %v1215
      %1224 = vst [vmem:[#allocation3 + $0x208] sm:$0xff] %v1216
      %1225 = vst [vmem:[#allocation3 + $0x240] sm:$0xff] %v1217
      %1226 = vst [vmem:[#allocation3 + $0x248] sm:$0xff] %v1218
      %v1227 = vld [vmem:[#allocation2] sm:$0xff]
      %v1228 = vld [vmem:[#allocation2 + $0x8] sm:$0xff]
      %v1229 = vld [vmem:[#allocation2 + $0x10] sm:$0xff]
      %v1230 = vld [vmem:[#allocation2 + $0x48] sm:$0xff]
      %v1231 = vld [vmem:[#allocation2 + $0x50] sm:$0xff]
      %v1232 = vld [vmem:[#allocation2 + $0x58] sm:$0xff]
      %1233 = vrot.lane.b32.xlu0 %v1087, 18
      %v1234 = vpop.permute.xlu0 %1233
      %1235 = vrot.lane.b32.xlu0 %v1091, 18
      %v1236 = vpop.permute.xlu0 %1235
      %vm1237 = vcmask 146432
      %v1238 = vsel %vm1237, %v1234, %v1236
      %vm1239 = vcmp.ne.s16.totalorder %v1234, 0
      %vm1240 = vcmp.ne.s16.totalorder %v1238, 0
      %vm1241 = vcmp.ne.s16.totalorder %v1236, 0
      %v1242 = vsel %vm1239, %v1227, 0
      %v1243 = vsel %vm1240, %v1228, 0
      %v1244 = vsel %vm1241, %v1229, 0
      %v1245 = vsel %vm1239, %v1230, 0
      %v1246 = vsel %vm1240, %v1231, 0
      %v1247 = vsel %vm1241, %v1232, 0
      %1254 = vrot.lane.b32.xlu0 %v1242, 110
      %v1255 = vpop.permute.xlu0 %1254
      %1256 = vrot.lane.b32.xlu0 %v1243, 110
      %v1257 = vpop.permute.xlu0 %1256
      %1258 = vrot.lane.b32.xlu0 %v1244, 110
      %v1259 = vpop.permute.xlu0 %1258
      %1260 = vrot.lane.b32.xlu0 %v1245, 110
      %v1261 = vpop.permute.xlu0 %1260
      %1262 = vrot.lane.b32.xlu0 %v1246, 110
      %v1263 = vpop.permute.xlu0 %1262
      %1264 = vrot.lane.b32.xlu0 %v1247, 110
      %v1265 = vpop.permute.xlu0 %1264
      %vm1266 = vcmask 900096
      %v1267 = vsel %vm1266, %v1255, %v1257
      %v1268 = vsel %vm1266, %v1257, %v1259
      %v1269 = vsel %vm1266, %v1261, %v1263
      %v1270 = vsel %vm1266, %v1263, %v1265
      %1275 = vst [vmem:[#allocation3 + $0x280] sm:$0xff] %v1267
      %1276 = vst [vmem:[#allocation3 + $0x288] sm:$0xff] %v1268
      %1277 = vst [vmem:[#allocation3 + $0x2c0] sm:$0xff] %v1269
      %1278 = vst [vmem:[#allocation3 + $0x2c8] sm:$0xff] %v1270
      %v1279 = vld [vmem:[#allocation2] sm:$0xff]
      %v1280 = vld [vmem:[#allocation2 + $0x8] sm:$0xff]
      %v1281 = vld [vmem:[#allocation2 + $0x10] sm:$0xff]
      %v1282 = vld [vmem:[#allocation2 + $0x48] sm:$0xff]
      %v1283 = vld [vmem:[#allocation2 + $0x50] sm:$0xff]
      %v1284 = vld [vmem:[#allocation2 + $0x58] sm:$0xff]
      %1285 = vrot.lane.b32.xlu0 %v1020, 32
      %v1286 = vpop.permute.xlu0 %1285
      %1287 = vrot.lane.b32.xlu0 %v1024, 32
      %v1288 = vpop.permute.xlu0 %1287
      %vm1289 = vcmask 261120
      %v1290 = vsel %vm1289, %v1286, %v1288
      %vm1291 = vcmp.ne.s16.totalorder %v1286, 0
      %vm1292 = vcmp.ne.s16.totalorder %v1290, 0
      %vm1293 = vcmp.ne.s16.totalorder %v1288, 0
      %v1294 = vsel %vm1291, %v1279, 0
      %v1295 = vsel %vm1292, %v1280, 0
      %v1296 = vsel %vm1293, %v1281, 0
      %v1297 = vsel %vm1291, %v1282, 0
      %v1298 = vsel %vm1292, %v1283, 0
      %v1299 = vsel %vm1293, %v1284, 0
      %1306 = vrot.lane.b32.xlu0 %v1294, 96
      %v1307 = vpop.permute.xlu0 %1306
      %1308 = vrot.lane.b32.xlu0 %v1295, 96
      %v1309 = vpop.permute.xlu0 %1308
      %1310 = vrot.lane.b32.xlu0 %v1296, 96
      %v1311 = vpop.permute.xlu0 %1310
      %1312 = vrot.lane.b32.xlu0 %v1297, 96
      %v1313 = vpop.permute.xlu0 %1312
      %1314 = vrot.lane.b32.xlu0 %v1298, 96
      %v1315 = vpop.permute.xlu0 %1314
      %1316 = vrot.lane.b32.xlu0 %v1299, 96
      %v1317 = vpop.permute.xlu0 %1316
      %vm1318 = vcmask 785408
      %v1319 = vsel %vm1318, %v1307, %v1309
      %v1320 = vsel %vm1318, %v1309, %v1311
      %v1321 = vsel %vm1318, %v1313, %v1315
      %v1322 = vsel %vm1318, %v1315, %v1317
      %1327 = vst [vmem:[#allocation3 + $0x300] sm:$0xff] %v1319
      %1328 = vst [vmem:[#allocation3 + $0x308] sm:$0xff] %v1320
      %1329 = vst [vmem:[#allocation3 + $0x340] sm:$0xff] %v1321
      %1330 = vst [vmem:[#allocation3 + $0x348] sm:$0xff] %v1322
      %v1331 = vld [vmem:[#allocation2] sm:$0xff]
      %v1332 = vld [vmem:[#allocation2 + $0x8] sm:$0xff]
      %v1333 = vld [vmem:[#allocation2 + $0x10] sm:$0xff]
      %v1334 = vld [vmem:[#allocation2 + $0x48] sm:$0xff]
      %v1335 = vld [vmem:[#allocation2 + $0x50] sm:$0xff]
      %v1336 = vld [vmem:[#allocation2 + $0x58] sm:$0xff]
      %1343 = vrot.lane.b32.xlu0 %v1331, 95
      %v1344 = vpop.permute.xlu0 %1343
      %1345 = vrot.lane.b32.xlu0 %v1332, 95
      %v1346 = vpop.permute.xlu0 %1345
      %1347 = vrot.lane.b32.xlu0 %v1333, 95
      %v1348 = vpop.permute.xlu0 %1347
      %1349 = vrot.lane.b32.xlu0 %v1334, 95
      %v1350 = vpop.permute.xlu0 %1349
      %1351 = vrot.lane.b32.xlu0 %v1335, 95
      %v1352 = vpop.permute.xlu0 %1351
      %1353 = vrot.lane.b32.xlu0 %v1336, 95
      %v1354 = vpop.permute.xlu0 %1353
      %vm1355 = vcmask 777216
      %v1356 = vsel %vm1355, %v1344, %v1346
      %v1357 = vsel %vm1355, %v1346, %v1348
      %v1358 = vsel %vm1355, %v1350, %v1352
      %v1359 = vsel %vm1355, %v1352, %v1354
      %1364 = vst [vmem:[#allocation3 + $0x380] sm:$0xff] %v1356
      %1365 = vst [vmem:[#allocation3 + $0x388] sm:$0xff] %v1357
      %1366 = vst [vmem:[#allocation3 + $0x3c0] sm:$0xff] %v1358
      %1367 = vst [vmem:[#allocation3 + $0x3c8] sm:$0xff] %v1359
      %v1368 = vld [vmem:[#allocation2] sm:$0xff]
      %v1369 = vld [vmem:[#allocation2 + $0x8] sm:$0xff]
      %v1370 = vld [vmem:[#allocation2 + $0x10] sm:$0xff]
      %v1371 = vld [vmem:[#allocation2 + $0x48] sm:$0xff]
      %v1372 = vld [vmem:[#allocation2 + $0x50] sm:$0xff]
      %v1373 = vld [vmem:[#allocation2 + $0x58] sm:$0xff]
      %1374 = vrot.lane.b32.xlu0 %v1087, 34
      %v1375 = vpop.permute.xlu0 %1374
      %1376 = vrot.lane.b32.xlu0 %v1091, 34
      %v1377 = vpop.permute.xlu0 %1376
      %vm1378 = vcmask 277504
      %v1379 = vsel %vm1378, %v1375, %v1377
      %vm1380 = vcmp.ne.s16.totalorder %v1375, 0
      %vm1381 = vcmp.ne.s16.totalorder %v1379, 0
      %vm1382 = vcmp.ne.s16.totalorder %v1377, 0
      %v1383 = vsel %vm1380, %v1368, 0
      %v1384 = vsel %vm1381, %v1369, 0
      %v1385 = vsel %vm1382, %v1370, 0
      %v1386 = vsel %vm1380, %v1371, 0
      %v1387 = vsel %vm1381, %v1372, 0
      %v1388 = vsel %vm1382, %v1373, 0
      %1395 = vrot.lane.b32.xlu0 %v1383, 94
      %v1396 = vpop.permute.xlu0 %1395
      %1397 = vrot.lane.b32.xlu0 %v1384, 94
      %v1398 = vpop.permute.xlu0 %1397
      %1399 = vrot.lane.b32.xlu0 %v1385, 94
      %v1400 = vpop.permute.xlu0 %1399
      %1401 = vrot.lane.b32.xlu0 %v1386, 94
      %v1402 = vpop.permute.xlu0 %1401
      %1403 = vrot.lane.b32.xlu0 %v1387, 94
      %v1404 = vpop.permute.xlu0 %1403
      %1405 = vrot.lane.b32.xlu0 %v1388, 94
      %v1406 = vpop.permute.xlu0 %1405
      %vm1407 = vcmask 769024
      %v1408 = vsel %vm1407, %v1396, %v1398
      %v1409 = vsel %vm1407, %v1398, %v1400
      %v1410 = vsel %vm1407, %v1402, %v1404
      %v1411 = vsel %vm1407, %v1404, %v1406
      %1416 = vst [vmem:[#allocation3 + $0x400] sm:$0xff] %v1408
      %1417 = vst [vmem:[#allocation3 + $0x408] sm:$0xff] %v1409
      %1418 = vst [vmem:[#allocation3 + $0x440] sm:$0xff] %v1410
      %1419 = vst [vmem:[#allocation3 + $0x448] sm:$0xff] %v1411
      %v1420 = vld [vmem:[#allocation3] sm:$0xff]
      %v1421 = vld [vmem:[#allocation3 + $0x8] sm:$0xff]
      %v1422 = vld [vmem:[#allocation3 + $0x40] sm:$0xff]
      %v1423 = vld [vmem:[#allocation3 + $0x48] sm:$0xff]
      %v1424 = vld [vmem:[#allocation3 + $0x80] sm:$0xff]
      %v1425 = vld [vmem:[#allocation3 + $0x88] sm:$0xff]
      %v1426 = vld [vmem:[#allocation3 + $0xc0] sm:$0xff]
      %v1427 = vld [vmem:[#allocation3 + $0xc8] sm:$0xff]
      %v1428 = vld [vmem:[#allocation3 + $0x100] sm:$0xff]
      %v1429 = vld [vmem:[#allocation3 + $0x108] sm:$0xff]
      %v1430 = vld [vmem:[#allocation3 + $0x140] sm:$0xff]
      %v1431 = vld [vmem:[#allocation3 + $0x148] sm:$0xff]
      %v1432 = vld [vmem:[#allocation3 + $0x180] sm:$0xff]
      %v1433 = vld [vmem:[#allocation3 + $0x188] sm:$0xff]
      %v1434 = vld [vmem:[#allocation3 + $0x1c0] sm:$0xff]
      %v1435 = vld [vmem:[#allocation3 + $0x1c8] sm:$0xff]
      %v1436 = vld [vmem:[#allocation3 + $0x200] sm:$0xff]
      %v1437 = vld [vmem:[#allocation3 + $0x208] sm:$0xff]
      %v1438 = vld [vmem:[#allocation3 + $0x240] sm:$0xff]
      %v1439 = vld [vmem:[#allocation3 + $0x248] sm:$0xff]
      %v1440 = vld [vmem:[#allocation3 + $0x280] sm:$0xff]
      %v1441 = vld [vmem:[#allocation3 + $0x288] sm:$0xff]
      %v1442 = vld [vmem:[#allocation3 + $0x2c0] sm:$0xff]
      %v1443 = vld [vmem:[#allocation3 + $0x2c8] sm:$0xff]
      %v1444 = vld [vmem:[#allocation3 + $0x300] sm:$0xff]
      %v1445 = vld [vmem:[#allocation3 + $0x308] sm:$0xff]
      %v1446 = vld [vmem:[#allocation3 + $0x340] sm:$0xff]
      %v1447 = vld [vmem:[#allocation3 + $0x348] sm:$0xff]
      %v1448 = vld [vmem:[#allocation3 + $0x380] sm:$0xff]
      %v1449 = vld [vmem:[#allocation3 + $0x388] sm:$0xff]
      %v1450 = vld [vmem:[#allocation3 + $0x3c0] sm:$0xff]
      %v1451 = vld [vmem:[#allocation3 + $0x3c8] sm:$0xff]
      %v1452 = vld [vmem:[#allocation3 + $0x400] sm:$0xff]
      %v1453 = vld [vmem:[#allocation3 + $0x408] sm:$0xff]
      %v1454 = vld [vmem:[#allocation3 + $0x440] sm:$0xff]
      %v1455 = vld [vmem:[#allocation3 + $0x448] sm:$0xff]
      %1457 = vset.pattern.permute.xlu0 0
      %1458 = vperm.xlu0 %1457, %v936
      %v1459 = vpop.permute.xlu0 %1458
      %1462 = vset.pattern.permute.xlu0 0
      %1463 = vperm.xlu0 %1462, %v937
      %v1464 = vpop.permute.xlu0 %1463
      %1467 = vset.pattern.permute.xlu0 0
      %1468 = vperm.xlu0 %1467, %v938
      %v1469 = vpop.permute.xlu0 %1468
      %1472 = vset.pattern.permute.xlu0 0
      %1473 = vperm.xlu0 %1472, %v939
      %v1474 = vpop.permute.xlu0 %1473
      %v1484 = vunpack.c.l.b16 %v928
      %v1485 = vunpack.c.h.b16 %v928
      %v1486 = vunpack.c.l.b16 %v929
      %v1487 = vunpack.c.l.b16 %v930
      %v1488 = vunpack.c.h.b16 %v930
      %v1489 = vunpack.c.l.b16 %v931
      %v1490 = vunpack.c.l.b16 %v932
      %v1491 = vunpack.c.h.b16 %v932
      %v1492 = vunpack.c.l.b16 %v933
      %v1493 = vunpack.c.l.b16 %v934
      %v1494 = vunpack.c.h.b16 %v934
      %v1495 = vunpack.c.l.b16 %v935
      %v1496 = vpack.c.b16 %v1487, %v1484
      %v1497 = vpack.c.b16 %v1488, %v1485
      %v1498 = vpack.c.b16 %v1489, %v1486
      %v1499 = vpack.c.b16 %v1493, %v1490
      %v1500 = vpack.c.b16 %v1494, %v1491
      %v1501 = vpack.c.b16 %v1495, %v1492
      %v1507 = vsel %vm694, %v1498, 0
      %v1510 = vsel %vm694, %v1501, 0
      %1512 = vmatprep.subr.bf16.mxu0 %v1421
      %1513 = vmatpush1.bf16.msra.mxu0 %v1420
      %1514 = vmatprep.subr.bf16.mxu0 %v1423
      %1515 = vmatpush1.bf16.msra.mxu0 %v1422
      %1516 = vmatprep.subr.bf16.mxu0 %v1425
      %1517 = vmatpush1.bf16.msra.mxu0 %v1424
      %1518 = vmatprep.subr.bf16.mxu0 %v1427
      %1519 = vmatpush1.bf16.msra.mxu0 %v1426
      %1520 = vmatprep.subr.bf16.mxu0 %v1429
      %1521 = vmatpush1.bf16.msra.mxu0 %v1428
      %1522 = vmatprep.subr.bf16.mxu0 %v1431
      %1523 = vmatpush1.bf16.msra.mxu0 %v1430
      %1524 = vmatprep.subr.bf16.mxu0 %v1433
      %1525 = vmatpush1.bf16.msra.mxu0 %v1432
      %1526 = vmatprep.subr.bf16.mxu0 %v1435
      %1527 = vmatpush1.bf16.msra.mxu0 %v1434
      %1528 = vmatprep.subr.bf16.mxu0 %v1437
      %1529 = vmatpush1.bf16.msra.mxu0 %v1436
      %1530 = vmatprep.subr.bf16.mxu0 %v1439
      %1531 = vmatpush1.bf16.msra.mxu0 %v1438
      %1532 = vmatprep.subr.bf16.mxu0 %v1441
      %1533 = vmatpush1.bf16.msra.mxu0 %v1440
      %1534 = vmatprep.subr.bf16.mxu0 %v1443
      %1535 = vmatpush1.bf16.msra.mxu0 %v1442
      %1536 = vmatprep.subr.bf16.mxu0 %v1445
      %1537 = vmatpush1.bf16.msra.mxu0 %v1444
      %1538 = vmatprep.subr.bf16.mxu0 %v1447
      %1539 = vmatpush1.bf16.msra.mxu0 %v1446
      %1540 = vmatprep.subr.bf16.mxu0 %v1449
      %1541 = vmatpush1.bf16.msra.mxu0 %v1448
      %1542 = vmatprep.subr.bf16.mxu0 %v1451
      %1543 = vmatpush1.bf16.msra.mxu0 %v1450
      %1544 = vmatprep.mubr.bf16.mxu0 %v1497
      %1545 = vmatmul.mubr.bf16.gmra.mrb[0].mxu0 %v1496
      %v1546 = vpop.f32.mrb[0].mxu0
      %v1547 = vadd.f32 %v1459, %v1546
      %v1548 = vpop.f32.mrb[0].mxu0
      %v1549 = vadd.f32 %v1459, %v1548
      %v1550 = vpop.f32.mrb[0].mxu0
      %v1551 = vadd.f32 %v1464, %v1550
      %v1552 = vpop.f32.mrb[0].mxu0
      %v1553 = vadd.f32 %v1464, %v1552
      %1554 = vmatprep.mubr.bf16.mxu0 %v1500
      %1555 = vmatmul.mubr.bf16.gmra.mrb[0].mxu0 %v1499
      %v1556 = vpop.f32.mrb[0].mxu0
      %v1557 = vadd.f32 %v1469, %v1556
      %v1558 = vpop.f32.mrb[0].mxu0
      %v1559 = vadd.f32 %v1469, %v1558
      %v1560 = vpop.f32.mrb[0].mxu0
      %v1561 = vadd.f32 %v1474, %v1560
      %v1562 = vpop.f32.mrb[0].mxu0
      %v1563 = vadd.f32 %v1474, %v1562
      %1564 = vdwg.mxu0
      %1565 = vmatprep.subr.bf16.mxu0 %v1453
      %1566 = vmatpush1.bf16.msra.mxu0 %v1452
      %1567 = vmatprep.subr.bf16.mxu0 %v1455
      %1568 = vmatpush1.bf16.msra.mxu0 %v1454
      %1569 = vmatprep.subr.bf16.mxu0 0
      %1570 = vmatpush1.bf16.msra.mxu0 0
      %1571 = vmatprep.subr.bf16.mxu0 0
      %1572 = vmatpush1.bf16.msra.mxu0 0
      %1573 = vmatprep.subr.bf16.mxu0 0
      %1574 = vmatpush1.bf16.msra.mxu0 0
      %1575 = vmatprep.subr.bf16.mxu0 0
      %1576 = vmatpush1.bf16.msra.mxu0 0
      %1577 = vmatprep.subr.bf16.mxu0 0
      %1578 = vmatpush1.bf16.msra.mxu0 0
      %1579 = vmatprep.subr.bf16.mxu0 0
      %1580 = vmatpush1.bf16.msra.mxu0 0
      %1581 = vmatprep.subr.bf16.mxu0 0
      %1582 = vmatpush1.bf16.msra.mxu0 0
      %1583 = vmatprep.subr.bf16.mxu0 0
      %1584 = vmatpush1.bf16.msra.mxu0 0
      %1585 = vmatprep.subr.bf16.mxu0 0
      %1586 = vmatpush1.bf16.msra.mxu0 0
      %1587 = vmatprep.subr.bf16.mxu0 0
      %1588 = vmatpush1.bf16.msra.mxu0 0
      %1589 = vmatprep.subr.bf16.mxu0 0
      %1590 = vmatpush1.bf16.msra.mxu0 0
      %1591 = vmatprep.subr.bf16.mxu0 0
      %1592 = vmatpush1.bf16.msra.mxu0 0
      %1593 = vmatprep.subr.bf16.mxu0 0
      %1594 = vmatpush1.bf16.msra.mxu0 0
      %1595 = vmatprep.subr.bf16.mxu0 0
      %1596 = vmatpush1.bf16.msra.mxu0 0
      %1597 = vmatprep.mubr.bf16.mxu0 0
      %1598 = vmatmul.mubr.bf16.gmra.mrb[0].mxu0 %v1507
      %v1599 = vpop.f32.mrb[0].mxu0
      %v1600 = vadd.f32 %v1547, %v1599
      %v1601 = vpop.f32.mrb[0].mxu0
      %v1602 = vadd.f32 %v1549, %v1601
      %v1603 = vpop.f32.mrb[0].mxu0
      %v1604 = vadd.f32 %v1551, %v1603
      %v1605 = vpop.f32.mrb[0].mxu0
      %v1606 = vadd.f32 %v1553, %v1605
      %1607 = vmatprep.mubr.bf16.mxu0 0
      %1608 = vmatmul.mubr.bf16.gmra.mrb[0].mxu0 %v1510
      %v1609 = vpop.f32.mrb[0].mxu0
      %v1610 = vadd.f32 %v1557, %v1609
      %v1611 = vpop.f32.mrb[0].mxu0
      %v1612 = vadd.f32 %v1559, %v1611
      %v1613 = vpop.f32.mrb[0].mxu0
      %v1614 = vadd.f32 %v1561, %v1613
      %v1615 = vpop.f32.mrb[0].mxu0
      %v1616 = vadd.f32 %v1563, %v1615
      %1617 = vdwg.mxu0
      %v1618 = vmax.f32 %v1600, 0.0
      %v1619 = vmax.f32 %v1602, 0.0
      %v1620 = vmax.f32 %v1604, 0.0
      %v1621 = vmax.f32 %v1606, 0.0
      %v1622 = vmax.f32 %v1610, 0.0
      %v1623 = vmax.f32 %v1612, 0.0
      %v1624 = vmax.f32 %v1614, 0.0
      %v1625 = vmax.f32 %v1616, 0.0
      %v1626 = vld [vmem:[%s421] sm:$0xff]
      %v1627 = vld [vmem:[%s421 + $0x8] sm:$0xff]
      %v1628 = vld [vmem:[%s421 + $0x10] sm:$0xff]
      %v1629 = vld [vmem:[%s421 + $0x18] sm:$0xff]
      %v1630 = vld [vmem:[%s421 + $0x20] sm:$0xff]
      %v1631 = vld [vmem:[%s421 + $0x28] sm:$0xff]
      %v1632 = vld [vmem:[%s421 + $0x30] sm:$0xff]
      %v1633 = vld [vmem:[%s421 + $0x38] sm:$0xff]
      %v1634 = vld [vmem:[%s421 + $0x40] sm:$0xff]
      %v1635 = vld [vmem:[%s421 + $0x48] sm:$0xff]
      %v1636 = vld [vmem:[%s421 + $0x50] sm:$0xff]
      %v1637 = vld [vmem:[%s421 + $0x58] sm:$0xff]
      %v1638 = vld [vmem:[%s421 + $0x60] sm:$0xff]
      %v1639 = vld [vmem:[%s421 + $0x68] sm:$0xff]
      %v1640 = vld [vmem:[%s421 + $0x70] sm:$0xff]
      %v1641 = vld [vmem:[%s421 + $0x78] sm:$0xff]
      %v1642 = vld [vmem:[%s421 + $0x80] sm:$0xff]
      %v1643 = vld [vmem:[%s421 + $0x88] sm:$0xff]
      %v1644 = vld [vmem:[%s421 + $0x90] sm:$0xff]
      %v1645 = vld [vmem:[%s421 + $0x98] sm:$0xff]
      %v1646 = vld [vmem:[%s421 + $0xa0] sm:$0xff]
      %v1647 = vld [vmem:[%s421 + $0xa8] sm:$0xff]
      %v1648 = vld [vmem:[%s421 + $0xb0] sm:$0xff]
      %v1649 = vld [vmem:[%s421 + $0xb8] sm:$0xff]
      %v1650 = vld [vmem:[%s421 + $0xc0] sm:$0xff]
      %v1651 = vld [vmem:[%s421 + $0xc8] sm:$0xff]
      %v1652 = vld [vmem:[%s421 + $0xd0] sm:$0xff]
      %v1653 = vld [vmem:[%s421 + $0xd8] sm:$0xff]
      %v1654 = vld [vmem:[%s421 + $0xe0] sm:$0xff]
      %v1655 = vld [vmem:[%s421 + $0xe8] sm:$0xff]
      %v1656 = vld [vmem:[%s421 + $0xf0] sm:$0xff]
      %v1657 = vld [vmem:[%s421 + $0xf8] sm:$0xff]
      %v1658 = vld [vmem:[%s10] sm:$0xff]
      %v1659 = vld [vmem:[%s10 + $0x8] sm:$0xff]
      %v1660 = vld [vmem:[%s10 + $0x10] sm:$0xff]
      %v1661 = vld [vmem:[%s10 + $0x18] sm:$0xff]
      %v1662 = vld [vmem:[%s10 + $0x20] sm:$0xff]
      %v1663 = vld [vmem:[%s10 + $0x28] sm:$0xff]
      %v1664 = vld [vmem:[%s10 + $0x30] sm:$0xff]
      %v1665 = vld [vmem:[%s10 + $0x38] sm:$0xff]
      %v1666 = vld [vmem:[%s10 + $0x40] sm:$0xff]
      %v1667 = vld [vmem:[%s10 + $0x48] sm:$0xff]
      %v1668 = vld [vmem:[%s10 + $0x50] sm:$0xff]
      %v1669 = vld [vmem:[%s10 + $0x58] sm:$0xff]
      %v1670 = vld [vmem:[%s10 + $0x60] sm:$0xff]
      %v1671 = vld [vmem:[%s10 + $0x68] sm:$0xff]
      %v1672 = vld [vmem:[%s10 + $0x70] sm:$0xff]
      %v1673 = vld [vmem:[%s10 + $0x78] sm:$0xff]
      %v1674 = vld [vmem:[%s10 + $0x80] sm:$0xff]
      %v1675 = vld [vmem:[%s10 + $0x88] sm:$0xff]
      %v1676 = vld [vmem:[%s10 + $0x90] sm:$0xff]
      %v1677 = vld [vmem:[%s10 + $0x98] sm:$0xff]
      %v1678 = vld [vmem:[%s10 + $0xa0] sm:$0xff]
      %v1679 = vld [vmem:[%s10 + $0xa8] sm:$0xff]
      %v1680 = vld [vmem:[%s10 + $0xb0] sm:$0xff]
      %v1681 = vld [vmem:[%s10 + $0xb8] sm:$0xff]
      %v1682 = vld [vmem:[%s10 + $0xc0] sm:$0xff]
      %v1683 = vld [vmem:[%s10 + $0xc8] sm:$0xff]
      %v1684 = vld [vmem:[%s10 + $0xd0] sm:$0xff]
      %v1685 = vld [vmem:[%s10 + $0xd8] sm:$0xff]
      %v1686 = vld [vmem:[%s10 + $0xe0] sm:$0xff]
      %v1687 = vld [vmem:[%s10 + $0xe8] sm:$0xff]
      %v1688 = vld [vmem:[%s10 + $0xf0] sm:$0xff]
      %v1689 = vld [vmem:[%s10 + $0xf8] sm:$0xff]
      %v1690 = vld [vmem:[%s10 + $0x100] sm:$0xff]
      %v1691 = vld [vmem:[%s10 + $0x108] sm:$0xff]
      %v1692 = vld [vmem:[%s10 + $0x110] sm:$0xff]
      %v1693 = vld [vmem:[%s10 + $0x118] sm:$0xff]
      %v1694 = vld [vmem:[%s10 + $0x120] sm:$0xff]
      %v1695 = vld [vmem:[%s10 + $0x128] sm:$0xff]
      %v1696 = vld [vmem:[%s10 + $0x130] sm:$0xff]
      %v1697 = vld [vmem:[%s10 + $0x138] sm:$0xff]
      %v1698 = vld [vmem:[%s10 + $0x140] sm:$0xff]
      %v1699 = vld [vmem:[%s10 + $0x148] sm:$0xff]
      %v1700 = vld [vmem:[%s10 + $0x150] sm:$0xff]
      %v1701 = vld [vmem:[%s10 + $0x158] sm:$0xff]
      %v1702 = vld [vmem:[%s10 + $0x160] sm:$0xff]
      %v1703 = vld [vmem:[%s10 + $0x168] sm:$0xff]
      %v1704 = vld [vmem:[%s10 + $0x170] sm:$0xff]
      %v1705 = vld [vmem:[%s10 + $0x178] sm:$0xff]
      %v1706 = vld [vmem:[%s10 + $0x180] sm:$0xff]
      %v1707 = vld [vmem:[%s10 + $0x188] sm:$0xff]
      %v1708 = vld [vmem:[%s10 + $0x190] sm:$0xff]
      %v1709 = vld [vmem:[%s10 + $0x198] sm:$0xff]
      %v1710 = vld [vmem:[%s10 + $0x1a0] sm:$0xff]
      %v1711 = vld [vmem:[%s10 + $0x1a8] sm:$0xff]
      %v1712 = vld [vmem:[%s10 + $0x1b0] sm:$0xff]
      %v1713 = vld [vmem:[%s10 + $0x1b8] sm:$0xff]
      %v1714 = vld [vmem:[%s10 + $0x1c0] sm:$0xff]
      %v1715 = vld [vmem:[%s10 + $0x1c8] sm:$0xff]
      %v1716 = vld [vmem:[%s10 + $0x1d0] sm:$0xff]
      %v1717 = vld [vmem:[%s10 + $0x1d8] sm:$0xff]
      %v1718 = vld [vmem:[%s10 + $0x1e0] sm:$0xff]
      %v1719 = vld [vmem:[%s10 + $0x1e8] sm:$0xff]
      %v1720 = vld [vmem:[%s10 + $0x1f0] sm:$0xff]
      %v1721 = vld [vmem:[%s10 + $0x1f8] sm:$0xff]
      %v1722 = vld [vmem:[%s10 + $0x200] sm:$0xff]
      %v1723 = vld [vmem:[%s10 + $0x208] sm:$0xff]
      %v1724 = vld [vmem:[%s10 + $0x210] sm:$0xff]
      %v1725 = vld [vmem:[%s10 + $0x218] sm:$0xff]
      %v1726 = vld [vmem:[%s10 + $0x220] sm:$0xff]
      %v1727 = vld [vmem:[%s10 + $0x228] sm:$0xff]
      %v1728 = vld [vmem:[%s10 + $0x230] sm:$0xff]
      %v1729 = vld [vmem:[%s10 + $0x238] sm:$0xff]
      %v1730 = vld [vmem:[%s10 + $0x240] sm:$0xff]
      %v1731 = vld [vmem:[%s10 + $0x248] sm:$0xff]
      %v1732 = vld [vmem:[%s10 + $0x250] sm:$0xff]
      %v1733 = vld [vmem:[%s10 + $0x258] sm:$0xff]
      %v1734 = vld [vmem:[%s10 + $0x260] sm:$0xff]
      %v1735 = vld [vmem:[%s10 + $0x268] sm:$0xff]
      %v1736 = vld [vmem:[%s10 + $0x270] sm:$0xff]
      %v1737 = vld [vmem:[%s10 + $0x278] sm:$0xff]
      %v1738 = vld [vmem:[%s10 + $0x280] sm:$0xff]
      %v1739 = vld [vmem:[%s10 + $0x288] sm:$0xff]
      %v1740 = vld [vmem:[%s10 + $0x290] sm:$0xff]
      %v1741 = vld [vmem:[%s10 + $0x298] sm:$0xff]
      %v1742 = vld [vmem:[%s10 + $0x2a0] sm:$0xff]
      %v1743 = vld [vmem:[%s10 + $0x2a8] sm:$0xff]
      %v1744 = vld [vmem:[%s10 + $0x2b0] sm:$0xff]
      %v1745 = vld [vmem:[%s10 + $0x2b8] sm:$0xff]
      %v1746 = vld [vmem:[%s10 + $0x2c0] sm:$0xff]
      %v1747 = vld [vmem:[%s10 + $0x2c8] sm:$0xff]
      %v1748 = vld [vmem:[%s10 + $0x2d0] sm:$0xff]
      %v1749 = vld [vmem:[%s10 + $0x2d8] sm:$0xff]
      %v1750 = vld [vmem:[%s10 + $0x2e0] sm:$0xff]
      %v1751 = vld [vmem:[%s10 + $0x2e8] sm:$0xff]
      %v1752 = vld [vmem:[%s10 + $0x2f0] sm:$0xff]
      %v1753 = vld [vmem:[%s10 + $0x2f8] sm:$0xff]
      %v1754 = vld [vmem:[%s10 + $0x300] sm:$0xff]
      %v1755 = vld [vmem:[%s10 + $0x308] sm:$0xff]
      %v1756 = vld [vmem:[%s10 + $0x310] sm:$0xff]
      %v1757 = vld [vmem:[%s10 + $0x318] sm:$0xff]
      %v1758 = vld [vmem:[%s10 + $0x320] sm:$0xff]
      %v1759 = vld [vmem:[%s10 + $0x328] sm:$0xff]
      %v1760 = vld [vmem:[%s10 + $0x330] sm:$0xff]
      %v1761 = vld [vmem:[%s10 + $0x338] sm:$0xff]
      %v1762 = vld [vmem:[%s10 + $0x340] sm:$0xff]
      %v1763 = vld [vmem:[%s10 + $0x348] sm:$0xff]
      %v1764 = vld [vmem:[%s10 + $0x350] sm:$0xff]
      %v1765 = vld [vmem:[%s10 + $0x358] sm:$0xff]
      %v1766 = vld [vmem:[%s10 + $0x360] sm:$0xff]
      %v1767 = vld [vmem:[%s10 + $0x368] sm:$0xff]
      %v1768 = vld [vmem:[%s10 + $0x370] sm:$0xff]
      %v1769 = vld [vmem:[%s10 + $0x378] sm:$0xff]
      %v1770 = vld [vmem:[%s10 + $0x380] sm:$0xff]
      %v1771 = vld [vmem:[%s10 + $0x388] sm:$0xff]
      %v1772 = vld [vmem:[%s10 + $0x390] sm:$0xff]
      %v1773 = vld [vmem:[%s10 + $0x398] sm:$0xff]
      %v1774 = vld [vmem:[%s10 + $0x3a0] sm:$0xff]
      %v1775 = vld [vmem:[%s10 + $0x3a8] sm:$0xff]
      %v1776 = vld [vmem:[%s10 + $0x3b0] sm:$0xff]
      %v1777 = vld [vmem:[%s10 + $0x3b8] sm:$0xff]
      %v1778 = vld [vmem:[%s10 + $0x3c0] sm:$0xff]
      %v1779 = vld [vmem:[%s10 + $0x3c8] sm:$0xff]
      %v1780 = vld [vmem:[%s10 + $0x3d0] sm:$0xff]
      %v1781 = vld [vmem:[%s10 + $0x3d8] sm:$0xff]
      %v1782 = vld [vmem:[%s10 + $0x3e0] sm:$0xff]
      %v1783 = vld [vmem:[%s10 + $0x3e8] sm:$0xff]
      %v1784 = vld [vmem:[%s10 + $0x3f0] sm:$0xff]
      %v1785 = vld [vmem:[%s10 + $0x3f8] sm:$0xff]
      %v1786 = vpack.c.bf16 %v1620, %v1618
      %v1787 = vpack.c.bf16 %v1621, %v1619
      %v1788 = vpack.c.bf16 %v1624, %v1622
      %v1789 = vpack.c.bf16 %v1625, %v1623
      %v1918 = vunpack.c.l.b16 %v1658
      %v1919 = vunpack.c.h.b16 %v1658
      %v1920 = vunpack.c.l.b16 %v1659
      %v1921 = vunpack.c.h.b16 %v1659
      %v1922 = vunpack.c.l.b16 %v1660
      %v1923 = vunpack.c.h.b16 %v1660
      %v1924 = vunpack.c.l.b16 %v1661
      %v1925 = vunpack.c.h.b16 %v1661
      %v1926 = vunpack.c.l.b16 %v1662
      %v1927 = vunpack.c.h.b16 %v1662
      %v1928 = vunpack.c.l.b16 %v1663
      %v1929 = vunpack.c.h.b16 %v1663
      %v1930 = vunpack.c.l.b16 %v1664
      %v1931 = vunpack.c.h.b16 %v1664
      %v1932 = vunpack.c.l.b16 %v1665
      %v1933 = vunpack.c.h.b16 %v1665
      %v1934 = vunpack.c.l.b16 %v1666
      %v1935 = vunpack.c.h.b16 %v1666
      %v1936 = vunpack.c.l.b16 %v1667
      %v1937 = vunpack.c.h.b16 %v1667
      %v1938 = vunpack.c.l.b16 %v1668
      %v1939 = vunpack.c.h.b16 %v1668
      %v1940 = vunpack.c.l.b16 %v1669
      %v1941 = vunpack.c.h.b16 %v1669
      %v1942 = vunpack.c.l.b16 %v1670
      %v1943 = vunpack.c.h.b16 %v1670
      %v1944 = vunpack.c.l.b16 %v1671
      %v1945 = vunpack.c.h.b16 %v1671
      %v1946 = vunpack.c.l.b16 %v1672
      %v1947 = vunpack.c.h.b16 %v1672
      %v1948 = vunpack.c.l.b16 %v1673
      %v1949 = vunpack.c.h.b16 %v1673
      %v1950 = vunpack.c.l.b16 %v1674
      %v1951 = vunpack.c.h.b16 %v1674
      %v1952 = vunpack.c.l.b16 %v1675
      %v1953 = vunpack.c.h.b16 %v1675
      %v1954 = vunpack.c.l.b16 %v1676
      %v1955 = vunpack.c.h.b16 %v1676
      %v1956 = vunpack.c.l.b16 %v1677
      %v1957 = vunpack.c.h.b16 %v1677
      %v1958 = vunpack.c.l.b16 %v1678
      %v1959 = vunpack.c.h.b16 %v1678
      %v1960 = vunpack.c.l.b16 %v1679
      %v1961 = vunpack.c.h.b16 %v1679
      %v1962 = vunpack.c.l.b16 %v1680
      %v1963 = vunpack.c.h.b16 %v1680
      %v1964 = vunpack.c.l.b16 %v1681
      %v1965 = vunpack.c.h.b16 %v1681
      %v1966 = vunpack.c.l.b16 %v1682
      %v1967 = vunpack.c.h.b16 %v1682
      %v1968 = vunpack.c.l.b16 %v1683
      %v1969 = vunpack.c.h.b16 %v1683
      %v1970 = vunpack.c.l.b16 %v1684
      %v1971 = vunpack.c.h.b16 %v1684
      %v1972 = vunpack.c.l.b16 %v1685
      %v1973 = vunpack.c.h.b16 %v1685
      %v1974 = vunpack.c.l.b16 %v1686
      %v1975 = vunpack.c.h.b16 %v1686
      %v1976 = vunpack.c.l.b16 %v1687
      %v1977 = vunpack.c.h.b16 %v1687
      %v1978 = vunpack.c.l.b16 %v1688
      %v1979 = vunpack.c.h.b16 %v1688
      %v1980 = vunpack.c.l.b16 %v1689
      %v1981 = vunpack.c.h.b16 %v1689
      %v1982 = vunpack.c.l.b16 %v1690
      %v1983 = vunpack.c.h.b16 %v1690
      %v1984 = vunpack.c.l.b16 %v1691
      %v1985 = vunpack.c.h.b16 %v1691
      %v1986 = vunpack.c.l.b16 %v1692
      %v1987 = vunpack.c.h.b16 %v1692
      %v1988 = vunpack.c.l.b16 %v1693
      %v1989 = vunpack.c.h.b16 %v1693
      %v1990 = vunpack.c.l.b16 %v1694
      %v1991 = vunpack.c.h.b16 %v1694
      %v1992 = vunpack.c.l.b16 %v1695
      %v1993 = vunpack.c.h.b16 %v1695
      %v1994 = vunpack.c.l.b16 %v1696
      %v1995 = vunpack.c.h.b16 %v1696
      %v1996 = vunpack.c.l.b16 %v1697
      %v1997 = vunpack.c.h.b16 %v1697
      %v1998 = vunpack.c.l.b16 %v1698
      %v1999 = vunpack.c.h.b16 %v1698
      %v2000 = vunpack.c.l.b16 %v1699
      %v2001 = vunpack.c.h.b16 %v1699
      %v2002 = vunpack.c.l.b16 %v1700
      %v2003 = vunpack.c.h.b16 %v1700
      %v2004 = vunpack.c.l.b16 %v1701
      %v2005 = vunpack.c.h.b16 %v1701
      %v2006 = vunpack.c.l.b16 %v1702
      %v2007 = vunpack.c.h.b16 %v1702
      %v2008 = vunpack.c.l.b16 %v1703
      %v2009 = vunpack.c.h.b16 %v1703
      %v2010 = vunpack.c.l.b16 %v1704
      %v2011 = vunpack.c.h.b16 %v1704
      %v2012 = vunpack.c.l.b16 %v1705
      %v2013 = vunpack.c.h.b16 %v1705
      %v2014 = vunpack.c.l.b16 %v1706
      %v2015 = vunpack.c.h.b16 %v1706
      %v2016 = vunpack.c.l.b16 %v1707
      %v2017 = vunpack.c.h.b16 %v1707
      %v2018 = vunpack.c.l.b16 %v1708
      %v2019 = vunpack.c.h.b16 %v1708
      %v2020 = vunpack.c.l.b16 %v1709
      %v2021 = vunpack.c.h.b16 %v1709
      %v2022 = vunpack.c.l.b16 %v1710
      %v2023 = vunpack.c.h.b16 %v1710
      %v2024 = vunpack.c.l.b16 %v1711
      %v2025 = vunpack.c.h.b16 %v1711
      %v2026 = vunpack.c.l.b16 %v1712
      %v2027 = vunpack.c.h.b16 %v1712
      %v2028 = vunpack.c.l.b16 %v1713
      %v2029 = vunpack.c.h.b16 %v1713
      %v2030 = vunpack.c.l.b16 %v1714
      %v2031 = vunpack.c.h.b16 %v1714
      %v2032 = vunpack.c.l.b16 %v1715
      %v2033 = vunpack.c.h.b16 %v1715
      %v2034 = vunpack.c.l.b16 %v1716
      %v2035 = vunpack.c.h.b16 %v1716
      %v2036 = vunpack.c.l.b16 %v1717
      %v2037 = vunpack.c.h.b16 %v1717
      %v2038 = vunpack.c.l.b16 %v1718
      %v2039 = vunpack.c.h.b16 %v1718
      %v2040 = vunpack.c.l.b16 %v1719
      %v2041 = vunpack.c.h.b16 %v1719
      %v2042 = vunpack.c.l.b16 %v1720
      %v2043 = vunpack.c.h.b16 %v1720
      %v2044 = vunpack.c.l.b16 %v1721
      %v2045 = vunpack.c.h.b16 %v1721
      %v2046 = vunpack.c.l.b16 %v1722
      %v2047 = vunpack.c.h.b16 %v1722
      %v2048 = vunpack.c.l.b16 %v1723
      %v2049 = vunpack.c.h.b16 %v1723
      %v2050 = vunpack.c.l.b16 %v1724
      %v2051 = vunpack.c.h.b16 %v1724
      %v2052 = vunpack.c.l.b16 %v1725
      %v2053 = vunpack.c.h.b16 %v1725
      %v2054 = vunpack.c.l.b16 %v1726
      %v2055 = vunpack.c.h.b16 %v1726
      %v2056 = vunpack.c.l.b16 %v1727
      %v2057 = vunpack.c.h.b16 %v1727
      %v2058 = vunpack.c.l.b16 %v1728
      %v2059 = vunpack.c.h.b16 %v1728
      %v2060 = vunpack.c.l.b16 %v1729
      %v2061 = vunpack.c.h.b16 %v1729
      %v2062 = vunpack.c.l.b16 %v1730
      %v2063 = vunpack.c.h.b16 %v1730
      %v2064 = vunpack.c.l.b16 %v1731
      %v2065 = vunpack.c.h.b16 %v1731
      %v2066 = vunpack.c.l.b16 %v1732
      %v2067 = vunpack.c.h.b16 %v1732
      %v2068 = vunpack.c.l.b16 %v1733
      %v2069 = vunpack.c.h.b16 %v1733
      %v2070 = vunpack.c.l.b16 %v1734
      %v2071 = vunpack.c.h.b16 %v1734
      %v2072 = vunpack.c.l.b16 %v1735
      %v2073 = vunpack.c.h.b16 %v1735
      %v2074 = vunpack.c.l.b16 %v1736
      %v2075 = vunpack.c.h.b16 %v1736
      %v2076 = vunpack.c.l.b16 %v1737
      %v2077 = vunpack.c.h.b16 %v1737
      %v2078 = vunpack.c.l.b16 %v1738
      %v2079 = vunpack.c.h.b16 %v1738
      %v2080 = vunpack.c.l.b16 %v1739
      %v2081 = vunpack.c.h.b16 %v1739
      %v2082 = vunpack.c.l.b16 %v1740
      %v2083 = vunpack.c.h.b16 %v1740
      %v2084 = vunpack.c.l.b16 %v1741
      %v2085 = vunpack.c.h.b16 %v1741
      %v2086 = vunpack.c.l.b16 %v1742
      %v2087 = vunpack.c.h.b16 %v1742
      %v2088 = vunpack.c.l.b16 %v1743
      %v2089 = vunpack.c.h.b16 %v1743
      %v2090 = vunpack.c.l.b16 %v1744
      %v2091 = vunpack.c.h.b16 %v1744
      %v2092 = vunpack.c.l.b16 %v1745
      %v2093 = vunpack.c.h.b16 %v1745
      %v2094 = vunpack.c.l.b16 %v1746
      %v2095 = vunpack.c.h.b16 %v1746
      %v2096 = vunpack.c.l.b16 %v1747
      %v2097 = vunpack.c.h.b16 %v1747
      %v2098 = vunpack.c.l.b16 %v1748
      %v2099 = vunpack.c.h.b16 %v1748
      %v2100 = vunpack.c.l.b16 %v1749
      %v2101 = vunpack.c.h.b16 %v1749
      %v2102 = vunpack.c.l.b16 %v1750
      %v2103 = vunpack.c.h.b16 %v1750
      %v2104 = vunpack.c.l.b16 %v1751
      %v2105 = vunpack.c.h.b16 %v1751
      %v2106 = vunpack.c.l.b16 %v1752
      %v2107 = vunpack.c.h.b16 %v1752
      %v2108 = vunpack.c.l.b16 %v1753
      %v2109 = vunpack.c.h.b16 %v1753
      %v2110 = vunpack.c.l.b16 %v1754
      %v2111 = vunpack.c.h.b16 %v1754
      %v2112 = vunpack.c.l.b16 %v1755
      %v2113 = vunpack.c.h.b16 %v1755
      %v2114 = vunpack.c.l.b16 %v1756
      %v2115 = vunpack.c.h.b16 %v1756
      %v2116 = vunpack.c.l.b16 %v1757
      %v2117 = vunpack.c.h.b16 %v1757
      %v2118 = vunpack.c.l.b16 %v1758
      %v2119 = vunpack.c.h.b16 %v1758
      %v2120 = vunpack.c.l.b16 %v1759
      %v2121 = vunpack.c.h.b16 %v1759
      %v2122 = vunpack.c.l.b16 %v1760
      %v2123 = vunpack.c.h.b16 %v1760
      %v2124 = vunpack.c.l.b16 %v1761
      %v2125 = vunpack.c.h.b16 %v1761
      %v2126 = vunpack.c.l.b16 %v1762
      %v2127 = vunpack.c.h.b16 %v1762
      %v2128 = vunpack.c.l.b16 %v1763
      %v2129 = vunpack.c.h.b16 %v1763
      %v2130 = vunpack.c.l.b16 %v1764
      %v2131 = vunpack.c.h.b16 %v1764
      %v2132 = vunpack.c.l.b16 %v1765
      %v2133 = vunpack.c.h.b16 %v1765
      %v2134 = vunpack.c.l.b16 %v1766
      %v2135 = vunpack.c.h.b16 %v1766
      %v2136 = vunpack.c.l.b16 %v1767
      %v2137 = vunpack.c.h.b16 %v1767
      %v2138 = vunpack.c.l.b16 %v1768
      %v2139 = vunpack.c.h.b16 %v1768
      %v2140 = vunpack.c.l.b16 %v1769
      %v2141 = vunpack.c.h.b16 %v1769
      %v2142 = vunpack.c.l.b16 %v1770
      %v2143 = vunpack.c.h.b16 %v1770
      %v2144 = vunpack.c.l.b16 %v1771
      %v2145 = vunpack.c.h.b16 %v1771
      %v2146 = vunpack.c.l.b16 %v1772
      %v2147 = vunpack.c.h.b16 %v1772
      %v2148 = vunpack.c.l.b16 %v1773
      %v2149 = vunpack.c.h.b16 %v1773
      %v2150 = vunpack.c.l.b16 %v1774
      %v2151 = vunpack.c.h.b16 %v1774
      %v2152 = vunpack.c.l.b16 %v1775
      %v2153 = vunpack.c.h.b16 %v1775
      %v2154 = vunpack.c.l.b16 %v1776
      %v2155 = vunpack.c.h.b16 %v1776
      %v2156 = vunpack.c.l.b16 %v1777
      %v2157 = vunpack.c.h.b16 %v1777
      %v2158 = vunpack.c.l.b16 %v1778
      %v2159 = vunpack.c.h.b16 %v1778
      %v2160 = vunpack.c.l.b16 %v1779
      %v2161 = vunpack.c.h.b16 %v1779
      %v2162 = vunpack.c.l.b16 %v1780
      %v2163 = vunpack.c.h.b16 %v1780
      %v2164 = vunpack.c.l.b16 %v1781
      %v2165 = vunpack.c.h.b16 %v1781
      %v2166 = vunpack.c.l.b16 %v1782
      %v2167 = vunpack.c.h.b16 %v1782
      %v2168 = vunpack.c.l.b16 %v1783
      %v2169 = vunpack.c.h.b16 %v1783
      %v2170 = vunpack.c.l.b16 %v1784
      %v2171 = vunpack.c.h.b16 %v1784
      %v2172 = vunpack.c.l.b16 %v1785
      %v2173 = vunpack.c.h.b16 %v1785
      %v2174 = vpack.c.b16 %v1926, %v1918
      %v2175 = vpack.c.b16 %v1927, %v1919
      %v2176 = vpack.c.b16 %v1928, %v1920
      %v2177 = vpack.c.b16 %v1929, %v1921
      %v2178 = vpack.c.b16 %v1930, %v1922
      %v2179 = vpack.c.b16 %v1931, %v1923
      %v2180 = vpack.c.b16 %v1932, %v1924
      %v2181 = vpack.c.b16 %v1933, %v1925
      %v2182 = vpack.c.b16 %v1942, %v1934
      %v2183 = vpack.c.b16 %v1943, %v1935
      %v2184 = vpack.c.b16 %v1944, %v1936
      %v2185 = vpack.c.b16 %v1945, %v1937
      %v2186 = vpack.c.b16 %v1946, %v1938
      %v2187 = vpack.c.b16 %v1947, %v1939
      %v2188 = vpack.c.b16 %v1948, %v1940
      %v2189 = vpack.c.b16 %v1949, %v1941
      %v2190 = vpack.c.b16 %v1958, %v1950
      %v2191 = vpack.c.b16 %v1959, %v1951
      %v2192 = vpack.c.b16 %v1960, %v1952
      %v2193 = vpack.c.b16 %v1961, %v1953
      %v2194 = vpack.c.b16 %v1962, %v1954
      %v2195 = vpack.c.b16 %v1963, %v1955
      %v2196 = vpack.c.b16 %v1964, %v1956
      %v2197 = vpack.c.b16 %v1965, %v1957
      %v2198 = vpack.c.b16 %v1974, %v1966
      %v2199 = vpack.c.b16 %v1975, %v1967
      %v2200 = vpack.c.b16 %v1976, %v1968
      %v2201 = vpack.c.b16 %v1977, %v1969
      %v2202 = vpack.c.b16 %v1978, %v1970
      %v2203 = vpack.c.b16 %v1979, %v1971
      %v2204 = vpack.c.b16 %v1980, %v1972
      %v2205 = vpack.c.b16 %v1981, %v1973
      %v2206 = vpack.c.b16 %v1990, %v1982
      %v2207 = vpack.c.b16 %v1991, %v1983
      %v2208 = vpack.c.b16 %v1992, %v1984
      %v2209 = vpack.c.b16 %v1993, %v1985
      %v2210 = vpack.c.b16 %v1994, %v1986
      %v2211 = vpack.c.b16 %v1995, %v1987
      %v2212 = vpack.c.b16 %v1996, %v1988
      %v2213 = vpack.c.b16 %v1997, %v1989
      %v2214 = vpack.c.b16 %v2006, %v1998
      %v2215 = vpack.c.b16 %v2007, %v1999
      %v2216 = vpack.c.b16 %v2008, %v2000
      %v2217 = vpack.c.b16 %v2009, %v2001
      %v2218 = vpack.c.b16 %v2010, %v2002
      %v2219 = vpack.c.b16 %v2011, %v2003
      %v2220 = vpack.c.b16 %v2012, %v2004
      %v2221 = vpack.c.b16 %v2013, %v2005
      %v2222 = vpack.c.b16 %v2022, %v2014
      %v2223 = vpack.c.b16 %v2023, %v2015
      %v2224 = vpack.c.b16 %v2024, %v2016
      %v2225 = vpack.c.b16 %v2025, %v2017
      %v2226 = vpack.c.b16 %v2026, %v2018
      %v2227 = vpack.c.b16 %v2027, %v2019
      %v2228 = vpack.c.b16 %v2028, %v2020
      %v2229 = vpack.c.b16 %v2029, %v2021
      %v2230 = vpack.c.b16 %v2038, %v2030
      %v2231 = vpack.c.b16 %v2039, %v2031
      %v2232 = vpack.c.b16 %v2040, %v2032
      %v2233 = vpack.c.b16 %v2041, %v2033
      %v2234 = vpack.c.b16 %v2042, %v2034
      %v2235 = vpack.c.b16 %v2043, %v2035
      %v2236 = vpack.c.b16 %v2044, %v2036
      %v2237 = vpack.c.b16 %v2045, %v2037
      %v2238 = vpack.c.b16 %v2054, %v2046
      %v2239 = vpack.c.b16 %v2055, %v2047
      %v2240 = vpack.c.b16 %v2056, %v2048
      %v2241 = vpack.c.b16 %v2057, %v2049
      %v2242 = vpack.c.b16 %v2058, %v2050
      %v2243 = vpack.c.b16 %v2059, %v2051
      %v2244 = vpack.c.b16 %v2060, %v2052
      %v2245 = vpack.c.b16 %v2061, %v2053
      %v2246 = vpack.c.b16 %v2070, %v2062
      %v2247 = vpack.c.b16 %v2071, %v2063
      %v2248 = vpack.c.b16 %v2072, %v2064
      %v2249 = vpack.c.b16 %v2073, %v2065
      %v2250 = vpack.c.b16 %v2074, %v2066
      %v2251 = vpack.c.b16 %v2075, %v2067
      %v2252 = vpack.c.b16 %v2076, %v2068
      %v2253 = vpack.c.b16 %v2077, %v2069
      %v2254 = vpack.c.b16 %v2086, %v2078
      %v2255 = vpack.c.b16 %v2087, %v2079
      %v2256 = vpack.c.b16 %v2088, %v2080
      %v2257 = vpack.c.b16 %v2089, %v2081
      %v2258 = vpack.c.b16 %v2090, %v2082
      %v2259 = vpack.c.b16 %v2091, %v2083
      %v2260 = vpack.c.b16 %v2092, %v2084
      %v2261 = vpack.c.b16 %v2093, %v2085
      %v2262 = vpack.c.b16 %v2102, %v2094
      %v2263 = vpack.c.b16 %v2103, %v2095
      %v2264 = vpack.c.b16 %v2104, %v2096
      %v2265 = vpack.c.b16 %v2105, %v2097
      %v2266 = vpack.c.b16 %v2106, %v2098
      %v2267 = vpack.c.b16 %v2107, %v2099
      %v2268 = vpack.c.b16 %v2108, %v2100
      %v2269 = vpack.c.b16 %v2109, %v2101
      %v2270 = vpack.c.b16 %v2118, %v2110
      %v2271 = vpack.c.b16 %v2119, %v2111
      %v2272 = vpack.c.b16 %v2120, %v2112
      %v2273 = vpack.c.b16 %v2121, %v2113
      %v2274 = vpack.c.b16 %v2122, %v2114
      %v2275 = vpack.c.b16 %v2123, %v2115
      %v2276 = vpack.c.b16 %v2124, %v2116
      %v2277 = vpack.c.b16 %v2125, %v2117
      %v2278 = vpack.c.b16 %v2134, %v2126
      %v2279 = vpack.c.b16 %v2135, %v2127
      %v2280 = vpack.c.b16 %v2136, %v2128
      %v2281 = vpack.c.b16 %v2137, %v2129
      %v2282 = vpack.c.b16 %v2138, %v2130
      %v2283 = vpack.c.b16 %v2139, %v2131
      %v2284 = vpack.c.b16 %v2140, %v2132
      %v2285 = vpack.c.b16 %v2141, %v2133
      %v2286 = vpack.c.b16 %v2150, %v2142
      %v2287 = vpack.c.b16 %v2151, %v2143
      %v2288 = vpack.c.b16 %v2152, %v2144
      %v2289 = vpack.c.b16 %v2153, %v2145
      %v2290 = vpack.c.b16 %v2154, %v2146
      %v2291 = vpack.c.b16 %v2155, %v2147
      %v2292 = vpack.c.b16 %v2156, %v2148
      %v2293 = vpack.c.b16 %v2157, %v2149
      %v2294 = vpack.c.b16 %v2166, %v2158
      %v2295 = vpack.c.b16 %v2167, %v2159
      %v2296 = vpack.c.b16 %v2168, %v2160
      %v2297 = vpack.c.b16 %v2169, %v2161
      %v2298 = vpack.c.b16 %v2170, %v2162
      %v2299 = vpack.c.b16 %v2171, %v2163
      %v2300 = vpack.c.b16 %v2172, %v2164
      %v2301 = vpack.c.b16 %v2173, %v2165
      %2430 = vmatprep.subr.bf16.mxu0 %v2175
      %2431 = vmatpush1.bf16.msra.mxu0 %v2174
      %2432 = vmatprep.subr.bf16.mxu0 %v2183
      %2433 = vmatpush1.bf16.msra.mxu0 %v2182
      %2434 = vmatprep.subr.bf16.mxu0 %v2191
      %2435 = vmatpush1.bf16.msra.mxu0 %v2190
      %2436 = vmatprep.subr.bf16.mxu0 %v2199
      %2437 = vmatpush1.bf16.msra.mxu0 %v2198
      %2438 = vmatprep.subr.bf16.mxu0 %v2207
      %2439 = vmatpush1.bf16.msra.mxu0 %v2206
      %2440 = vmatprep.subr.bf16.mxu0 %v2215
      %2441 = vmatpush1.bf16.msra.mxu0 %v2214
      %2442 = vmatprep.subr.bf16.mxu0 %v2223
      %2443 = vmatpush1.bf16.msra.mxu0 %v2222
      %2444 = vmatprep.subr.bf16.mxu0 %v2231
      %2445 = vmatpush1.bf16.msra.mxu0 %v2230
      %2446 = vmatprep.subr.bf16.mxu0 %v2239
      %2447 = vmatpush1.bf16.msra.mxu0 %v2238
      %2448 = vmatprep.subr.bf16.mxu0 %v2247
      %2449 = vmatpush1.bf16.msra.mxu0 %v2246
      %2450 = vmatprep.subr.bf16.mxu0 %v2255
      %2451 = vmatpush1.bf16.msra.mxu0 %v2254
      %2452 = vmatprep.subr.bf16.mxu0 %v2263
      %2453 = vmatpush1.bf16.msra.mxu0 %v2262
      %2454 = vmatprep.subr.bf16.mxu0 %v2271
      %2455 = vmatpush1.bf16.msra.mxu0 %v2270
      %2456 = vmatprep.subr.bf16.mxu0 %v2279
      %2457 = vmatpush1.bf16.msra.mxu0 %v2278
      %2458 = vmatprep.subr.bf16.mxu0 %v2287
      %2459 = vmatpush1.bf16.msra.mxu0 %v2286
      %2460 = vmatprep.subr.bf16.mxu0 %v2295
      %2461 = vmatpush1.bf16.msra.mxu0 %v2294
      %2462 = vmatprep.mubr.bf16.mxu0 %v1787
      %2463 = vmatmul.mubr.bf16.gmra.mrb[0].mxu0 %v1786
      %v2464 = vpop.f32.mrb[0].mxu0
      %v2465 = vadd.f32 0.0, %v2464
      %v2466 = vpop.f32.mrb[0].mxu0
      %v2467 = vadd.f32 0.0, %v2466
      %v2468 = vpop.f32.mrb[0].mxu0
      %v2469 = vadd.f32 0.0, %v2468
      %v2470 = vpop.f32.mrb[0].mxu0
      %v2471 = vadd.f32 0.0, %v2470
      %2472 = vmatprep.mubr.bf16.mxu0 %v1789
      %2473 = vmatmul.mubr.bf16.gmra.mrb[0].mxu0 %v1788
      %v2474 = vpop.f32.mrb[0].mxu0
      %v2475 = vadd.f32 0.0, %v2474
      %v2476 = vpop.f32.mrb[0].mxu0
      %v2477 = vadd.f32 0.0, %v2476
      %v2478 = vpop.f32.mrb[0].mxu0
      %v2479 = vadd.f32 0.0, %v2478
      %v2480 = vpop.f32.mrb[0].mxu0
      %v2481 = vadd.f32 0.0, %v2480
      %2482 = vdwg.mxu0
      %2483 = vmatprep.subr.bf16.mxu0 %v2177
      %2484 = vmatpush1.bf16.msra.mxu0 %v2176
      %2485 = vmatprep.subr.bf16.mxu0 %v2185
      %2486 = vmatpush1.bf16.msra.mxu0 %v2184
      %2487 = vmatprep.subr.bf16.mxu0 %v2193
      %2488 = vmatpush1.bf16.msra.mxu0 %v2192
      %2489 = vmatprep.subr.bf16.mxu0 %v2201
      %2490 = vmatpush1.bf16.msra.mxu0 %v2200
      %2491 = vmatprep.subr.bf16.mxu0 %v2209
      %2492 = vmatpush1.bf16.msra.mxu0 %v2208
      %2493 = vmatprep.subr.bf16.mxu0 %v2217
      %2494 = vmatpush1.bf16.msra.mxu0 %v2216
      %2495 = vmatprep.subr.bf16.mxu0 %v2225
      %2496 = vmatpush1.bf16.msra.mxu0 %v2224
      %2497 = vmatprep.subr.bf16.mxu0 %v2233
      %2498 = vmatpush1.bf16.msra.mxu0 %v2232
      %2499 = vmatprep.subr.bf16.mxu0 %v2241
      %2500 = vmatpush1.bf16.msra.mxu0 %v2240
      %2501 = vmatprep.subr.bf16.mxu0 %v2249
      %2502 = vmatpush1.bf16.msra.mxu0 %v2248
      %2503 = vmatprep.subr.bf16.mxu0 %v2257
      %2504 = vmatpush1.bf16.msra.mxu0 %v2256
      %2505 = vmatprep.subr.bf16.mxu0 %v2265
      %2506 = vmatpush1.bf16.msra.mxu0 %v2264
      %2507 = vmatprep.subr.bf16.mxu0 %v2273
      %2508 = vmatpush1.bf16.msra.mxu0 %v2272
      %2509 = vmatprep.subr.bf16.mxu0 %v2281
      %2510 = vmatpush1.bf16.msra.mxu0 %v2280
      %2511 = vmatprep.subr.bf16.mxu0 %v2289
      %2512 = vmatpush1.bf16.msra.mxu0 %v2288
      %2513 = vmatprep.subr.bf16.mxu0 %v2297
      %2514 = vmatpush1.bf16.msra.mxu0 %v2296
      %2515 = vmatprep.mubr.bf16.mxu0 %v1787
      %2516 = vmatmul.mubr.bf16.gmra.mrb[0].mxu0 %v1786
      %v2517 = vpop.f32.mrb[0].mxu0
      %v2518 = vadd.f32 0.0, %v2517
      %v2519 = vpop.f32.mrb[0].mxu0
      %v2520 = vadd.f32 0.0, %v2519
      %v2521 = vpop.f32.mrb[0].mxu0
      %v2522 = vadd.f32 0.0, %v2521
      %v2523 = vpop.f32.mrb[0].mxu0
      %v2524 = vadd.f32 0.0, %v2523
      %2525 = vmatprep.mubr.bf16.mxu0 %v1789
      %2526 = vmatmul.mubr.bf16.gmra.mrb[0].mxu0 %v1788
      %v2527 = vpop.f32.mrb[0].mxu0
      %v2528 = vadd.f32 0.0, %v2527
      %v2529 = vpop.f32.mrb[0].mxu0
      %v2530 = vadd.f32 0.0, %v2529
      %v2531 = vpop.f32.mrb[0].mxu0
      %v2532 = vadd.f32 0.0, %v2531
      %v2533 = vpop.f32.mrb[0].mxu0
      %v2534 = vadd.f32 0.0, %v2533
      %2535 = vdwg.mxu0
      %2536 = vmatprep.subr.bf16.mxu0 %v2179
      %2537 = vmatpush1.bf16.msra.mxu0 %v2178
      %2538 = vmatprep.subr.bf16.mxu0 %v2187
      %2539 = vmatpush1.bf16.msra.mxu0 %v2186
      %2540 = vmatprep.subr.bf16.mxu0 %v2195
      %2541 = vmatpush1.bf16.msra.mxu0 %v2194
      %2542 = vmatprep.subr.bf16.mxu0 %v2203
      %2543 = vmatpush1.bf16.msra.mxu0 %v2202
      %2544 = vmatprep.subr.bf16.mxu0 %v2211
      %2545 = vmatpush1.bf16.msra.mxu0 %v2210
      %2546 = vmatprep.subr.bf16.mxu0 %v2219
      %2547 = vmatpush1.bf16.msra.mxu0 %v2218
      %2548 = vmatprep.subr.bf16.mxu0 %v2227
      %2549 = vmatpush1.bf16.msra.mxu0 %v2226
      %2550 = vmatprep.subr.bf16.mxu0 %v2235
      %2551 = vmatpush1.bf16.msra.mxu0 %v2234
      %2552 = vmatprep.subr.bf16.mxu0 %v2243
      %2553 = vmatpush1.bf16.msra.mxu0 %v2242
      %2554 = vmatprep.subr.bf16.mxu0 %v2251
      %2555 = vmatpush1.bf16.msra.mxu0 %v2250
      %2556 = vmatprep.subr.bf16.mxu0 %v2259
      %2557 = vmatpush1.bf16.msra.mxu0 %v2258
      %2558 = vmatprep.subr.bf16.mxu0 %v2267
      %2559 = vmatpush1.bf16.msra.mxu0 %v2266
      %2560 = vmatprep.subr.bf16.mxu0 %v2275
      %2561 = vmatpush1.bf16.msra.mxu0 %v2274
      %2562 = vmatprep.subr.bf16.mxu0 %v2283
      %2563 = vmatpush1.bf16.msra.mxu0 %v2282
      %2564 = vmatprep.subr.bf16.mxu0 %v2291
      %2565 = vmatpush1.bf16.msra.mxu0 %v2290
      %2566 = vmatprep.subr.bf16.mxu0 %v2299
      %2567 = vmatpush1.bf16.msra.mxu0 %v2298
      %2568 = vmatprep.mubr.bf16.mxu0 %v1787
      %2569 = vmatmul.mubr.bf16.gmra.mrb[0].mxu0 %v1786
      %v2570 = vpop.f32.mrb[0].mxu0
      %v2571 = vadd.f32 0.0, %v2570
      %v2572 = vpop.f32.mrb[0].mxu0
      %v2573 = vadd.f32 0.0, %v2572
      %v2574 = vpop.f32.mrb[0].mxu0
      %v2575 = vadd.f32 0.0, %v2574
      %v2576 = vpop.f32.mrb[0].mxu0
      %v2577 = vadd.f32 0.0, %v2576
      %2578 = vmatprep.mubr.bf16.mxu0 %v1789
      %2579 = vmatmul.mubr.bf16.gmra.mrb[0].mxu0 %v1788
      %v2580 = vpop.f32.mrb[0].mxu0
      %v2581 = vadd.f32 0.0, %v2580
      %v2582 = vpop.f32.mrb[0].mxu0
      %v2583 = vadd.f32 0.0, %v2582
      %v2584 = vpop.f32.mrb[0].mxu0
      %v2585 = vadd.f32 0.0, %v2584
      %v2586 = vpop.f32.mrb[0].mxu0
      %v2587 = vadd.f32 0.0, %v2586
      %2588 = vdwg.mxu0
      %2589 = vmatprep.subr.bf16.mxu0 %v2181
      %2590 = vmatpush1.bf16.msra.mxu0 %v2180
      %2591 = vmatprep.subr.bf16.mxu0 %v2189
      %2592 = vmatpush1.bf16.msra.mxu0 %v2188
      %2593 = vmatprep.subr.bf16.mxu0 %v2197
      %2594 = vmatpush1.bf16.msra.mxu0 %v2196
      %2595 = vmatprep.subr.bf16.mxu0 %v2205
      %2596 = vmatpush1.bf16.msra.mxu0 %v2204
      %2597 = vmatprep.subr.bf16.mxu0 %v2213
      %2598 = vmatpush1.bf16.msra.mxu0 %v2212
      %2599 = vmatprep.subr.bf16.mxu0 %v2221
      %2600 = vmatpush1.bf16.msra.mxu0 %v2220
      %2601 = vmatprep.subr.bf16.mxu0 %v2229
      %2602 = vmatpush1.bf16.msra.mxu0 %v2228
      %2603 = vmatprep.subr.bf16.mxu0 %v2237
      %2604 = vmatpush1.bf16.msra.mxu0 %v2236
      %2605 = vmatprep.subr.bf16.mxu0 %v2245
      %2606 = vmatpush1.bf16.msra.mxu0 %v2244
      %2607 = vmatprep.subr.bf16.mxu0 %v2253
      %2608 = vmatpush1.bf16.msra.mxu0 %v2252
      %2609 = vmatprep.subr.bf16.mxu0 %v2261
      %2610 = vmatpush1.bf16.msra.mxu0 %v2260
      %2611 = vmatprep.subr.bf16.mxu0 %v2269
      %2612 = vmatpush1.bf16.msra.mxu0 %v2268
      %2613 = vmatprep.subr.bf16.mxu0 %v2277
      %2614 = vmatpush1.bf16.msra.mxu0 %v2276
      %2615 = vmatprep.subr.bf16.mxu0 %v2285
      %2616 = vmatpush1.bf16.msra.mxu0 %v2284
      %2617 = vmatprep.subr.bf16.mxu0 %v2293
      %2618 = vmatpush1.bf16.msra.mxu0 %v2292
      %2619 = vmatprep.subr.bf16.mxu0 %v2301
      %2620 = vmatpush1.bf16.msra.mxu0 %v2300
      %2621 = vmatprep.mubr.bf16.mxu0 %v1787
      %2622 = vmatmul.mubr.bf16.gmra.mrb[0].mxu0 %v1786
      %v2623 = vpop.f32.mrb[0].mxu0
      %v2624 = vadd.f32 0.0, %v2623
      %v2625 = vpop.f32.mrb[0].mxu0
      %v2626 = vadd.f32 0.0, %v2625
      %v2627 = vpop.f32.mrb[0].mxu0
      %v2628 = vadd.f32 0.0, %v2627
      %v2629 = vpop.f32.mrb[0].mxu0
      %v2630 = vadd.f32 0.0, %v2629
      %2631 = vmatprep.mubr.bf16.mxu0 %v1789
      %2632 = vmatmul.mubr.bf16.gmra.mrb[0].mxu0 %v1788
      %v2633 = vpop.f32.mrb[0].mxu0
      %v2634 = vadd.f32 0.0, %v2633
      %v2635 = vpop.f32.mrb[0].mxu0
      %v2636 = vadd.f32 0.0, %v2635
      %v2637 = vpop.f32.mrb[0].mxu0
      %v2638 = vadd.f32 0.0, %v2637
      %v2639 = vpop.f32.mrb[0].mxu0
      %v2640 = vadd.f32 0.0, %v2639
      %2641 = vdwg.mxu0
      %v2642 = vadd.f32 %v1626, %v2465
      %v2643 = vadd.f32 %v1627, %v2467
      %v2644 = vadd.f32 %v1628, %v2518
      %v2645 = vadd.f32 %v1629, %v2520
      %v2646 = vadd.f32 %v1630, %v2571
      %v2647 = vadd.f32 %v1631, %v2573
      %v2648 = vadd.f32 %v1632, %v2624
      %v2649 = vadd.f32 %v1633, %v2626
      %v2650 = vadd.f32 %v1634, %v2469
      %v2651 = vadd.f32 %v1635, %v2471
      %v2652 = vadd.f32 %v1636, %v2522
      %v2653 = vadd.f32 %v1637, %v2524
      %v2654 = vadd.f32 %v1638, %v2575
      %v2655 = vadd.f32 %v1639, %v2577
      %v2656 = vadd.f32 %v1640, %v2628
      %v2657 = vadd.f32 %v1641, %v2630
      %v2658 = vadd.f32 %v1642, %v2475
      %v2659 = vadd.f32 %v1643, %v2477
      %v2660 = vadd.f32 %v1644, %v2528
      %v2661 = vadd.f32 %v1645, %v2530
      %v2662 = vadd.f32 %v1646, %v2581
      %v2663 = vadd.f32 %v1647, %v2583
      %v2664 = vadd.f32 %v1648, %v2634
      %v2665 = vadd.f32 %v1649, %v2636
      %v2666 = vadd.f32 %v1650, %v2479
      %v2667 = vadd.f32 %v1651, %v2481
      %v2668 = vadd.f32 %v1652, %v2532
      %v2669 = vadd.f32 %v1653, %v2534
      %v2670 = vadd.f32 %v1654, %v2585
      %v2671 = vadd.f32 %v1655, %v2587
      %v2672 = vadd.f32 %v1656, %v2638
      %v2673 = vadd.f32 %v1657, %v2640
      %v2674 = vld [vmem:[%s5] sm:$0xff]
      %v2675 = vld [vmem:[%s5 + $0x8] sm:$0xf]
      %v2676 = vld [vmem:[%s5 + $0xc] sm:$0xff]
      %v2677 = vld [vmem:[%s5 + $0x14] sm:$0xf]
      %v2678 = vld [vmem:[%s5 + $0x18] sm:$0xff]
      %v2679 = vld [vmem:[%s5 + $0x20] sm:$0xf]
      %v2680 = vld [vmem:[%s5 + $0x24] sm:$0xff]
      %v2681 = vld [vmem:[%s5 + $0x2c] sm:$0xf]
      %v2682 = vld [vmem:[%s8] sm:$0xff]
      %v2683 = vld [vmem:[%s8 + $0x8] sm:$0xff]
      %v2684 = vld [vmem:[%s8 + $0x10] sm:$0xff]
      %v2685 = vld [vmem:[%s8 + $0x18] sm:$0xff]
      %vm2686 = vcmask 269312
      %2687 = vst.msk [vmem:[#allocation2] sm:$0xff] %vm2686, 0
      %2688 = vst.msk [vmem:[#allocation2 + $0x48] sm:$0xff] %vm2686, 0
      %vm2689 = vcmask 539912
      %2690 = vst.msk [vmem:[#allocation2 + $0x40] sm:$0xff] %vm2689, 0
      %2691 = vst.msk [vmem:[#allocation2 + $0x88] sm:$0xff] %vm2689, 0
      %v2692 = vpack.c.bf16 %v2650, %v2642
      %v2693 = vpack.c.bf16 %v2651, %v2643
      %v2694 = vpack.c.bf16 %v2652, %v2644
      %v2695 = vpack.c.bf16 %v2653, %v2645
      %v2696 = vpack.c.bf16 %v2654, %v2646
      %v2697 = vpack.c.bf16 %v2655, %v2647
      %v2698 = vpack.c.bf16 %v2656, %v2648
      %v2699 = vpack.c.bf16 %v2657, %v2649
      %v2700 = vpack.c.bf16 %v2666, %v2658
      %v2701 = vpack.c.bf16 %v2667, %v2659
      %v2702 = vpack.c.bf16 %v2668, %v2660
      %v2703 = vpack.c.bf16 %v2669, %v2661
      %v2704 = vpack.c.bf16 %v2670, %v2662
      %v2705 = vpack.c.bf16 %v2671, %v2663
      %v2706 = vpack.c.bf16 %v2672, %v2664
      %v2707 = vpack.c.bf16 %v2673, %v2665
      %2724 = vrot.lane.b32.xlu0 %v2692, 33
      %v2725 = vpop.permute.xlu0 %2724
      %2726 = vrot.lane.b32.xlu0 %v2693, 33
      %v2727 = vpop.permute.xlu0 %2726
      %2728 = vrot.lane.b32.xlu0 %v2694, 33
      %v2729 = vpop.permute.xlu0 %2728
      %2730 = vrot.lane.b32.xlu0 %v2695, 33
      %v2731 = vpop.permute.xlu0 %2730
      %2732 = vrot.lane.b32.xlu0 %v2696, 33
      %v2733 = vpop.permute.xlu0 %2732
      %2734 = vrot.lane.b32.xlu0 %v2697, 33
      %v2735 = vpop.permute.xlu0 %2734
      %2736 = vrot.lane.b32.xlu0 %v2698, 33
      %v2737 = vpop.permute.xlu0 %2736
      %2738 = vrot.lane.b32.xlu0 %v2699, 33
      %v2739 = vpop.permute.xlu0 %2738
      %2740 = vrot.lane.b32.xlu0 %v2700, 33
      %v2741 = vpop.permute.xlu0 %2740
      %2742 = vrot.lane.b32.xlu0 %v2701, 33
      %v2743 = vpop.permute.xlu0 %2742
      %2744 = vrot.lane.b32.xlu0 %v2702, 33
      %v2745 = vpop.permute.xlu0 %2744
      %2746 = vrot.lane.b32.xlu0 %v2703, 33
      %v2747 = vpop.permute.xlu0 %2746
      %2748 = vrot.lane.b32.xlu0 %v2704, 33
      %v2749 = vpop.permute.xlu0 %2748
      %2750 = vrot.lane.b32.xlu0 %v2705, 33
      %v2751 = vpop.permute.xlu0 %2750
      %2752 = vrot.lane.b32.xlu0 %v2706, 33
      %v2753 = vpop.permute.xlu0 %2752
      %2754 = vrot.lane.b32.xlu0 %v2707, 33
      %v2755 = vpop.permute.xlu0 %2754
      %vm2756 = vcmask 269312
      %v2757 = vsel %vm2756, %v2725, %v2727
      %v2758 = vsel %vm2756, %v2727, %v2729
      %v2759 = vsel %vm2756, %v2729, %v2731
      %v2760 = vsel %vm2756, %v2731, %v2733
      %v2761 = vsel %vm2756, %v2733, %v2735
      %v2762 = vsel %vm2756, %v2735, %v2737
      %v2763 = vsel %vm2756, %v2737, %v2739
      %v2764 = vsel %vm2756, %v2741, %v2743
      %v2765 = vsel %vm2756, %v2743, %v2745
      %v2766 = vsel %vm2756, %v2745, %v2747
      %v2767 = vsel %vm2756, %v2747, %v2749
      %v2768 = vsel %vm2756, %v2749, %v2751
      %v2769 = vsel %vm2756, %v2751, %v2753
      %v2770 = vsel %vm2756, %v2753, %v2755
      %vm2789 = vcmask 1047816
      %2790 = vst.msk [vmem:[#allocation2] sm:$0xff] %vm2789, %v2725
      %2791 = vst [vmem:[#allocation2 + $0x8] sm:$0xff] %v2757
      %2792 = vst [vmem:[#allocation2 + $0x10] sm:$0xff] %v2758
      %2793 = vst [vmem:[#allocation2 + $0x18] sm:$0xff] %v2759
      %2794 = vst [vmem:[#allocation2 + $0x20] sm:$0xff] %v2760
      %2795 = vst [vmem:[#allocation2 + $0x28] sm:$0xff] %v2761
      %2796 = vst [vmem:[#allocation2 + $0x30] sm:$0xff] %v2762
      %2797 = vst [vmem:[#allocation2 + $0x38] sm:$0xff] %v2763
      %2798 = vst.msk [vmem:[#allocation2 + $0x40] sm:$0xff] %vm2686, %v2739
      %2799 = vst.msk [vmem:[#allocation2 + $0x48] sm:$0xff] %vm2789, %v2741
      %2800 = vst [vmem:[#allocation2 + $0x50] sm:$0xff] %v2764
      %2801 = vst [vmem:[#allocation2 + $0x58] sm:$0xff] %v2765
      %2802 = vst [vmem:[#allocation2 + $0x60] sm:$0xff] %v2766
      %2803 = vst [vmem:[#allocation2 + $0x68] sm:$0xff] %v2767
      %2804 = vst [vmem:[#allocation2 + $0x70] sm:$0xff] %v2768
      %2805 = vst [vmem:[#allocation2 + $0x78] sm:$0xff] %v2769
      %2806 = vst [vmem:[#allocation2 + $0x80] sm:$0xff] %v2770
      %2807 = vst.msk [vmem:[#allocation2 + $0x88] sm:$0xff] %vm2686, %v2755
      %v2808 = vadd.s32 %v466, 256
      %v2809 = vadd.s32 %v466, 384
      %v2810 = vadd.s32 %v466, 512
      %v2811 = vadd.s32 %v466, 640
      %v2812 = vadd.s32 %v466, 768
      %v2813 = vadd.s32 %v466, 896
      %vm2814 = vcmp.lt.s32.totalorder %v466, 0
      %v2815 = vsub.s32 0, %v466
      %v2816 = vsel %vm2814, %v2815, %v466
      %v2817 = vshrl.u32 %v2816, 5
      %v2818 = vand.u32 %v2816, 31
      %v2819 = vsub.s32 0, %v2818
      %v2820 = vsel %vm2814, %v2819, %v2818
      %vm2821 = vcmp.lt.s32.totalorder %v978, 0
      %v2822 = vsub.s32 0, %v978
      %v2823 = vsel %vm2821, %v2822, %v978
      %v2824 = vshrl.u32 %v2823, 5
      %v2825 = vand.u32 %v2823, 31
      %v2826 = vsub.s32 0, %v2825
      %v2827 = vsel %vm2821, %v2826, %v2825
      %vm2828 = vcmp.lt.s32.totalorder %v2808, 0
      %v2829 = vsub.s32 0, %v2808
      %v2830 = vsel %vm2828, %v2829, %v2808
      %v2831 = vshrl.u32 %v2830, 5
      %v2832 = vand.u32 %v2830, 31
      %v2833 = vsub.s32 0, %v2832
      %v2834 = vsel %vm2828, %v2833, %v2832
      %vm2835 = vcmp.lt.s32.totalorder %v2809, 0
      %v2836 = vsub.s32 0, %v2809
      %v2837 = vsel %vm2835, %v2836, %v2809
      %v2838 = vshrl.u32 %v2837, 5
      %v2839 = vand.u32 %v2837, 31
      %v2840 = vsub.s32 0, %v2839
      %v2841 = vsel %vm2835, %v2840, %v2839
      %vm2842 = vcmp.lt.s32.totalorder %v2810, 0
      %v2843 = vsub.s32 0, %v2810
      %v2844 = vsel %vm2842, %v2843, %v2810
      %v2845 = vshrl.u32 %v2844, 5
      %v2846 = vand.u32 %v2844, 31
      %v2847 = vsub.s32 0, %v2846
      %v2848 = vsel %vm2842, %v2847, %v2846
      %vm2849 = vcmp.lt.s32.totalorder %v2811, 0
      %v2850 = vsub.s32 0, %v2811
      %v2851 = vsel %vm2849, %v2850, %v2811
      %v2852 = vshrl.u32 %v2851, 5
      %v2853 = vand.u32 %v2851, 31
      %v2854 = vsub.s32 0, %v2853
      %v2855 = vsel %vm2849, %v2854, %v2853
      %vm2856 = vcmp.lt.s32.totalorder %v2812, 0
      %v2857 = vsub.s32 0, %v2812
      %v2858 = vsel %vm2856, %v2857, %v2812
      %v2859 = vshrl.u32 %v2858, 5
      %v2860 = vand.u32 %v2858, 31
      %v2861 = vsub.s32 0, %v2860
      %v2862 = vsel %vm2856, %v2861, %v2860
      %vm2863 = vcmp.lt.s32.totalorder %v2813, 0
      %v2864 = vsub.s32 0, %v2813
      %v2865 = vsel %vm2863, %v2864, %v2813
      %v2866 = vshrl.u32 %v2865, 5
      %v2867 = vand.u32 %v2865, 31
      %v2868 = vsub.s32 0, %v2867
      %v2869 = vsel %vm2863, %v2868, %v2867
      %vm2870 = vcmp.ne.s32.totalorder %v2820, 0
      %vm2871 = vcmp.ne.s32.totalorder %v2827, 0
      %vm2872 = vcmp.ne.s32.totalorder %v2834, 0
      %vm2873 = vcmp.ne.s32.totalorder %v2841, 0
      %vm2874 = vcmp.ne.s32.totalorder %v2848, 0
      %vm2875 = vcmp.ne.s32.totalorder %v2855, 0
      %vm2876 = vcmp.ne.s32.totalorder %v2862, 0
      %vm2877 = vcmp.ne.s32.totalorder %v2869, 0
      %vm2878 = vcmp.lt.s32.totalorder %v2820, 0
      %vm2879 = vcmp.lt.s32.totalorder %v2827, 0
      %vm2880 = vcmp.lt.s32.totalorder %v2834, 0
      %vm2881 = vcmp.lt.s32.totalorder %v2841, 0
      %vm2882 = vcmp.lt.s32.totalorder %v2848, 0
      %vm2883 = vcmp.lt.s32.totalorder %v2855, 0
      %vm2884 = vcmp.lt.s32.totalorder %v2862, 0
      %vm2885 = vcmp.lt.s32.totalorder %v2869, 0
      %vm2886 = vmand %vm2878, %vm2870
      %vm2887 = vmand %vm2879, %vm2871
      %vm2888 = vmand %vm2880, %vm2872
      %vm2889 = vmand %vm2881, %vm2873
      %vm2890 = vmand %vm2882, %vm2874
      %vm2891 = vmand %vm2883, %vm2875
      %vm2892 = vmand %vm2884, %vm2876
      %vm2893 = vmand %vm2885, %vm2877
      %v2894 = vadd.s32 %v2820, 32
      %v2895 = vadd.s32 %v2827, 32
      %v2896 = vadd.s32 %v2834, 32
      %v2897 = vadd.s32 %v2841, 32
      %v2898 = vadd.s32 %v2848, 32
      %v2899 = vadd.s32 %v2855, 32
      %v2900 = vadd.s32 %v2862, 32
      %v2901 = vadd.s32 %v2869, 32
      %v2902 = vsel %vm2886, %v2894, %v2820
      %v2903 = vsel %vm2887, %v2895, %v2827
      %v2904 = vsel %vm2888, %v2896, %v2834
      %v2905 = vsel %vm2889, %v2897, %v2841
      %v2906 = vsel %vm2890, %v2898, %v2848
      %v2907 = vsel %vm2891, %v2899, %v2855
      %v2908 = vsel %vm2892, %v2900, %v2862
      %v2909 = vsel %vm2893, %v2901, %v2869
      %vm2910 = vcmp.ne.s32.totalorder %v2902, 0
      %vm2911 = vcmp.ne.s32.totalorder %v2903, 0
      %vm2912 = vcmp.ne.s32.totalorder %v2904, 0
      %vm2913 = vcmp.ne.s32.totalorder %v2905, 0
      %vm2914 = vcmp.ne.s32.totalorder %v2906, 0
      %vm2915 = vcmp.ne.s32.totalorder %v2907, 0
      %vm2916 = vcmp.ne.s32.totalorder %v2908, 0
      %vm2917 = vcmp.ne.s32.totalorder %v2909, 0
      %vm2918 = vcmp.ne.s32.totalorder %v2902, 31
      %vm2919 = vcmp.ne.s32.totalorder %v2903, 31
      %vm2920 = vcmp.ne.s32.totalorder %v2904, 31
      %vm2921 = vcmp.ne.s32.totalorder %v2905, 31
      %vm2922 = vcmp.ne.s32.totalorder %v2906, 31
      %vm2923 = vcmp.ne.s32.totalorder %v2907, 31
      %vm2924 = vcmp.ne.s32.totalorder %v2908, 31
      %vm2925 = vcmp.ne.s32.totalorder %v2909, 31
      %v2926 = vld [vmem:[#allocation2] sm:$0xff]
      %v2927 = vld [vmem:[#allocation2 + $0x8] sm:$0xff]
      %v2928 = vld [vmem:[#allocation2 + $0x10] sm:$0xff]
      %v2929 = vld [vmem:[#allocation2 + $0x18] sm:$0xff]
      %v2930 = vld [vmem:[#allocation2 + $0x20] sm:$0xff]
      %v2931 = vld [vmem:[#allocation2 + $0x28] sm:$0xff]
      %v2932 = vld [vmem:[#allocation2 + $0x30] sm:$0xff]
      %v2933 = vld [vmem:[#allocation2 + $0x38] sm:$0xff]
      %v2934 = vld [vmem:[#allocation2 + $0x48] sm:$0xff]
      %v2935 = vld [vmem:[#allocation2 + $0x50] sm:$0xff]
      %v2936 = vld [vmem:[#allocation2 + $0x58] sm:$0xff]
      %v2937 = vld [vmem:[#allocation2 + $0x60] sm:$0xff]
      %v2938 = vld [vmem:[#allocation2 + $0x68] sm:$0xff]
      %v2939 = vld [vmem:[#allocation2 + $0x70] sm:$0xff]
      %v2940 = vld [vmem:[#allocation2 + $0x78] sm:$0xff]
      %v2941 = vld [vmem:[#allocation2 + $0x80] sm:$0xff]
      %v2942 = vsel %vm2910, 1, 0
      %v2943 = vsel %vm2911, 1, 0
      %v2944 = vsel %vm2912, 1, 0
      %v2945 = vsel %vm2913, 1, 0
      %v2946 = vsel %vm2914, 1, 0
      %v2947 = vsel %vm2915, 1, 0
      %v2948 = vsel %vm2916, 1, 0
      %v2949 = vsel %vm2917, 1, 0
      %vm2950 = vcmp.eq.s32.totalorder %v2942, 1
      %vm2951 = vcmp.eq.s32.totalorder %v2943, 1
      %vm2952 = vcmp.eq.s32.totalorder %v2944, 1
      %vm2953 = vcmp.eq.s32.totalorder %v2945, 1
      %vm2954 = vcmp.eq.s32.totalorder %v2946, 1
      %vm2955 = vcmp.eq.s32.totalorder %v2947, 1
      %vm2956 = vcmp.eq.s32.totalorder %v2948, 1
      %vm2957 = vcmp.eq.s32.totalorder %v2949, 1
      %vm2958 = vmpackc.low %vm2951, %vm2950
      %vm2959 = vmpackc.low %vm2953, %vm2952
      %vm2960 = vmpackc.low %vm2955, %vm2954
      %vm2961 = vmpackc.low %vm2957, %vm2956
      %v2962 = vsel %vm2958, 65537, 0
      %v2963 = vsel %vm2959, 65537, 0
      %v2964 = vsel %vm2960, 65537, 0
      %v2965 = vsel %vm2961, 65537, 0
      %v2966 = vlaneseq
      %v2967 = vshrl.u32 %v2966, 7
      %v2968 = vsub.s32 0, %v2967
      %v2969 = vrot.slane %v2962, %v2968
      %v2970 = vlaneseq
      %v2971 = vshrl.u32 %v2970, 7
      %v2972 = vsub.s32 4, %v2971
      %v2973 = vrot.slane %v2962, %v2972
      %v2974 = vlaneseq
      %v2975 = vshrl.u32 %v2974, 7
      %v2976 = vsub.s32 0, %v2975
      %v2977 = vrot.slane %v2963, %v2976
      %v2978 = vlaneseq
      %v2979 = vshrl.u32 %v2978, 7
      %v2980 = vsub.s32 4, %v2979
      %v2981 = vrot.slane %v2963, %v2980
      %v2982 = vlaneseq
      %v2983 = vshrl.u32 %v2982, 7
      %v2984 = vsub.s32 0, %v2983
      %v2985 = vrot.slane %v2964, %v2984
      %v2986 = vlaneseq
      %v2987 = vshrl.u32 %v2986, 7
      %v2988 = vsub.s32 4, %v2987
      %v2989 = vrot.slane %v2964, %v2988
      %v2990 = vlaneseq
      %v2991 = vshrl.u32 %v2990, 7
      %v2992 = vsub.s32 0, %v2991
      %v2993 = vrot.slane %v2965, %v2992
      %v2994 = vlaneseq
      %v2995 = vshrl.u32 %v2994, 7
      %v2996 = vsub.s32 4, %v2995
      %v2997 = vrot.slane %v2965, %v2996
      %vm2998 = vcmp.ne.s16.totalorder %v2969, 0
      %vm2999 = vcmp.ne.s16.totalorder %v2973, 0
      %vm3000 = vcmp.ne.s16.totalorder %v2977, 0
      %vm3001 = vcmp.ne.s16.totalorder %v2981, 0
      %vm3002 = vcmp.ne.s16.totalorder %v2985, 0
      %vm3003 = vcmp.ne.s16.totalorder %v2989, 0
      %vm3004 = vcmp.ne.s16.totalorder %v2993, 0
      %vm3005 = vcmp.ne.s16.totalorder %v2997, 0
      %v3006 = vsel %vm2998, %v2926, 0
      %v3007 = vsel %vm2999, %v2927, 0
      %v3008 = vsel %vm3000, %v2928, 0
      %v3009 = vsel %vm3001, %v2929, 0
      %v3010 = vsel %vm3002, %v2930, 0
      %v3011 = vsel %vm3003, %v2931, 0
      %v3012 = vsel %vm3004, %v2932, 0
      %v3013 = vsel %vm3005, %v2933, 0
      %v3014 = vsel %vm2998, %v2934, 0
      %v3015 = vsel %vm2999, %v2935, 0
      %v3016 = vsel %vm3000, %v2936, 0
      %v3017 = vsel %vm3001, %v2937, 0
      %v3018 = vsel %vm3002, %v2938, 0
      %v3019 = vsel %vm3003, %v2939, 0
      %v3020 = vsel %vm3004, %v2940, 0
      %v3021 = vsel %vm3005, %v2941, 0
      %3022 = vst [vmem:[#allocation3] sm:$0xff] %v3006
      %3023 = vst [vmem:[#allocation3 + $0x8] sm:$0xff] %v3007
      %3024 = vst [vmem:[#allocation3 + $0x10] sm:$0xff] %v3008
      %3025 = vst [vmem:[#allocation3 + $0x18] sm:$0xff] %v3009
      %3026 = vst [vmem:[#allocation3 + $0x20] sm:$0xff] %v3010
      %3027 = vst [vmem:[#allocation3 + $0x28] sm:$0xff] %v3011
      %3028 = vst [vmem:[#allocation3 + $0x30] sm:$0xff] %v3012
      %3029 = vst [vmem:[#allocation3 + $0x38] sm:$0xff] %v3013
      %3030 = vst [vmem:[#allocation3 + $0x40] sm:$0xff] %v3014
      %3031 = vst [vmem:[#allocation3 + $0x48] sm:$0xff] %v3015
      %3032 = vst [vmem:[#allocation3 + $0x50] sm:$0xff] %v3016
      %3033 = vst [vmem:[#allocation3 + $0x58] sm:$0xff] %v3017
      %3034 = vst [vmem:[#allocation3 + $0x60] sm:$0xff] %v3018
      %3035 = vst [vmem:[#allocation3 + $0x68] sm:$0xff] %v3019
      %3036 = vst [vmem:[#allocation3 + $0x70] sm:$0xff] %v3020
      %3037 = vst [vmem:[#allocation3 + $0x78] sm:$0xff] %v3021
      %v3038 = vld [vmem:[#allocation2] sm:$0xff]
      %v3039 = vld [vmem:[#allocation2 + $0x8] sm:$0xff]
      %v3040 = vld [vmem:[#allocation2 + $0x10] sm:$0xff]
      %v3041 = vld [vmem:[#allocation2 + $0x18] sm:$0xff]
      %v3042 = vld [vmem:[#allocation2 + $0x20] sm:$0xff]
      %v3043 = vld [vmem:[#allocation2 + $0x28] sm:$0xff]
      %v3044 = vld [vmem:[#allocation2 + $0x30] sm:$0xff]
      %v3045 = vld [vmem:[#allocation2 + $0x38] sm:$0xff]
      %v3046 = vld [vmem:[#allocation2 + $0x40] sm:$0xff]
      %v3047 = vld [vmem:[#allocation2 + $0x48] sm:$0xff]
      %v3048 = vld [vmem:[#allocation2 + $0x50] sm:$0xff]
      %v3049 = vld [vmem:[#allocation2 + $0x58] sm:$0xff]
      %v3050 = vld [vmem:[#allocation2 + $0x60] sm:$0xff]
      %v3051 = vld [vmem:[#allocation2 + $0x68] sm:$0xff]
      %v3052 = vld [vmem:[#allocation2 + $0x70] sm:$0xff]
      %v3053 = vld [vmem:[#allocation2 + $0x78] sm:$0xff]
      %v3054 = vld [vmem:[#allocation2 + $0x80] sm:$0xff]
      %v3055 = vld [vmem:[#allocation2 + $0x88] sm:$0xff]
      %3074 = vrot.lane.b32.xlu0 %v3038, 127
      %v3075 = vpop.permute.xlu0 %3074
      %3076 = vrot.lane.b32.xlu0 %v3039, 127
      %v3077 = vpop.permute.xlu0 %3076
      %3078 = vrot.lane.b32.xlu0 %v3040, 127
      %v3079 = vpop.permute.xlu0 %3078
      %3080 = vrot.lane.b32.xlu0 %v3041, 127
      %v3081 = vpop.permute.xlu0 %3080
      %3082 = vrot.lane.b32.xlu0 %v3042, 127
      %v3083 = vpop.permute.xlu0 %3082
      %3084 = vrot.lane.b32.xlu0 %v3043, 127
      %v3085 = vpop.permute.xlu0 %3084
      %3086 = vrot.lane.b32.xlu0 %v3044, 127
      %v3087 = vpop.permute.xlu0 %3086
      %3088 = vrot.lane.b32.xlu0 %v3045, 127
      %v3089 = vpop.permute.xlu0 %3088
      %3090 = vrot.lane.b32.xlu0 %v3046, 127
      %v3091 = vpop.permute.xlu0 %3090
      %3092 = vrot.lane.b32.xlu0 %v3047, 127
      %v3093 = vpop.permute.xlu0 %3092
      %3094 = vrot.lane.b32.xlu0 %v3048, 127
      %v3095 = vpop.permute.xlu0 %3094
      %3096 = vrot.lane.b32.xlu0 %v3049, 127
      %v3097 = vpop.permute.xlu0 %3096
      %3098 = vrot.lane.b32.xlu0 %v3050, 127
      %v3099 = vpop.permute.xlu0 %3098
      %3100 = vrot.lane.b32.xlu0 %v3051, 127
      %v3101 = vpop.permute.xlu0 %3100
      %3102 = vrot.lane.b32.xlu0 %v3052, 127
      %v3103 = vpop.permute.xlu0 %3102
      %3104 = vrot.lane.b32.xlu0 %v3053, 127
      %v3105 = vpop.permute.xlu0 %3104
      %3106 = vrot.lane.b32.xlu0 %v3054, 127
      %v3107 = vpop.permute.xlu0 %3106
      %3108 = vrot.lane.b32.xlu0 %v3055, 127
      %v3109 = vpop.permute.xlu0 %3108
      %v3110 = vsel %vm1059, %v3075, %v3077
      %v3111 = vsel %vm1059, %v3077, %v3079
      %v3112 = vsel %vm1059, %v3079, %v3081
      %v3113 = vsel %vm1059, %v3081, %v3083
      %v3114 = vsel %vm1059, %v3083, %v3085
      %v3115 = vsel %vm1059, %v3085, %v3087
      %v3116 = vsel %vm1059, %v3087, %v3089
      %v3117 = vsel %vm1059, %v3089, %v3091
      %v3118 = vsel %vm1059, %v3093, %v3095
      %v3119 = vsel %vm1059, %v3095, %v3097
      %v3120 = vsel %vm1059, %v3097, %v3099
      %v3121 = vsel %vm1059, %v3099, %v3101
      %v3122 = vsel %vm1059, %v3101, %v3103
      %v3123 = vsel %vm1059, %v3103, %v3105
      %v3124 = vsel %vm1059, %v3105, %v3107
      %v3125 = vsel %vm1059, %v3107, %v3109
      %3142 = vst [vmem:[#allocation3 + $0x80] sm:$0xff] %v3110
      %3143 = vst [vmem:[#allocation3 + $0x88] sm:$0xff] %v3111
      %3144 = vst [vmem:[#allocation3 + $0x90] sm:$0xff] %v3112
      %3145 = vst [vmem:[#allocation3 + $0x98] sm:$0xff] %v3113
      %3146 = vst [vmem:[#allocation3 + $0xa0] sm:$0xff] %v3114
      %3147 = vst [vmem:[#allocation3 + $0xa8] sm:$0xff] %v3115
      %3148 = vst [vmem:[#allocation3 + $0xb0] sm:$0xff] %v3116
      %3149 = vst [vmem:[#allocation3 + $0xb8] sm:$0xff] %v3117
      %3150 = vst [vmem:[#allocation3 + $0xc0] sm:$0xff] %v3118
      %3151 = vst [vmem:[#allocation3 + $0xc8] sm:$0xff] %v3119
      %3152 = vst [vmem:[#allocation3 + $0xd0] sm:$0xff] %v3120
      %3153 = vst [vmem:[#allocation3 + $0xd8] sm:$0xff] %v3121
      %3154 = vst [vmem:[#allocation3 + $0xe0] sm:$0xff] %v3122
      %3155 = vst [vmem:[#allocation3 + $0xe8] sm:$0xff] %v3123
      %3156 = vst [vmem:[#allocation3 + $0xf0] sm:$0xff] %v3124
      %3157 = vst [vmem:[#allocation3 + $0xf8] sm:$0xff] %v3125
      %v3158 = vld [vmem:[#allocation2] sm:$0xff]
      %v3159 = vld [vmem:[#allocation2 + $0x8] sm:$0xff]
      %v3160 = vld [vmem:[#allocation2 + $0x10] sm:$0xff]
      %v3161 = vld [vmem:[#allocation2 + $0x18] sm:$0xff]
      %v3162 = vld [vmem:[#allocation2 + $0x20] sm:$0xff]
      %v3163 = vld [vmem:[#allocation2 + $0x28] sm:$0xff]
      %v3164 = vld [vmem:[#allocation2 + $0x30] sm:$0xff]
      %v3165 = vld [vmem:[#allocation2 + $0x38] sm:$0xff]
      %v3166 = vld [vmem:[#allocation2 + $0x40] sm:$0xff]
      %v3167 = vld [vmem:[#allocation2 + $0x48] sm:$0xff]
      %v3168 = vld [vmem:[#allocation2 + $0x50] sm:$0xff]
      %v3169 = vld [vmem:[#allocation2 + $0x58] sm:$0xff]
      %v3170 = vld [vmem:[#allocation2 + $0x60] sm:$0xff]
      %v3171 = vld [vmem:[#allocation2 + $0x68] sm:$0xff]
      %v3172 = vld [vmem:[#allocation2 + $0x70] sm:$0xff]
      %v3173 = vld [vmem:[#allocation2 + $0x78] sm:$0xff]
      %v3174 = vld [vmem:[#allocation2 + $0x80] sm:$0xff]
      %v3175 = vld [vmem:[#allocation2 + $0x88] sm:$0xff]
      %v3176 = vsel %vm2918, 1, 0
      %v3177 = vsel %vm2919, 1, 0
      %v3178 = vsel %vm2920, 1, 0
      %v3179 = vsel %vm2921, 1, 0
      %v3180 = vsel %vm2922, 1, 0
      %v3181 = vsel %vm2923, 1, 0
      %v3182 = vsel %vm2924, 1, 0
      %v3183 = vsel %vm2925, 1, 0
      %vm3184 = vcmp.eq.s32.totalorder %v3176, 1
      %vm3185 = vcmp.eq.s32.totalorder %v3177, 1
      %vm3186 = vcmp.eq.s32.totalorder %v3178, 1
      %vm3187 = vcmp.eq.s32.totalorder %v3179, 1
      %vm3188 = vcmp.eq.s32.totalorder %v3180, 1
      %vm3189 = vcmp.eq.s32.totalorder %v3181, 1
      %vm3190 = vcmp.eq.s32.totalorder %v3182, 1
      %vm3191 = vcmp.eq.s32.totalorder %v3183, 1
      %vm3192 = vmpackc.low %vm3185, %vm3184
      %vm3193 = vmpackc.low %vm3187, %vm3186
      %vm3194 = vmpackc.low %vm3189, %vm3188
      %vm3195 = vmpackc.low %vm3191, %vm3190
      %v3196 = vsel %vm3192, 65537, 0
      %v3197 = vsel %vm3193, 65537, 0
      %v3198 = vsel %vm3194, 65537, 0
      %v3199 = vsel %vm3195, 65537, 0
      %v3200 = vlaneseq
      %v3201 = vshrl.u32 %v3200, 7
      %v3202 = vsub.s32 0, %v3201
      %v3203 = vrot.slane %v3196, %v3202
      %v3204 = vlaneseq
      %v3205 = vshrl.u32 %v3204, 7
      %v3206 = vsub.s32 4, %v3205
      %v3207 = vrot.slane %v3196, %v3206
      %v3208 = vlaneseq
      %v3209 = vshrl.u32 %v3208, 7
      %v3210 = vsub.s32 0, %v3209
      %v3211 = vrot.slane %v3197, %v3210
      %v3212 = vlaneseq
      %v3213 = vshrl.u32 %v3212, 7
      %v3214 = vsub.s32 4, %v3213
      %v3215 = vrot.slane %v3197, %v3214
      %v3216 = vlaneseq
      %v3217 = vshrl.u32 %v3216, 7
      %v3218 = vsub.s32 0, %v3217
      %v3219 = vrot.slane %v3198, %v3218
      %v3220 = vlaneseq
      %v3221 = vshrl.u32 %v3220, 7
      %v3222 = vsub.s32 4, %v3221
      %v3223 = vrot.slane %v3198, %v3222
      %v3224 = vlaneseq
      %v3225 = vshrl.u32 %v3224, 7
      %v3226 = vsub.s32 0, %v3225
      %v3227 = vrot.slane %v3199, %v3226
      %v3228 = vlaneseq
      %v3229 = vshrl.u32 %v3228, 7
      %v3230 = vsub.s32 4, %v3229
      %v3231 = vrot.slane %v3199, %v3230
      %3232 = vrot.lane.b32.xlu0 %v3203, 2
      %v3233 = vpop.permute.xlu0 %3232
      %3234 = vrot.lane.b32.xlu0 %v3207, 2
      %v3235 = vpop.permute.xlu0 %3234
      %3236 = vrot.lane.b32.xlu0 %v3211, 2
      %v3237 = vpop.permute.xlu0 %3236
      %3238 = vrot.lane.b32.xlu0 %v3215, 2
      %v3239 = vpop.permute.xlu0 %3238
      %3240 = vrot.lane.b32.xlu0 %v3219, 2
      %v3241 = vpop.permute.xlu0 %3240
      %3242 = vrot.lane.b32.xlu0 %v3223, 2
      %v3243 = vpop.permute.xlu0 %3242
      %3244 = vrot.lane.b32.xlu0 %v3227, 2
      %v3245 = vpop.permute.xlu0 %3244
      %3246 = vrot.lane.b32.xlu0 %v3231, 2
      %v3247 = vpop.permute.xlu0 %3246
      %v3248 = vsel %vm1096, %v3233, %v3235
      %v3249 = vsel %vm1096, %v3235, %v3237
      %v3250 = vsel %vm1096, %v3237, %v3239
      %v3251 = vsel %vm1096, %v3239, %v3241
      %v3252 = vsel %vm1096, %v3241, %v3243
      %v3253 = vsel %vm1096, %v3243, %v3245
      %v3254 = vsel %vm1096, %v3245, %v3247
      %vm3255 = vcmp.ne.s16.totalorder %v3233, 0
      %vm3256 = vcmp.ne.s16.totalorder %v3248, 0
      %vm3257 = vcmp.ne.s16.totalorder %v3249, 0
      %vm3258 = vcmp.ne.s16.totalorder %v3250, 0
      %vm3259 = vcmp.ne.s16.totalorder %v3251, 0
      %vm3260 = vcmp.ne.s16.totalorder %v3252, 0
      %vm3261 = vcmp.ne.s16.totalorder %v3253, 0
      %vm3262 = vcmp.ne.s16.totalorder %v3254, 0
      %vm3263 = vcmp.ne.s16.totalorder %v3247, 0
      %v3264 = vsel %vm3255, %v3158, 0
      %v3265 = vsel %vm3256, %v3159, 0
      %v3266 = vsel %vm3257, %v3160, 0
      %v3267 = vsel %vm3258, %v3161, 0
      %v3268 = vsel %vm3259, %v3162, 0
      %v3269 = vsel %vm3260, %v3163, 0
      %v3270 = vsel %vm3261, %v3164, 0
      %v3271 = vsel %vm3262, %v3165, 0
      %v3272 = vsel %vm3263, %v3166, 0
      %v3273 = vsel %vm3255, %v3167, 0
      %v3274 = vsel %vm3256, %v3168, 0
      %v3275 = vsel %vm3257, %v3169, 0
      %v3276 = vsel %vm3258, %v3170, 0
      %v3277 = vsel %vm3259, %v3171, 0
      %v3278 = vsel %vm3260, %v3172, 0
      %v3279 = vsel %vm3261, %v3173, 0
      %v3280 = vsel %vm3262, %v3174, 0
      %v3281 = vsel %vm3263, %v3175, 0
      %3300 = vrot.lane.b32.xlu0 %v3264, 126
      %v3301 = vpop.permute.xlu0 %3300
      %3302 = vrot.lane.b32.xlu0 %v3265, 126
      %v3303 = vpop.permute.xlu0 %3302
      %3304 = vrot.lane.b32.xlu0 %v3266, 126
      %v3305 = vpop.permute.xlu0 %3304
      %3306 = vrot.lane.b32.xlu0 %v3267, 126
      %v3307 = vpop.permute.xlu0 %3306
      %3308 = vrot.lane.b32.xlu0 %v3268, 126
      %v3309 = vpop.permute.xlu0 %3308
      %3310 = vrot.lane.b32.xlu0 %v3269, 126
      %v3311 = vpop.permute.xlu0 %3310
      %3312 = vrot.lane.b32.xlu0 %v3270, 126
      %v3313 = vpop.permute.xlu0 %3312
      %3314 = vrot.lane.b32.xlu0 %v3271, 126
      %v3315 = vpop.permute.xlu0 %3314
      %3316 = vrot.lane.b32.xlu0 %v3272, 126
      %v3317 = vpop.permute.xlu0 %3316
      %3318 = vrot.lane.b32.xlu0 %v3273, 126
      %v3319 = vpop.permute.xlu0 %3318
      %3320 = vrot.lane.b32.xlu0 %v3274, 126
      %v3321 = vpop.permute.xlu0 %3320
      %3322 = vrot.lane.b32.xlu0 %v3275, 126
      %v3323 = vpop.permute.xlu0 %3322
      %3324 = vrot.lane.b32.xlu0 %v3276, 126
      %v3325 = vpop.permute.xlu0 %3324
      %3326 = vrot.lane.b32.xlu0 %v3277, 126
      %v3327 = vpop.permute.xlu0 %3326
      %3328 = vrot.lane.b32.xlu0 %v3278, 126
      %v3329 = vpop.permute.xlu0 %3328
      %3330 = vrot.lane.b32.xlu0 %v3279, 126
      %v3331 = vpop.permute.xlu0 %3330
      %3332 = vrot.lane.b32.xlu0 %v3280, 126
      %v3333 = vpop.permute.xlu0 %3332
      %3334 = vrot.lane.b32.xlu0 %v3281, 126
      %v3335 = vpop.permute.xlu0 %3334
      %v3336 = vsel %vm1125, %v3301, %v3303
      %v3337 = vsel %vm1125, %v3303, %v3305
      %v3338 = vsel %vm1125, %v3305, %v3307
      %v3339 = vsel %vm1125, %v3307, %v3309
      %v3340 = vsel %vm1125, %v3309, %v3311
      %v3341 = vsel %vm1125, %v3311, %v3313
      %v3342 = vsel %vm1125, %v3313, %v3315
      %v3343 = vsel %vm1125, %v3315, %v3317
      %v3344 = vsel %vm1125, %v3319, %v3321
      %v3345 = vsel %vm1125, %v3321, %v3323
      %v3346 = vsel %vm1125, %v3323, %v3325
      %v3347 = vsel %vm1125, %v3325, %v3327
      %v3348 = vsel %vm1125, %v3327, %v3329
      %v3349 = vsel %vm1125, %v3329, %v3331
      %v3350 = vsel %vm1125, %v3331, %v3333
      %v3351 = vsel %vm1125, %v3333, %v3335
      %3368 = vst [vmem:[#allocation3 + $0x100] sm:$0xff] %v3336
      %3369 = vst [vmem:[#allocation3 + $0x108] sm:$0xff] %v3337
      %3370 = vst [vmem:[#allocation3 + $0x110] sm:$0xff] %v3338
      %3371 = vst [vmem:[#allocation3 + $0x118] sm:$0xff] %v3339
      %3372 = vst [vmem:[#allocation3 + $0x120] sm:$0xff] %v3340
      %3373 = vst [vmem:[#allocation3 + $0x128] sm:$0xff] %v3341
      %3374 = vst [vmem:[#allocation3 + $0x130] sm:$0xff] %v3342
      %3375 = vst [vmem:[#allocation3 + $0x138] sm:$0xff] %v3343
      %3376 = vst [vmem:[#allocation3 + $0x140] sm:$0xff] %v3344
      %3377 = vst [vmem:[#allocation3 + $0x148] sm:$0xff] %v3345
      %3378 = vst [vmem:[#allocation3 + $0x150] sm:$0xff] %v3346
      %3379 = vst [vmem:[#allocation3 + $0x158] sm:$0xff] %v3347
      %3380 = vst [vmem:[#allocation3 + $0x160] sm:$0xff] %v3348
      %3381 = vst [vmem:[#allocation3 + $0x168] sm:$0xff] %v3349
      %3382 = vst [vmem:[#allocation3 + $0x170] sm:$0xff] %v3350
      %3383 = vst [vmem:[#allocation3 + $0x178] sm:$0xff] %v3351
      %v3384 = vld [vmem:[#allocation2] sm:$0xff]
      %v3385 = vld [vmem:[#allocation2 + $0x8] sm:$0xff]
      %v3386 = vld [vmem:[#allocation2 + $0x10] sm:$0xff]
      %v3387 = vld [vmem:[#allocation2 + $0x18] sm:$0xff]
      %v3388 = vld [vmem:[#allocation2 + $0x20] sm:$0xff]
      %v3389 = vld [vmem:[#allocation2 + $0x28] sm:$0xff]
      %v3390 = vld [vmem:[#allocation2 + $0x30] sm:$0xff]
      %v3391 = vld [vmem:[#allocation2 + $0x38] sm:$0xff]
      %v3392 = vld [vmem:[#allocation2 + $0x40] sm:$0xff]
      %v3393 = vld [vmem:[#allocation2 + $0x48] sm:$0xff]
      %v3394 = vld [vmem:[#allocation2 + $0x50] sm:$0xff]
      %v3395 = vld [vmem:[#allocation2 + $0x58] sm:$0xff]
      %v3396 = vld [vmem:[#allocation2 + $0x60] sm:$0xff]
      %v3397 = vld [vmem:[#allocation2 + $0x68] sm:$0xff]
      %v3398 = vld [vmem:[#allocation2 + $0x70] sm:$0xff]
      %v3399 = vld [vmem:[#allocation2 + $0x78] sm:$0xff]
      %v3400 = vld [vmem:[#allocation2 + $0x80] sm:$0xff]
      %v3401 = vld [vmem:[#allocation2 + $0x88] sm:$0xff]
      %3402 = vrot.lane.b32.xlu0 %v2969, 32
      %v3403 = vpop.permute.xlu0 %3402
      %3404 = vrot.lane.b32.xlu0 %v2973, 32
      %v3405 = vpop.permute.xlu0 %3404
      %3406 = vrot.lane.b32.xlu0 %v2977, 32
      %v3407 = vpop.permute.xlu0 %3406
      %3408 = vrot.lane.b32.xlu0 %v2981, 32
      %v3409 = vpop.permute.xlu0 %3408
      %3410 = vrot.lane.b32.xlu0 %v2985, 32
      %v3411 = vpop.permute.xlu0 %3410
      %3412 = vrot.lane.b32.xlu0 %v2989, 32
      %v3413 = vpop.permute.xlu0 %3412
      %3414 = vrot.lane.b32.xlu0 %v2993, 32
      %v3415 = vpop.permute.xlu0 %3414
      %3416 = vrot.lane.b32.xlu0 %v2997, 32
      %v3417 = vpop.permute.xlu0 %3416
      %v3418 = vsel %vm1289, %v3403, %v3405
      %v3419 = vsel %vm1289, %v3405, %v3407
      %v3420 = vsel %vm1289, %v3407, %v3409
      %v3421 = vsel %vm1289, %v3409, %v3411
      %v3422 = vsel %vm1289, %v3411, %v3413
      %v3423 = vsel %vm1289, %v3413, %v3415
      %v3424 = vsel %vm1289, %v3415, %v3417
      %vm3425 = vcmp.ne.s16.totalorder %v3403, 0
      %vm3426 = vcmp.ne.s16.totalorder %v3418, 0
      %vm3427 = vcmp.ne.s16.totalorder %v3419, 0
      %vm3428 = vcmp.ne.s16.totalorder %v3420, 0
      %vm3429 = vcmp.ne.s16.totalorder %v3421, 0
      %vm3430 = vcmp.ne.s16.totalorder %v3422, 0
      %vm3431 = vcmp.ne.s16.totalorder %v3423, 0
      %vm3432 = vcmp.ne.s16.totalorder %v3424, 0
      %vm3433 = vcmp.ne.s16.totalorder %v3417, 0
      %v3434 = vsel %vm3425, %v3384, 0
      %v3435 = vsel %vm3426, %v3385, 0
      %v3436 = vsel %vm3427, %v3386, 0
      %v3437 = vsel %vm3428, %v3387, 0
      %v3438 = vsel %vm3429, %v3388, 0
      %v3439 = vsel %vm3430, %v3389, 0
      %v3440 = vsel %vm3431, %v3390, 0
      %v3441 = vsel %vm3432, %v3391, 0
      %v3442 = vsel %vm3433, %v3392, 0
      %v3443 = vsel %vm3425, %v3393, 0
      %v3444 = vsel %vm3426, %v3394, 0
      %v3445 = vsel %vm3427, %v3395, 0
      %v3446 = vsel %vm3428, %v3396, 0
      %v3447 = vsel %vm3429, %v3397, 0
      %v3448 = vsel %vm3430, %v3398, 0
      %v3449 = vsel %vm3431, %v3399, 0
      %v3450 = vsel %vm3432, %v3400, 0
      %v3451 = vsel %vm3433, %v3401, 0
      %3470 = vrot.lane.b32.xlu0 %v3434, 96
      %v3471 = vpop.permute.xlu0 %3470
      %3472 = vrot.lane.b32.xlu0 %v3435, 96
      %v3473 = vpop.permute.xlu0 %3472
      %3474 = vrot.lane.b32.xlu0 %v3436, 96
      %v3475 = vpop.permute.xlu0 %3474
      %3476 = vrot.lane.b32.xlu0 %v3437, 96
      %v3477 = vpop.permute.xlu0 %3476
      %3478 = vrot.lane.b32.xlu0 %v3438, 96
      %v3479 = vpop.permute.xlu0 %3478
      %3480 = vrot.lane.b32.xlu0 %v3439, 96
      %v3481 = vpop.permute.xlu0 %3480
      %3482 = vrot.lane.b32.xlu0 %v3440, 96
      %v3483 = vpop.permute.xlu0 %3482
      %3484 = vrot.lane.b32.xlu0 %v3441, 96
      %v3485 = vpop.permute.xlu0 %3484
      %3486 = vrot.lane.b32.xlu0 %v3442, 96
      %v3487 = vpop.permute.xlu0 %3486
      %3488 = vrot.lane.b32.xlu0 %v3443, 96
      %v3489 = vpop.permute.xlu0 %3488
      %3490 = vrot.lane.b32.xlu0 %v3444, 96
      %v3491 = vpop.permute.xlu0 %3490
      %3492 = vrot.lane.b32.xlu0 %v3445, 96
      %v3493 = vpop.permute.xlu0 %3492
      %3494 = vrot.lane.b32.xlu0 %v3446, 96
      %v3495 = vpop.permute.xlu0 %3494
      %3496 = vrot.lane.b32.xlu0 %v3447, 96
      %v3497 = vpop.permute.xlu0 %3496
      %3498 = vrot.lane.b32.xlu0 %v3448, 96
      %v3499 = vpop.permute.xlu0 %3498
      %3500 = vrot.lane.b32.xlu0 %v3449, 96
      %v3501 = vpop.permute.xlu0 %3500
      %3502 = vrot.lane.b32.xlu0 %v3450, 96
      %v3503 = vpop.permute.xlu0 %3502
      %3504 = vrot.lane.b32.xlu0 %v3451, 96
      %v3505 = vpop.permute.xlu0 %3504
      %v3506 = vsel %vm1318, %v3471, %v3473
      %v3507 = vsel %vm1318, %v3473, %v3475
      %v3508 = vsel %vm1318, %v3475, %v3477
      %v3509 = vsel %vm1318, %v3477, %v3479
      %v3510 = vsel %vm1318, %v3479, %v3481
      %v3511 = vsel %vm1318, %v3481, %v3483
      %v3512 = vsel %vm1318, %v3483, %v3485
      %v3513 = vsel %vm1318, %v3485, %v3487
      %v3514 = vsel %vm1318, %v3489, %v3491
      %v3515 = vsel %vm1318, %v3491, %v3493
      %v3516 = vsel %vm1318, %v3493, %v3495
      %v3517 = vsel %vm1318, %v3495, %v3497
      %v3518 = vsel %vm1318, %v3497, %v3499
      %v3519 = vsel %vm1318, %v3499, %v3501
      %v3520 = vsel %vm1318, %v3501, %v3503
      %v3521 = vsel %vm1318, %v3503, %v3505
      %3538 = vst [vmem:[#allocation3 + $0x180] sm:$0xff] %v3506
      %3539 = vst [vmem:[#allocation3 + $0x188] sm:$0xff] %v3507
      %3540 = vst [vmem:[#allocation3 + $0x190] sm:$0xff] %v3508
      %3541 = vst [vmem:[#allocation3 + $0x198] sm:$0xff] %v3509
      %3542 = vst [vmem:[#allocation3 + $0x1a0] sm:$0xff] %v3510
      %3543 = vst [vmem:[#allocation3 + $0x1a8] sm:$0xff] %v3511
      %3544 = vst [vmem:[#allocation3 + $0x1b0] sm:$0xff] %v3512
      %3545 = vst [vmem:[#allocation3 + $0x1b8] sm:$0xff] %v3513
      %3546 = vst [vmem:[#allocation3 + $0x1c0] sm:$0xff] %v3514
      %3547 = vst [vmem:[#allocation3 + $0x1c8] sm:$0xff] %v3515
      %3548 = vst [vmem:[#allocation3 + $0x1d0] sm:$0xff] %v3516
      %3549 = vst [vmem:[#allocation3 + $0x1d8] sm:$0xff] %v3517
      %3550 = vst [vmem:[#allocation3 + $0x1e0] sm:$0xff] %v3518
      %3551 = vst [vmem:[#allocation3 + $0x1e8] sm:$0xff] %v3519
      %3552 = vst [vmem:[#allocation3 + $0x1f0] sm:$0xff] %v3520
      %3553 = vst [vmem:[#allocation3 + $0x1f8] sm:$0xff] %v3521
      %v3554 = vld [vmem:[#allocation2] sm:$0xff]
      %v3555 = vld [vmem:[#allocation2 + $0x8] sm:$0xff]
      %v3556 = vld [vmem:[#allocation2 + $0x10] sm:$0xff]
      %v3557 = vld [vmem:[#allocation2 + $0x18] sm:$0xff]
      %v3558 = vld [vmem:[#allocation2 + $0x20] sm:$0xff]
      %v3559 = vld [vmem:[#allocation2 + $0x28] sm:$0xff]
      %v3560 = vld [vmem:[#allocation2 + $0x30] sm:$0xff]
      %v3561 = vld [vmem:[#allocation2 + $0x38] sm:$0xff]
      %v3562 = vld [vmem:[#allocation2 + $0x40] sm:$0xff]
      %v3563 = vld [vmem:[#allocation2 + $0x48] sm:$0xff]
      %v3564 = vld [vmem:[#allocation2 + $0x50] sm:$0xff]
      %v3565 = vld [vmem:[#allocation2 + $0x58] sm:$0xff]
      %v3566 = vld [vmem:[#allocation2 + $0x60] sm:$0xff]
      %v3567 = vld [vmem:[#allocation2 + $0x68] sm:$0xff]
      %v3568 = vld [vmem:[#allocation2 + $0x70] sm:$0xff]
      %v3569 = vld [vmem:[#allocation2 + $0x78] sm:$0xff]
      %v3570 = vld [vmem:[#allocation2 + $0x80] sm:$0xff]
      %v3571 = vld [vmem:[#allocation2 + $0x88] sm:$0xff]
      %3590 = vrot.lane.b32.xlu0 %v3554, 95
      %v3591 = vpop.permute.xlu0 %3590
      %3592 = vrot.lane.b32.xlu0 %v3555, 95
      %v3593 = vpop.permute.xlu0 %3592
      %3594 = vrot.lane.b32.xlu0 %v3556, 95
      %v3595 = vpop.permute.xlu0 %3594
      %3596 = vrot.lane.b32.xlu0 %v3557, 95
      %v3597 = vpop.permute.xlu0 %3596
      %3598 = vrot.lane.b32.xlu0 %v3558, 95
      %v3599 = vpop.permute.xlu0 %3598
      %3600 = vrot.lane.b32.xlu0 %v3559, 95
      %v3601 = vpop.permute.xlu0 %3600
      %3602 = vrot.lane.b32.xlu0 %v3560, 95
      %v3603 = vpop.permute.xlu0 %3602
      %3604 = vrot.lane.b32.xlu0 %v3561, 95
      %v3605 = vpop.permute.xlu0 %3604
      %3606 = vrot.lane.b32.xlu0 %v3562, 95
      %v3607 = vpop.permute.xlu0 %3606
      %3608 = vrot.lane.b32.xlu0 %v3563, 95
      %v3609 = vpop.permute.xlu0 %3608
      %3610 = vrot.lane.b32.xlu0 %v3564, 95
      %v3611 = vpop.permute.xlu0 %3610
      %3612 = vrot.lane.b32.xlu0 %v3565, 95
      %v3613 = vpop.permute.xlu0 %3612
      %3614 = vrot.lane.b32.xlu0 %v3566, 95
      %v3615 = vpop.permute.xlu0 %3614
      %3616 = vrot.lane.b32.xlu0 %v3567, 95
      %v3617 = vpop.permute.xlu0 %3616
      %3618 = vrot.lane.b32.xlu0 %v3568, 95
      %v3619 = vpop.permute.xlu0 %3618
      %3620 = vrot.lane.b32.xlu0 %v3569, 95
      %v3621 = vpop.permute.xlu0 %3620
      %3622 = vrot.lane.b32.xlu0 %v3570, 95
      %v3623 = vpop.permute.xlu0 %3622
      %3624 = vrot.lane.b32.xlu0 %v3571, 95
      %v3625 = vpop.permute.xlu0 %3624
      %v3626 = vsel %vm1355, %v3591, %v3593
      %v3627 = vsel %vm1355, %v3593, %v3595
      %v3628 = vsel %vm1355, %v3595, %v3597
      %v3629 = vsel %vm1355, %v3597, %v3599
      %v3630 = vsel %vm1355, %v3599, %v3601
      %v3631 = vsel %vm1355, %v3601, %v3603
      %v3632 = vsel %vm1355, %v3603, %v3605
      %v3633 = vsel %vm1355, %v3605, %v3607
      %v3634 = vsel %vm1355, %v3609, %v3611
      %v3635 = vsel %vm1355, %v3611, %v3613
      %v3636 = vsel %vm1355, %v3613, %v3615
      %v3637 = vsel %vm1355, %v3615, %v3617
      %v3638 = vsel %vm1355, %v3617, %v3619
      %v3639 = vsel %vm1355, %v3619, %v3621
      %v3640 = vsel %vm1355, %v3621, %v3623
      %v3641 = vsel %vm1355, %v3623, %v3625
      %3658 = vst [vmem:[#allocation3 + $0x200] sm:$0xff] %v3626
      %3659 = vst [vmem:[#allocation3 + $0x208] sm:$0xff] %v3627
      %3660 = vst [vmem:[#allocation3 + $0x210] sm:$0xff] %v3628
      %3661 = vst [vmem:[#allocation3 + $0x218] sm:$0xff] %v3629
      %3662 = vst [vmem:[#allocation3 + $0x220] sm:$0xff] %v3630
      %3663 = vst [vmem:[#allocation3 + $0x228] sm:$0xff] %v3631
      %3664 = vst [vmem:[#allocation3 + $0x230] sm:$0xff] %v3632
      %3665 = vst [vmem:[#allocation3 + $0x238] sm:$0xff] %v3633
      %3666 = vst [vmem:[#allocation3 + $0x240] sm:$0xff] %v3634
      %3667 = vst [vmem:[#allocation3 + $0x248] sm:$0xff] %v3635
      %3668 = vst [vmem:[#allocation3 + $0x250] sm:$0xff] %v3636
      %3669 = vst [vmem:[#allocation3 + $0x258] sm:$0xff] %v3637
      %3670 = vst [vmem:[#allocation3 + $0x260] sm:$0xff] %v3638
      %3671 = vst [vmem:[#allocation3 + $0x268] sm:$0xff] %v3639
      %3672 = vst [vmem:[#allocation3 + $0x270] sm:$0xff] %v3640
      %3673 = vst [vmem:[#allocation3 + $0x278] sm:$0xff] %v3641
      %v3674 = vld [vmem:[#allocation2] sm:$0xff]
      %v3675 = vld [vmem:[#allocation2 + $0x8] sm:$0xff]
      %v3676 = vld [vmem:[#allocation2 + $0x10] sm:$0xff]
      %v3677 = vld [vmem:[#allocation2 + $0x18] sm:$0xff]
      %v3678 = vld [vmem:[#allocation2 + $0x20] sm:$0xff]
      %v3679 = vld [vmem:[#allocation2 + $0x28] sm:$0xff]
      %v3680 = vld [vmem:[#allocation2 + $0x30] sm:$0xff]
      %v3681 = vld [vmem:[#allocation2 + $0x38] sm:$0xff]
      %v3682 = vld [vmem:[#allocation2 + $0x40] sm:$0xff]
      %v3683 = vld [vmem:[#allocation2 + $0x48] sm:$0xff]
      %v3684 = vld [vmem:[#allocation2 + $0x50] sm:$0xff]
      %v3685 = vld [vmem:[#allocation2 + $0x58] sm:$0xff]
      %v3686 = vld [vmem:[#allocation2 + $0x60] sm:$0xff]
      %v3687 = vld [vmem:[#allocation2 + $0x68] sm:$0xff]
      %v3688 = vld [vmem:[#allocation2 + $0x70] sm:$0xff]
      %v3689 = vld [vmem:[#allocation2 + $0x78] sm:$0xff]
      %v3690 = vld [vmem:[#allocation2 + $0x80] sm:$0xff]
      %v3691 = vld [vmem:[#allocation2 + $0x88] sm:$0xff]
      %3692 = vrot.lane.b32.xlu0 %v3203, 34
      %v3693 = vpop.permute.xlu0 %3692
      %3694 = vrot.lane.b32.xlu0 %v3207, 34
      %v3695 = vpop.permute.xlu0 %3694
      %3696 = vrot.lane.b32.xlu0 %v3211, 34
      %v3697 = vpop.permute.xlu0 %3696
      %3698 = vrot.lane.b32.xlu0 %v3215, 34
      %v3699 = vpop.permute.xlu0 %3698
      %3700 = vrot.lane.b32.xlu0 %v3219, 34
      %v3701 = vpop.permute.xlu0 %3700
      %3702 = vrot.lane.b32.xlu0 %v3223, 34
      %v3703 = vpop.permute.xlu0 %3702
      %3704 = vrot.lane.b32.xlu0 %v3227, 34
      %v3705 = vpop.permute.xlu0 %3704
      %3706 = vrot.lane.b32.xlu0 %v3231, 34
      %v3707 = vpop.permute.xlu0 %3706
      %v3708 = vsel %vm1378, %v3693, %v3695
      %v3709 = vsel %vm1378, %v3695, %v3697
      %v3710 = vsel %vm1378, %v3697, %v3699
      %v3711 = vsel %vm1378, %v3699, %v3701
      %v3712 = vsel %vm1378, %v3701, %v3703
      %v3713 = vsel %vm1378, %v3703, %v3705
      %v3714 = vsel %vm1378, %v3705, %v3707
      %vm3715 = vcmp.ne.s16.totalorder %v3693, 0
      %vm3716 = vcmp.ne.s16.totalorder %v3708, 0
      %vm3717 = vcmp.ne.s16.totalorder %v3709, 0
      %vm3718 = vcmp.ne.s16.totalorder %v3710, 0
      %vm3719 = vcmp.ne.s16.totalorder %v3711, 0
      %vm3720 = vcmp.ne.s16.totalorder %v3712, 0
      %vm3721 = vcmp.ne.s16.totalorder %v3713, 0
      %vm3722 = vcmp.ne.s16.totalorder %v3714, 0
      %vm3723 = vcmp.ne.s16.totalorder %v3707, 0
      %v3724 = vsel %vm3715, %v3674, 0
      %v3725 = vsel %vm3716, %v3675, 0
      %v3726 = vsel %vm3717, %v3676, 0
      %v3727 = vsel %vm3718, %v3677, 0
      %v3728 = vsel %vm3719, %v3678, 0
      %v3729 = vsel %vm3720, %v3679, 0
      %v3730 = vsel %vm3721, %v3680, 0
      %v3731 = vsel %vm3722, %v3681, 0
      %v3732 = vsel %vm3723, %v3682, 0
      %v3733 = vsel %vm3715, %v3683, 0
      %v3734 = vsel %vm3716, %v3684, 0
      %v3735 = vsel %vm3717, %v3685, 0
      %v3736 = vsel %vm3718, %v3686, 0
      %v3737 = vsel %vm3719, %v3687, 0
      %v3738 = vsel %vm3720, %v3688, 0
      %v3739 = vsel %vm3721, %v3689, 0
      %v3740 = vsel %vm3722, %v3690, 0
      %v3741 = vsel %vm3723, %v3691, 0
      %3760 = vrot.lane.b32.xlu0 %v3724, 94
      %v3761 = vpop.permute.xlu0 %3760
      %3762 = vrot.lane.b32.xlu0 %v3725, 94
      %v3763 = vpop.permute.xlu0 %3762
      %3764 = vrot.lane.b32.xlu0 %v3726, 94
      %v3765 = vpop.permute.xlu0 %3764
      %3766 = vrot.lane.b32.xlu0 %v3727, 94
      %v3767 = vpop.permute.xlu0 %3766
      %3768 = vrot.lane.b32.xlu0 %v3728, 94
      %v3769 = vpop.permute.xlu0 %3768
      %3770 = vrot.lane.b32.xlu0 %v3729, 94
      %v3771 = vpop.permute.xlu0 %3770
      %3772 = vrot.lane.b32.xlu0 %v3730, 94
      %v3773 = vpop.permute.xlu0 %3772
      %3774 = vrot.lane.b32.xlu0 %v3731, 94
      %v3775 = vpop.permute.xlu0 %3774
      %3776 = vrot.lane.b32.xlu0 %v3732, 94
      %v3777 = vpop.permute.xlu0 %3776
      %3778 = vrot.lane.b32.xlu0 %v3733, 94
      %v3779 = vpop.permute.xlu0 %3778
      %3780 = vrot.lane.b32.xlu0 %v3734, 94
      %v3781 = vpop.permute.xlu0 %3780
      %3782 = vrot.lane.b32.xlu0 %v3735, 94
      %v3783 = vpop.permute.xlu0 %3782
      %3784 = vrot.lane.b32.xlu0 %v3736, 94
      %v3785 = vpop.permute.xlu0 %3784
      %3786 = vrot.lane.b32.xlu0 %v3737, 94
      %v3787 = vpop.permute.xlu0 %3786
      %3788 = vrot.lane.b32.xlu0 %v3738, 94
      %v3789 = vpop.permute.xlu0 %3788
      %3790 = vrot.lane.b32.xlu0 %v3739, 94
      %v3791 = vpop.permute.xlu0 %3790
      %3792 = vrot.lane.b32.xlu0 %v3740, 94
      %v3793 = vpop.permute.xlu0 %3792
      %3794 = vrot.lane.b32.xlu0 %v3741, 94
      %v3795 = vpop.permute.xlu0 %3794
      %v3796 = vsel %vm1407, %v3761, %v3763
      %v3797 = vsel %vm1407, %v3763, %v3765
      %v3798 = vsel %vm1407, %v3765, %v3767
      %v3799 = vsel %vm1407, %v3767, %v3769
      %v3800 = vsel %vm1407, %v3769, %v3771
      %v3801 = vsel %vm1407, %v3771, %v3773
      %v3802 = vsel %vm1407, %v3773, %v3775
      %v3803 = vsel %vm1407, %v3775, %v3777
      %v3804 = vsel %vm1407, %v3779, %v3781
      %v3805 = vsel %vm1407, %v3781, %v3783
      %v3806 = vsel %vm1407, %v3783, %v3785
      %v3807 = vsel %vm1407, %v3785, %v3787
      %v3808 = vsel %vm1407, %v3787, %v3789
      %v3809 = vsel %vm1407, %v3789, %v3791
      %v3810 = vsel %vm1407, %v3791, %v3793
      %v3811 = vsel %vm1407, %v3793, %v3795
      %3828 = vst [vmem:[#allocation3 + $0x280] sm:$0xff] %v3796
      %3829 = vst [vmem:[#allocation3 + $0x288] sm:$0xff] %v3797
      %3830 = vst [vmem:[#allocation3 + $0x290] sm:$0xff] %v3798
      %3831 = vst [vmem:[#allocation3 + $0x298] sm:$0xff] %v3799
      %3832 = vst [vmem:[#allocation3 + $0x2a0] sm:$0xff] %v3800
      %3833 = vst [vmem:[#allocation3 + $0x2a8] sm:$0xff] %v3801
      %3834 = vst [vmem:[#allocation3 + $0x2b0] sm:$0xff] %v3802
      %3835 = vst [vmem:[#allocation3 + $0x2b8] sm:$0xff] %v3803
      %3836 = vst [vmem:[#allocation3 + $0x2c0] sm:$0xff] %v3804
      %3837 = vst [vmem:[#allocation3 + $0x2c8] sm:$0xff] %v3805
      %3838 = vst [vmem:[#allocation3 + $0x2d0] sm:$0xff] %v3806
      %3839 = vst [vmem:[#allocation3 + $0x2d8] sm:$0xff] %v3807
      %3840 = vst [vmem:[#allocation3 + $0x2e0] sm:$0xff] %v3808
      %3841 = vst [vmem:[#allocation3 + $0x2e8] sm:$0xff] %v3809
      %3842 = vst [vmem:[#allocation3 + $0x2f0] sm:$0xff] %v3810
      %3843 = vst [vmem:[#allocation3 + $0x2f8] sm:$0xff] %v3811
      %v3844 = vld [vmem:[#allocation2] sm:$0xff]
      %v3845 = vld [vmem:[#allocation2 + $0x8] sm:$0xff]
      %v3846 = vld [vmem:[#allocation2 + $0x10] sm:$0xff]
      %v3847 = vld [vmem:[#allocation2 + $0x18] sm:$0xff]
      %v3848 = vld [vmem:[#allocation2 + $0x20] sm:$0xff]
      %v3849 = vld [vmem:[#allocation2 + $0x28] sm:$0xff]
      %v3850 = vld [vmem:[#allocation2 + $0x30] sm:$0xff]
      %v3851 = vld [vmem:[#allocation2 + $0x38] sm:$0xff]
      %v3852 = vld [vmem:[#allocation2 + $0x40] sm:$0xff]
      %v3853 = vld [vmem:[#allocation2 + $0x48] sm:$0xff]
      %v3854 = vld [vmem:[#allocation2 + $0x50] sm:$0xff]
      %v3855 = vld [vmem:[#allocation2 + $0x58] sm:$0xff]
      %v3856 = vld [vmem:[#allocation2 + $0x60] sm:$0xff]
      %v3857 = vld [vmem:[#allocation2 + $0x68] sm:$0xff]
      %v3858 = vld [vmem:[#allocation2 + $0x70] sm:$0xff]
      %v3859 = vld [vmem:[#allocation2 + $0x78] sm:$0xff]
      %v3860 = vld [vmem:[#allocation2 + $0x80] sm:$0xff]
      %v3861 = vld [vmem:[#allocation2 + $0x88] sm:$0xff]
      %3862 = vrot.lane.b32.xlu0 %v2969, 64
      %v3863 = vpop.permute.xlu0 %3862
      %3864 = vrot.lane.b32.xlu0 %v2973, 64
      %v3865 = vpop.permute.xlu0 %3864
      %3866 = vrot.lane.b32.xlu0 %v2977, 64
      %v3867 = vpop.permute.xlu0 %3866
      %3868 = vrot.lane.b32.xlu0 %v2981, 64
      %v3869 = vpop.permute.xlu0 %3868
      %3870 = vrot.lane.b32.xlu0 %v2985, 64
      %v3871 = vpop.permute.xlu0 %3870
      %3872 = vrot.lane.b32.xlu0 %v2989, 64
      %v3873 = vpop.permute.xlu0 %3872
      %3874 = vrot.lane.b32.xlu0 %v2993, 64
      %v3875 = vpop.permute.xlu0 %3874
      %3876 = vrot.lane.b32.xlu0 %v2997, 64
      %v3877 = vpop.permute.xlu0 %3876
      %vm3878 = vcmask 523264
      %v3879 = vsel %vm3878, %v3863, %v3865
      %v3880 = vsel %vm3878, %v3865, %v3867
      %v3881 = vsel %vm3878, %v3867, %v3869
      %v3882 = vsel %vm3878, %v3869, %v3871
      %v3883 = vsel %vm3878, %v3871, %v3873
      %v3884 = vsel %vm3878, %v3873, %v3875
      %v3885 = vsel %vm3878, %v3875, %v3877
      %vm3886 = vcmp.ne.s16.totalorder %v3863, 0
      %vm3887 = vcmp.ne.s16.totalorder %v3879, 0
      %vm3888 = vcmp.ne.s16.totalorder %v3880, 0
      %vm3889 = vcmp.ne.s16.totalorder %v3881, 0
      %vm3890 = vcmp.ne.s16.totalorder %v3882, 0
      %vm3891 = vcmp.ne.s16.totalorder %v3883, 0
      %vm3892 = vcmp.ne.s16.totalorder %v3884, 0
      %vm3893 = vcmp.ne.s16.totalorder %v3885, 0
      %vm3894 = vcmp.ne.s16.totalorder %v3877, 0
      %v3895 = vsel %vm3886, %v3844, 0
      %v3896 = vsel %vm3887, %v3845, 0
      %v3897 = vsel %vm3888, %v3846, 0
      %v3898 = vsel %vm3889, %v3847, 0
      %v3899 = vsel %vm3890, %v3848, 0
      %v3900 = vsel %vm3891, %v3849, 0
      %v3901 = vsel %vm3892, %v3850, 0
      %v3902 = vsel %vm3893, %v3851, 0
      %v3903 = vsel %vm3894, %v3852, 0
      %v3904 = vsel %vm3886, %v3853, 0
      %v3905 = vsel %vm3887, %v3854, 0
      %v3906 = vsel %vm3888, %v3855, 0
      %v3907 = vsel %vm3889, %v3856, 0
      %v3908 = vsel %vm3890, %v3857, 0
      %v3909 = vsel %vm3891, %v3858, 0
      %v3910 = vsel %vm3892, %v3859, 0
      %v3911 = vsel %vm3893, %v3860, 0
      %v3912 = vsel %vm3894, %v3861, 0
      %3931 = vrot.lane.b32.xlu0 %v3895, 64
      %v3932 = vpop.permute.xlu0 %3931
      %3933 = vrot.lane.b32.xlu0 %v3896, 64
      %v3934 = vpop.permute.xlu0 %3933
      %3935 = vrot.lane.b32.xlu0 %v3897, 64
      %v3936 = vpop.permute.xlu0 %3935
      %3937 = vrot.lane.b32.xlu0 %v3898, 64
      %v3938 = vpop.permute.xlu0 %3937
      %3939 = vrot.lane.b32.xlu0 %v3899, 64
      %v3940 = vpop.permute.xlu0 %3939
      %3941 = vrot.lane.b32.xlu0 %v3900, 64
      %v3942 = vpop.permute.xlu0 %3941
      %3943 = vrot.lane.b32.xlu0 %v3901, 64
      %v3944 = vpop.permute.xlu0 %3943
      %3945 = vrot.lane.b32.xlu0 %v3902, 64
      %v3946 = vpop.permute.xlu0 %3945
      %3947 = vrot.lane.b32.xlu0 %v3903, 64
      %v3948 = vpop.permute.xlu0 %3947
      %3949 = vrot.lane.b32.xlu0 %v3904, 64
      %v3950 = vpop.permute.xlu0 %3949
      %3951 = vrot.lane.b32.xlu0 %v3905, 64
      %v3952 = vpop.permute.xlu0 %3951
      %3953 = vrot.lane.b32.xlu0 %v3906, 64
      %v3954 = vpop.permute.xlu0 %3953
      %3955 = vrot.lane.b32.xlu0 %v3907, 64
      %v3956 = vpop.permute.xlu0 %3955
      %3957 = vrot.lane.b32.xlu0 %v3908, 64
      %v3958 = vpop.permute.xlu0 %3957
      %3959 = vrot.lane.b32.xlu0 %v3909, 64
      %v3960 = vpop.permute.xlu0 %3959
      %3961 = vrot.lane.b32.xlu0 %v3910, 64
      %v3962 = vpop.permute.xlu0 %3961
      %3963 = vrot.lane.b32.xlu0 %v3911, 64
      %v3964 = vpop.permute.xlu0 %3963
      %3965 = vrot.lane.b32.xlu0 %v3912, 64
      %v3966 = vpop.permute.xlu0 %3965
      %v3967 = vsel %vm3878, %v3932, %v3934
      %v3968 = vsel %vm3878, %v3934, %v3936
      %v3969 = vsel %vm3878, %v3936, %v3938
      %v3970 = vsel %vm3878, %v3938, %v3940
      %v3971 = vsel %vm3878, %v3940, %v3942
      %v3972 = vsel %vm3878, %v3942, %v3944
      %v3973 = vsel %vm3878, %v3944, %v3946
      %v3974 = vsel %vm3878, %v3946, %v3948
      %v3975 = vsel %vm3878, %v3950, %v3952
      %v3976 = vsel %vm3878, %v3952, %v3954
      %v3977 = vsel %vm3878, %v3954, %v3956
      %v3978 = vsel %vm3878, %v3956, %v3958
      %v3979 = vsel %vm3878, %v3958, %v3960
      %v3980 = vsel %vm3878, %v3960, %v3962
      %v3981 = vsel %vm3878, %v3962, %v3964
      %v3982 = vsel %vm3878, %v3964, %v3966
      %3999 = vst [vmem:[#allocation3 + $0x300] sm:$0xff] %v3967
      %4000 = vst [vmem:[#allocation3 + $0x308] sm:$0xff] %v3968
      %4001 = vst [vmem:[#allocation3 + $0x310] sm:$0xff] %v3969
      %4002 = vst [vmem:[#allocation3 + $0x318] sm:$0xff] %v3970
      %4003 = vst [vmem:[#allocation3 + $0x320] sm:$0xff] %v3971
      %4004 = vst [vmem:[#allocation3 + $0x328] sm:$0xff] %v3972
      %4005 = vst [vmem:[#allocation3 + $0x330] sm:$0xff] %v3973
      %4006 = vst [vmem:[#allocation3 + $0x338] sm:$0xff] %v3974
      %4007 = vst [vmem:[#allocation3 + $0x340] sm:$0xff] %v3975
      %4008 = vst [vmem:[#allocation3 + $0x348] sm:$0xff] %v3976
      %4009 = vst [vmem:[#allocation3 + $0x350] sm:$0xff] %v3977
      %4010 = vst [vmem:[#allocation3 + $0x358] sm:$0xff] %v3978
      %4011 = vst [vmem:[#allocation3 + $0x360] sm:$0xff] %v3979
      %4012 = vst [vmem:[#allocation3 + $0x368] sm:$0xff] %v3980
      %4013 = vst [vmem:[#allocation3 + $0x370] sm:$0xff] %v3981
      %4014 = vst [vmem:[#allocation3 + $0x378] sm:$0xff] %v3982
      %v4015 = vld [vmem:[#allocation2] sm:$0xff]
      %v4016 = vld [vmem:[#allocation2 + $0x8] sm:$0xff]
      %v4017 = vld [vmem:[#allocation2 + $0x10] sm:$0xff]
      %v4018 = vld [vmem:[#allocation2 + $0x18] sm:$0xff]
      %v4019 = vld [vmem:[#allocation2 + $0x20] sm:$0xff]
      %v4020 = vld [vmem:[#allocation2 + $0x28] sm:$0xff]
      %v4021 = vld [vmem:[#allocation2 + $0x30] sm:$0xff]
      %v4022 = vld [vmem:[#allocation2 + $0x38] sm:$0xff]
      %v4023 = vld [vmem:[#allocation2 + $0x40] sm:$0xff]
      %v4024 = vld [vmem:[#allocation2 + $0x48] sm:$0xff]
      %v4025 = vld [vmem:[#allocation2 + $0x50] sm:$0xff]
      %v4026 = vld [vmem:[#allocation2 + $0x58] sm:$0xff]
      %v4027 = vld [vmem:[#allocation2 + $0x60] sm:$0xff]
      %v4028 = vld [vmem:[#allocation2 + $0x68] sm:$0xff]
      %v4029 = vld [vmem:[#allocation2 + $0x70] sm:$0xff]
      %v4030 = vld [vmem:[#allocation2 + $0x78] sm:$0xff]
      %v4031 = vld [vmem:[#allocation2 + $0x80] sm:$0xff]
      %v4032 = vld [vmem:[#allocation2 + $0x88] sm:$0xff]
      %4051 = vrot.lane.b32.xlu0 %v4015, 63
      %v4052 = vpop.permute.xlu0 %4051
      %4053 = vrot.lane.b32.xlu0 %v4016, 63
      %v4054 = vpop.permute.xlu0 %4053
      %4055 = vrot.lane.b32.xlu0 %v4017, 63
      %v4056 = vpop.permute.xlu0 %4055
      %4057 = vrot.lane.b32.xlu0 %v4018, 63
      %v4058 = vpop.permute.xlu0 %4057
      %4059 = vrot.lane.b32.xlu0 %v4019, 63
      %v4060 = vpop.permute.xlu0 %4059
      %4061 = vrot.lane.b32.xlu0 %v4020, 63
      %v4062 = vpop.permute.xlu0 %4061
      %4063 = vrot.lane.b32.xlu0 %v4021, 63
      %v4064 = vpop.permute.xlu0 %4063
      %4065 = vrot.lane.b32.xlu0 %v4022, 63
      %v4066 = vpop.permute.xlu0 %4065
      %4067 = vrot.lane.b32.xlu0 %v4023, 63
      %v4068 = vpop.permute.xlu0 %4067
      %4069 = vrot.lane.b32.xlu0 %v4024, 63
      %v4070 = vpop.permute.xlu0 %4069
      %4071 = vrot.lane.b32.xlu0 %v4025, 63
      %v4072 = vpop.permute.xlu0 %4071
      %4073 = vrot.lane.b32.xlu0 %v4026, 63
      %v4074 = vpop.permute.xlu0 %4073
      %4075 = vrot.lane.b32.xlu0 %v4027, 63
      %v4076 = vpop.permute.xlu0 %4075
      %4077 = vrot.lane.b32.xlu0 %v4028, 63
      %v4078 = vpop.permute.xlu0 %4077
      %4079 = vrot.lane.b32.xlu0 %v4029, 63
      %v4080 = vpop.permute.xlu0 %4079
      %4081 = vrot.lane.b32.xlu0 %v4030, 63
      %v4082 = vpop.permute.xlu0 %4081
      %4083 = vrot.lane.b32.xlu0 %v4031, 63
      %v4084 = vpop.permute.xlu0 %4083
      %4085 = vrot.lane.b32.xlu0 %v4032, 63
      %v4086 = vpop.permute.xlu0 %4085
      %vm4087 = vcmask 515072
      %v4088 = vsel %vm4087, %v4052, %v4054
      %v4089 = vsel %vm4087, %v4054, %v4056
      %v4090 = vsel %vm4087, %v4056, %v4058
      %v4091 = vsel %vm4087, %v4058, %v4060
      %v4092 = vsel %vm4087, %v4060, %v4062
      %v4093 = vsel %vm4087, %v4062, %v4064
      %v4094 = vsel %vm4087, %v4064, %v4066
      %v4095 = vsel %vm4087, %v4066, %v4068
      %v4096 = vsel %vm4087, %v4070, %v4072
      %v4097 = vsel %vm4087, %v4072, %v4074
      %v4098 = vsel %vm4087, %v4074, %v4076
      %v4099 = vsel %vm4087, %v4076, %v4078
      %v4100 = vsel %vm4087, %v4078, %v4080
      %v4101 = vsel %vm4087, %v4080, %v4082
      %v4102 = vsel %vm4087, %v4082, %v4084
      %v4103 = vsel %vm4087, %v4084, %v4086
      %4120 = vst [vmem:[#allocation3 + $0x380] sm:$0xff] %v4088
      %4121 = vst [vmem:[#allocation3 + $0x388] sm:$0xff] %v4089
      %4122 = vst [vmem:[#allocation3 + $0x390] sm:$0xff] %v4090
      %4123 = vst [vmem:[#allocation3 + $0x398] sm:$0xff] %v4091
      %4124 = vst [vmem:[#allocation3 + $0x3a0] sm:$0xff] %v4092
      %4125 = vst [vmem:[#allocation3 + $0x3a8] sm:$0xff] %v4093
      %4126 = vst [vmem:[#allocation3 + $0x3b0] sm:$0xff] %v4094
      %4127 = vst [vmem:[#allocation3 + $0x3b8] sm:$0xff] %v4095
      %4128 = vst [vmem:[#allocation3 + $0x3c0] sm:$0xff] %v4096
      %4129 = vst [vmem:[#allocation3 + $0x3c8] sm:$0xff] %v4097
      %4130 = vst [vmem:[#allocation3 + $0x3d0] sm:$0xff] %v4098
      %4131 = vst [vmem:[#allocation3 + $0x3d8] sm:$0xff] %v4099
      %4132 = vst [vmem:[#allocation3 + $0x3e0] sm:$0xff] %v4100
      %4133 = vst [vmem:[#allocation3 + $0x3e8] sm:$0xff] %v4101
      %4134 = vst [vmem:[#allocation3 + $0x3f0] sm:$0xff] %v4102
      %4135 = vst [vmem:[#allocation3 + $0x3f8] sm:$0xff] %v4103
      %v4136 = vld [vmem:[#allocation2] sm:$0xff]
      %v4137 = vld [vmem:[#allocation2 + $0x8] sm:$0xff]
      %v4138 = vld [vmem:[#allocation2 + $0x10] sm:$0xff]
      %v4139 = vld [vmem:[#allocation2 + $0x18] sm:$0xff]
      %v4140 = vld [vmem:[#allocation2 + $0x20] sm:$0xff]
      %v4141 = vld [vmem:[#allocation2 + $0x28] sm:$0xff]
      %v4142 = vld [vmem:[#allocation2 + $0x30] sm:$0xff]
      %v4143 = vld [vmem:[#allocation2 + $0x38] sm:$0xff]
      %v4144 = vld [vmem:[#allocation2 + $0x40] sm:$0xff]
      %v4145 = vld [vmem:[#allocation2 + $0x48] sm:$0xff]
      %v4146 = vld [vmem:[#allocation2 + $0x50] sm:$0xff]
      %v4147 = vld [vmem:[#allocation2 + $0x58] sm:$0xff]
      %v4148 = vld [vmem:[#allocation2 + $0x60] sm:$0xff]
      %v4149 = vld [vmem:[#allocation2 + $0x68] sm:$0xff]
      %v4150 = vld [vmem:[#allocation2 + $0x70] sm:$0xff]
      %v4151 = vld [vmem:[#allocation2 + $0x78] sm:$0xff]
      %v4152 = vld [vmem:[#allocation2 + $0x80] sm:$0xff]
      %v4153 = vld [vmem:[#allocation2 + $0x88] sm:$0xff]
      %4154 = vrot.lane.b32.xlu0 %v3203, 66
      %v4155 = vpop.permute.xlu0 %4154
      %4156 = vrot.lane.b32.xlu0 %v3207, 66
      %v4157 = vpop.permute.xlu0 %4156
      %4158 = vrot.lane.b32.xlu0 %v3211, 66
      %v4159 = vpop.permute.xlu0 %4158
      %4160 = vrot.lane.b32.xlu0 %v3215, 66
      %v4161 = vpop.permute.xlu0 %4160
      %4162 = vrot.lane.b32.xlu0 %v3219, 66
      %v4163 = vpop.permute.xlu0 %4162
      %4164 = vrot.lane.b32.xlu0 %v3223, 66
      %v4165 = vpop.permute.xlu0 %4164
      %4166 = vrot.lane.b32.xlu0 %v3227, 66
      %v4167 = vpop.permute.xlu0 %4166
      %4168 = vrot.lane.b32.xlu0 %v3231, 66
      %v4169 = vpop.permute.xlu0 %4168
      %vm4170 = vcmask 539648
      %v4171 = vsel %vm4170, %v4155, %v4157
      %v4172 = vsel %vm4170, %v4157, %v4159
      %v4173 = vsel %vm4170, %v4159, %v4161
      %v4174 = vsel %vm4170, %v4161, %v4163
      %v4175 = vsel %vm4170, %v4163, %v4165
      %v4176 = vsel %vm4170, %v4165, %v4167
      %v4177 = vsel %vm4170, %v4167, %v4169
      %vm4178 = vcmp.ne.s16.totalorder %v4155, 0
      %vm4179 = vcmp.ne.s16.totalorder %v4171, 0
      %vm4180 = vcmp.ne.s16.totalorder %v4172, 0
      %vm4181 = vcmp.ne.s16.totalorder %v4173, 0
      %vm4182 = vcmp.ne.s16.totalorder %v4174, 0
      %vm4183 = vcmp.ne.s16.totalorder %v4175, 0
      %vm4184 = vcmp.ne.s16.totalorder %v4176, 0
      %vm4185 = vcmp.ne.s16.totalorder %v4177, 0
      %vm4186 = vcmp.ne.s16.totalorder %v4169, 0
      %v4187 = vsel %vm4178, %v4136, 0
      %v4188 = vsel %vm4179, %v4137, 0
      %v4189 = vsel %vm4180, %v4138, 0
      %v4190 = vsel %vm4181, %v4139, 0
      %v4191 = vsel %vm4182, %v4140, 0
      %v4192 = vsel %vm4183, %v4141, 0
      %v4193 = vsel %vm4184, %v4142, 0
      %v4194 = vsel %vm4185, %v4143, 0
      %v4195 = vsel %vm4186, %v4144, 0
      %v4196 = vsel %vm4178, %v4145, 0
      %v4197 = vsel %vm4179, %v4146, 0
      %v4198 = vsel %vm4180, %v4147, 0
      %v4199 = vsel %vm4181, %v4148, 0
      %v4200 = vsel %vm4182, %v4149, 0
      %v4201 = vsel %vm4183, %v4150, 0
      %v4202 = vsel %vm4184, %v4151, 0
      %v4203 = vsel %vm4185, %v4152, 0
      %v4204 = vsel %vm4186, %v4153, 0
      %4223 = vrot.lane.b32.xlu0 %v4187, 62
      %v4224 = vpop.permute.xlu0 %4223
      %4225 = vrot.lane.b32.xlu0 %v4188, 62
      %v4226 = vpop.permute.xlu0 %4225
      %4227 = vrot.lane.b32.xlu0 %v4189, 62
      %v4228 = vpop.permute.xlu0 %4227
      %4229 = vrot.lane.b32.xlu0 %v4190, 62
      %v4230 = vpop.permute.xlu0 %4229
      %4231 = vrot.lane.b32.xlu0 %v4191, 62
      %v4232 = vpop.permute.xlu0 %4231
      %4233 = vrot.lane.b32.xlu0 %v4192, 62
      %v4234 = vpop.permute.xlu0 %4233
      %4235 = vrot.lane.b32.xlu0 %v4193, 62
      %v4236 = vpop.permute.xlu0 %4235
      %4237 = vrot.lane.b32.xlu0 %v4194, 62
      %v4238 = vpop.permute.xlu0 %4237
      %4239 = vrot.lane.b32.xlu0 %v4195, 62
      %v4240 = vpop.permute.xlu0 %4239
      %4241 = vrot.lane.b32.xlu0 %v4196, 62
      %v4242 = vpop.permute.xlu0 %4241
      %4243 = vrot.lane.b32.xlu0 %v4197, 62
      %v4244 = vpop.permute.xlu0 %4243
      %4245 = vrot.lane.b32.xlu0 %v4198, 62
      %v4246 = vpop.permute.xlu0 %4245
      %4247 = vrot.lane.b32.xlu0 %v4199, 62
      %v4248 = vpop.permute.xlu0 %4247
      %4249 = vrot.lane.b32.xlu0 %v4200, 62
      %v4250 = vpop.permute.xlu0 %4249
      %4251 = vrot.lane.b32.xlu0 %v4201, 62
      %v4252 = vpop.permute.xlu0 %4251
      %4253 = vrot.lane.b32.xlu0 %v4202, 62
      %v4254 = vpop.permute.xlu0 %4253
      %4255 = vrot.lane.b32.xlu0 %v4203, 62
      %v4256 = vpop.permute.xlu0 %4255
      %4257 = vrot.lane.b32.xlu0 %v4204, 62
      %v4258 = vpop.permute.xlu0 %4257
      %vm4259 = vcmask 506880
      %v4260 = vsel %vm4259, %v4224, %v4226
      %v4261 = vsel %vm4259, %v4226, %v4228
      %v4262 = vsel %vm4259, %v4228, %v4230
      %v4263 = vsel %vm4259, %v4230, %v4232
      %v4264 = vsel %vm4259, %v4232, %v4234
      %v4265 = vsel %vm4259, %v4234, %v4236
      %v4266 = vsel %vm4259, %v4236, %v4238
      %v4267 = vsel %vm4259, %v4238, %v4240
      %v4268 = vsel %vm4259, %v4242, %v4244
      %v4269 = vsel %vm4259, %v4244, %v4246
      %v4270 = vsel %vm4259, %v4246, %v4248
      %v4271 = vsel %vm4259, %v4248, %v4250
      %v4272 = vsel %vm4259, %v4250, %v4252
      %v4273 = vsel %vm4259, %v4252, %v4254
      %v4274 = vsel %vm4259, %v4254, %v4256
      %v4275 = vsel %vm4259, %v4256, %v4258
      %4292 = vst [vmem:[#allocation3 + $0x400] sm:$0xff] %v4260
      %4293 = vst [vmem:[#allocation3 + $0x408] sm:$0xff] %v4261
      %4294 = vst [vmem:[#allocation3 + $0x410] sm:$0xff] %v4262
      %4295 = vst [vmem:[#allocation3 + $0x418] sm:$0xff] %v4263
      %4296 = vst [vmem:[#allocation3 + $0x420] sm:$0xff] %v4264
      %4297 = vst [vmem:[#allocation3 + $0x428] sm:$0xff] %v4265
      %4298 = vst [vmem:[#allocation3 + $0x430] sm:$0xff] %v4266
      %4299 = vst [vmem:[#allocation3 + $0x438] sm:$0xff] %v4267
      %4300 = vst [vmem:[#allocation3 + $0x440] sm:$0xff] %v4268
      %4301 = vst [vmem:[#allocation3 + $0x448] sm:$0xff] %v4269
      %4302 = vst [vmem:[#allocation3 + $0x450] sm:$0xff] %v4270
      %4303 = vst [vmem:[#allocation3 + $0x458] sm:$0xff] %v4271
      %4304 = vst [vmem:[#allocation3 + $0x460] sm:$0xff] %v4272
      %4305 = vst [vmem:[#allocation3 + $0x468] sm:$0xff] %v4273
      %4306 = vst [vmem:[#allocation3 + $0x470] sm:$0xff] %v4274
      %4307 = vst [vmem:[#allocation3 + $0x478] sm:$0xff] %v4275
      %v4308 = vld [vmem:[#allocation3] sm:$0xff]
      %v4309 = vld [vmem:[#allocation3 + $0x8] sm:$0xff]
      %v4310 = vld [vmem:[#allocation3 + $0x10] sm:$0xff]
      %v4311 = vld [vmem:[#allocation3 + $0x18] sm:$0xff]
      %v4312 = vld [vmem:[#allocation3 + $0x20] sm:$0xff]
      %v4313 = vld [vmem:[#allocation3 + $0x28] sm:$0xff]
      %v4314 = vld [vmem:[#allocation3 + $0x30] sm:$0xff]
      %v4315 = vld [vmem:[#allocation3 + $0x38] sm:$0xff]
      %v4316 = vld [vmem:[#allocation3 + $0x40] sm:$0xff]
      %v4317 = vld [vmem:[#allocation3 + $0x48] sm:$0xff]
      %v4318 = vld [vmem:[#allocation3 + $0x50] sm:$0xff]
      %v4319 = vld [vmem:[#allocation3 + $0x58] sm:$0xff]
      %v4320 = vld [vmem:[#allocation3 + $0x60] sm:$0xff]
      %v4321 = vld [vmem:[#allocation3 + $0x68] sm:$0xff]
      %v4322 = vld [vmem:[#allocation3 + $0x70] sm:$0xff]
      %v4323 = vld [vmem:[#allocation3 + $0x78] sm:$0xff]
      %v4324 = vld [vmem:[#allocation3 + $0x80] sm:$0xff]
      %v4325 = vld [vmem:[#allocation3 + $0x88] sm:$0xff]
      %v4326 = vld [vmem:[#allocation3 + $0x90] sm:$0xff]
      %v4327 = vld [vmem:[#allocation3 + $0x98] sm:$0xff]
      %v4328 = vld [vmem:[#allocation3 + $0xa0] sm:$0xff]
      %v4329 = vld [vmem:[#allocation3 + $0xa8] sm:$0xff]
      %v4330 = vld [vmem:[#allocation3 + $0xb0] sm:$0xff]
      %v4331 = vld [vmem:[#allocation3 + $0xb8] sm:$0xff]
      %v4332 = vld [vmem:[#allocation3 + $0xc0] sm:$0xff]
      %v4333 = vld [vmem:[#allocation3 + $0xc8] sm:$0xff]
      %v4334 = vld [vmem:[#allocation3 + $0xd0] sm:$0xff]
      %v4335 = vld [vmem:[#allocation3 + $0xd8] sm:$0xff]
      %v4336 = vld [vmem:[#allocation3 + $0xe0] sm:$0xff]
      %v4337 = vld [vmem:[#allocation3 + $0xe8] sm:$0xff]
      %v4338 = vld [vmem:[#allocation3 + $0xf0] sm:$0xff]
      %v4339 = vld [vmem:[#allocation3 + $0xf8] sm:$0xff]
      %v4340 = vld [vmem:[#allocation3 + $0x100] sm:$0xff]
      %v4341 = vld [vmem:[#allocation3 + $0x108] sm:$0xff]
      %v4342 = vld [vmem:[#allocation3 + $0x110] sm:$0xff]
      %v4343 = vld [vmem:[#allocation3 + $0x118] sm:$0xff]
      %v4344 = vld [vmem:[#allocation3 + $0x120] sm:$0xff]
      %v4345 = vld [vmem:[#allocation3 + $0x128] sm:$0xff]
      %v4346 = vld [vmem:[#allocation3 + $0x130] sm:$0xff]
      %v4347 = vld [vmem:[#allocation3 + $0x138] sm:$0xff]
      %v4348 = vld [vmem:[#allocation3 + $0x140] sm:$0xff]
      %v4349 = vld [vmem:[#allocation3 + $0x148] sm:$0xff]
      %v4350 = vld [vmem:[#allocation3 + $0x150] sm:$0xff]
      %v4351 = vld [vmem:[#allocation3 + $0x158] sm:$0xff]
      %v4352 = vld [vmem:[#allocation3 + $0x160] sm:$0xff]
      %v4353 = vld [vmem:[#allocation3 + $0x168] sm:$0xff]
      %v4354 = vld [vmem:[#allocation3 + $0x170] sm:$0xff]
      %v4355 = vld [vmem:[#allocation3 + $0x178] sm:$0xff]
      %v4356 = vld [vmem:[#allocation3 + $0x180] sm:$0xff]
      %v4357 = vld [vmem:[#allocation3 + $0x188] sm:$0xff]
      %v4358 = vld [vmem:[#allocation3 + $0x190] sm:$0xff]
      %v4359 = vld [vmem:[#allocation3 + $0x198] sm:$0xff]
      %v4360 = vld [vmem:[#allocation3 + $0x1a0] sm:$0xff]
      %v4361 = vld [vmem:[#allocation3 + $0x1a8] sm:$0xff]
      %v4362 = vld [vmem:[#allocation3 + $0x1b0] sm:$0xff]
      %v4363 = vld [vmem:[#allocation3 + $0x1b8] sm:$0xff]
      %v4364 = vld [vmem:[#allocation3 + $0x1c0] sm:$0xff]
      %v4365 = vld [vmem:[#allocation3 + $0x1c8] sm:$0xff]
      %v4366 = vld [vmem:[#allocation3 + $0x1d0] sm:$0xff]
      %v4367 = vld [vmem:[#allocation3 + $0x1d8] sm:$0xff]
      %v4368 = vld [vmem:[#allocation3 + $0x1e0] sm:$0xff]
      %v4369 = vld [vmem:[#allocation3 + $0x1e8] sm:$0xff]
      %v4370 = vld [vmem:[#allocation3 + $0x1f0] sm:$0xff]
      %v4371 = vld [vmem:[#allocation3 + $0x1f8] sm:$0xff]
      %v4372 = vld [vmem:[#allocation3 + $0x200] sm:$0xff]
      %v4373 = vld [vmem:[#allocation3 + $0x208] sm:$0xff]
      %v4374 = vld [vmem:[#allocation3 + $0x210] sm:$0xff]
      %v4375 = vld [vmem:[#allocation3 + $0x218] sm:$0xff]
      %v4376 = vld [vmem:[#allocation3 + $0x220] sm:$0xff]
      %v4377 = vld [vmem:[#allocation3 + $0x228] sm:$0xff]
      %v4378 = vld [vmem:[#allocation3 + $0x230] sm:$0xff]
      %v4379 = vld [vmem:[#allocation3 + $0x238] sm:$0xff]
      %v4380 = vld [vmem:[#allocation3 + $0x240] sm:$0xff]
      %v4381 = vld [vmem:[#allocation3 + $0x248] sm:$0xff]
      %v4382 = vld [vmem:[#allocation3 + $0x250] sm:$0xff]
      %v4383 = vld [vmem:[#allocation3 + $0x258] sm:$0xff]
      %v4384 = vld [vmem:[#allocation3 + $0x260] sm:$0xff]
      %v4385 = vld [vmem:[#allocation3 + $0x268] sm:$0xff]
      %v4386 = vld [vmem:[#allocation3 + $0x270] sm:$0xff]
      %v4387 = vld [vmem:[#allocation3 + $0x278] sm:$0xff]
      %v4388 = vld [vmem:[#allocation3 + $0x280] sm:$0xff]
      %v4389 = vld [vmem:[#allocation3 + $0x288] sm:$0xff]
      %v4390 = vld [vmem:[#allocation3 + $0x290] sm:$0xff]
      %v4391 = vld [vmem:[#allocation3 + $0x298] sm:$0xff]
      %v4392 = vld [vmem:[#allocation3 + $0x2a0] sm:$0xff]
      %v4393 = vld [vmem:[#allocation3 + $0x2a8] sm:$0xff]
      %v4394 = vld [vmem:[#allocation3 + $0x2b0] sm:$0xff]
      %v4395 = vld [vmem:[#allocation3 + $0x2b8] sm:$0xff]
      %v4396 = vld [vmem:[#allocation3 + $0x2c0] sm:$0xff]
      %v4397 = vld [vmem:[#allocation3 + $0x2c8] sm:$0xff]
      %v4398 = vld [vmem:[#allocation3 + $0x2d0] sm:$0xff]
      %v4399 = vld [vmem:[#allocation3 + $0x2d8] sm:$0xff]
      %v4400 = vld [vmem:[#allocation3 + $0x2e0] sm:$0xff]
      %v4401 = vld [vmem:[#allocation3 + $0x2e8] sm:$0xff]
      %v4402 = vld [vmem:[#allocation3 + $0x2f0] sm:$0xff]
      %v4403 = vld [vmem:[#allocation3 + $0x2f8] sm:$0xff]
      %v4404 = vld [vmem:[#allocation3 + $0x300] sm:$0xff]
      %v4405 = vld [vmem:[#allocation3 + $0x308] sm:$0xff]
      %v4406 = vld [vmem:[#allocation3 + $0x310] sm:$0xff]
      %v4407 = vld [vmem:[#allocation3 + $0x318] sm:$0xff]
      %v4408 = vld [vmem:[#allocation3 + $0x320] sm:$0xff]
      %v4409 = vld [vmem:[#allocation3 + $0x328] sm:$0xff]
      %v4410 = vld [vmem:[#allocation3 + $0x330] sm:$0xff]
      %v4411 = vld [vmem:[#allocation3 + $0x338] sm:$0xff]
      %v4412 = vld [vmem:[#allocation3 + $0x340] sm:$0xff]
      %v4413 = vld [vmem:[#allocation3 + $0x348] sm:$0xff]
      %v4414 = vld [vmem:[#allocation3 + $0x350] sm:$0xff]
      %v4415 = vld [vmem:[#allocation3 + $0x358] sm:$0xff]
      %v4416 = vld [vmem:[#allocation3 + $0x360] sm:$0xff]
      %v4417 = vld [vmem:[#allocation3 + $0x368] sm:$0xff]
      %v4418 = vld [vmem:[#allocation3 + $0x370] sm:$0xff]
      %v4419 = vld [vmem:[#allocation3 + $0x378] sm:$0xff]
      %v4420 = vld [vmem:[#allocation3 + $0x380] sm:$0xff]
      %v4421 = vld [vmem:[#allocation3 + $0x388] sm:$0xff]
      %v4422 = vld [vmem:[#allocation3 + $0x390] sm:$0xff]
      %v4423 = vld [vmem:[#allocation3 + $0x398] sm:$0xff]
      %v4424 = vld [vmem:[#allocation3 + $0x3a0] sm:$0xff]
      %v4425 = vld [vmem:[#allocation3 + $0x3a8] sm:$0xff]
      %v4426 = vld [vmem:[#allocation3 + $0x3b0] sm:$0xff]
      %v4427 = vld [vmem:[#allocation3 + $0x3b8] sm:$0xff]
      %v4428 = vld [vmem:[#allocation3 + $0x3c0] sm:$0xff]
      %v4429 = vld [vmem:[#allocation3 + $0x3c8] sm:$0xff]
      %v4430 = vld [vmem:[#allocation3 + $0x3d0] sm:$0xff]
      %v4431 = vld [vmem:[#allocation3 + $0x3d8] sm:$0xff]
      %v4432 = vld [vmem:[#allocation3 + $0x3e0] sm:$0xff]
      %v4433 = vld [vmem:[#allocation3 + $0x3e8] sm:$0xff]
      %v4434 = vld [vmem:[#allocation3 + $0x3f0] sm:$0xff]
      %v4435 = vld [vmem:[#allocation3 + $0x3f8] sm:$0xff]
      %v4436 = vld [vmem:[#allocation3 + $0x400] sm:$0xff]
      %v4437 = vld [vmem:[#allocation3 + $0x408] sm:$0xff]
      %v4438 = vld [vmem:[#allocation3 + $0x410] sm:$0xff]
      %v4439 = vld [vmem:[#allocation3 + $0x418] sm:$0xff]
      %v4440 = vld [vmem:[#allocation3 + $0x420] sm:$0xff]
      %v4441 = vld [vmem:[#allocation3 + $0x428] sm:$0xff]
      %v4442 = vld [vmem:[#allocation3 + $0x430] sm:$0xff]
      %v4443 = vld [vmem:[#allocation3 + $0x438] sm:$0xff]
      %v4444 = vld [vmem:[#allocation3 + $0x440] sm:$0xff]
      %v4445 = vld [vmem:[#allocation3 + $0x448] sm:$0xff]
      %v4446 = vld [vmem:[#allocation3 + $0x450] sm:$0xff]
      %v4447 = vld [vmem:[#allocation3 + $0x458] sm:$0xff]
      %v4448 = vld [vmem:[#allocation3 + $0x460] sm:$0xff]
      %v4449 = vld [vmem:[#allocation3 + $0x468] sm:$0xff]
      %v4450 = vld [vmem:[#allocation3 + $0x470] sm:$0xff]
      %v4451 = vld [vmem:[#allocation3 + $0x478] sm:$0xff]
      %4453 = vset.pattern.permute.xlu0 0
      %4454 = vperm.xlu0 %4453, %v2682
      %v4455 = vpop.permute.xlu0 %4454
      %4458 = vset.pattern.permute.xlu0 0
      %4459 = vperm.xlu0 %4458, %v2683
      %v4460 = vpop.permute.xlu0 %4459
      %4463 = vset.pattern.permute.xlu0 0
      %4464 = vperm.xlu0 %4463, %v2684
      %v4465 = vpop.permute.xlu0 %4464
      %4468 = vset.pattern.permute.xlu0 0
      %4469 = vperm.xlu0 %4468, %v2685
      %v4470 = vpop.permute.xlu0 %4469
      %v4480 = vunpack.c.l.b16 %v2674
      %v4481 = vunpack.c.h.b16 %v2674
      %v4482 = vunpack.c.l.b16 %v2675
      %v4483 = vunpack.c.l.b16 %v2676
      %v4484 = vunpack.c.h.b16 %v2676
      %v4485 = vunpack.c.l.b16 %v2677
      %v4486 = vunpack.c.l.b16 %v2678
      %v4487 = vunpack.c.h.b16 %v2678
      %v4488 = vunpack.c.l.b16 %v2679
      %v4489 = vunpack.c.l.b16 %v2680
      %v4490 = vunpack.c.h.b16 %v2680
      %v4491 = vunpack.c.l.b16 %v2681
      %v4492 = vpack.c.b16 %v4483, %v4480
      %v4493 = vpack.c.b16 %v4484, %v4481
      %v4494 = vpack.c.b16 %v4485, %v4482
      %v4495 = vpack.c.b16 %v4489, %v4486
      %v4496 = vpack.c.b16 %v4490, %v4487
      %v4497 = vpack.c.b16 %v4491, %v4488
      %v4503 = vsel %vm694, %v4494, 0
      %v4506 = vsel %vm694, %v4497, 0
      %4508 = vmatprep.subr.bf16.mxu0 %v4309
      %4509 = vmatpush1.bf16.msra.mxu0 %v4308
      %4510 = vmatprep.subr.bf16.mxu0 %v4317
      %4511 = vmatpush1.bf16.msra.mxu0 %v4316
      %4512 = vmatprep.subr.bf16.mxu0 %v4325
      %4513 = vmatpush1.bf16.msra.mxu0 %v4324
      %4514 = vmatprep.subr.bf16.mxu0 %v4333
      %4515 = vmatpush1.bf16.msra.mxu0 %v4332
      %4516 = vmatprep.subr.bf16.mxu0 %v4341
      %4517 = vmatpush1.bf16.msra.mxu0 %v4340
      %4518 = vmatprep.subr.bf16.mxu0 %v4349
      %4519 = vmatpush1.bf16.msra.mxu0 %v4348
      %4520 = vmatprep.subr.bf16.mxu0 %v4357
      %4521 = vmatpush1.bf16.msra.mxu0 %v4356
      %4522 = vmatprep.subr.bf16.mxu0 %v4365
      %4523 = vmatpush1.bf16.msra.mxu0 %v4364
      %4524 = vmatprep.subr.bf16.mxu0 %v4373
      %4525 = vmatpush1.bf16.msra.mxu0 %v4372
      %4526 = vmatprep.subr.bf16.mxu0 %v4381
      %4527 = vmatpush1.bf16.msra.mxu0 %v4380
      %4528 = vmatprep.subr.bf16.mxu0 %v4389
      %4529 = vmatpush1.bf16.msra.mxu0 %v4388
      %4530 = vmatprep.subr.bf16.mxu0 %v4397
      %4531 = vmatpush1.bf16.msra.mxu0 %v4396
      %4532 = vmatprep.subr.bf16.mxu0 %v4405
      %4533 = vmatpush1.bf16.msra.mxu0 %v4404
      %4534 = vmatprep.subr.bf16.mxu0 %v4413
      %4535 = vmatpush1.bf16.msra.mxu0 %v4412
      %4536 = vmatprep.subr.bf16.mxu0 %v4421
      %4537 = vmatpush1.bf16.msra.mxu0 %v4420
      %4538 = vmatprep.subr.bf16.mxu0 %v4429
      %4539 = vmatpush1.bf16.msra.mxu0 %v4428
      %4540 = vmatprep.mubr.bf16.mxu0 %v4493
      %4541 = vmatmul.mubr.bf16.gmra.mrb[0].mxu0 %v4492
      %v4542 = vpop.f32.mrb[0].mxu0
      %v4543 = vadd.f32 %v4455, %v4542
      %v4544 = vpop.f32.mrb[0].mxu0
      %v4545 = vadd.f32 %v4455, %v4544
      %v4546 = vpop.f32.mrb[0].mxu0
      %v4547 = vadd.f32 %v4460, %v4546
      %v4548 = vpop.f32.mrb[0].mxu0
      %v4549 = vadd.f32 %v4460, %v4548
      %4550 = vmatprep.mubr.bf16.mxu0 %v4496
      %4551 = vmatmul.mubr.bf16.gmra.mrb[0].mxu0 %v4495
      %v4552 = vpop.f32.mrb[0].mxu0
      %v4553 = vadd.f32 %v4465, %v4552
      %v4554 = vpop.f32.mrb[0].mxu0
      %v4555 = vadd.f32 %v4465, %v4554
      %v4556 = vpop.f32.mrb[0].mxu0
      %v4557 = vadd.f32 %v4470, %v4556
      %v4558 = vpop.f32.mrb[0].mxu0
      %v4559 = vadd.f32 %v4470, %v4558
      %4560 = vdwg.mxu0
      %4561 = vmatprep.subr.bf16.mxu0 %v4437
      %4562 = vmatpush1.bf16.msra.mxu0 %v4436
      %4563 = vmatprep.subr.bf16.mxu0 %v4445
      %4564 = vmatpush1.bf16.msra.mxu0 %v4444
      %4565 = vmatprep.subr.bf16.mxu0 0
      %4566 = vmatpush1.bf16.msra.mxu0 0
      %4567 = vmatprep.subr.bf16.mxu0 0
      %4568 = vmatpush1.bf16.msra.mxu0 0
      %4569 = vmatprep.subr.bf16.mxu0 0
      %4570 = vmatpush1.bf16.msra.mxu0 0
      %4571 = vmatprep.subr.bf16.mxu0 0
      %4572 = vmatpush1.bf16.msra.mxu0 0
      %4573 = vmatprep.subr.bf16.mxu0 0
      %4574 = vmatpush1.bf16.msra.mxu0 0
      %4575 = vmatprep.subr.bf16.mxu0 0
      %4576 = vmatpush1.bf16.msra.mxu0 0
      %4577 = vmatprep.subr.bf16.mxu0 0
      %4578 = vmatpush1.bf16.msra.mxu0 0
      %4579 = vmatprep.subr.bf16.mxu0 0
      %4580 = vmatpush1.bf16.msra.mxu0 0
      %4581 = vmatprep.subr.bf16.mxu0 0
      %4582 = vmatpush1.bf16.msra.mxu0 0
      %4583 = vmatprep.subr.bf16.mxu0 0
      %4584 = vmatpush1.bf16.msra.mxu0 0
      %4585 = vmatprep.subr.bf16.mxu0 0
      %4586 = vmatpush1.bf16.msra.mxu0 0
      %4587 = vmatprep.subr.bf16.mxu0 0
      %4588 = vmatpush1.bf16.msra.mxu0 0
      %4589 = vmatprep.subr.bf16.mxu0 0
      %4590 = vmatpush1.bf16.msra.mxu0 0
      %4591 = vmatprep.subr.bf16.mxu0 0
      %4592 = vmatpush1.bf16.msra.mxu0 0
      %4593 = vmatprep.mubr.bf16.mxu0 0
      %4594 = vmatmul.mubr.bf16.gmra.mrb[0].mxu0 %v4503
      %v4595 = vpop.f32.mrb[0].mxu0
      %v4596 = vadd.f32 %v4543, %v4595
      %v4597 = vpop.f32.mrb[0].mxu0
      %v4598 = vadd.f32 %v4545, %v4597
      %v4599 = vpop.f32.mrb[0].mxu0
      %v4600 = vadd.f32 %v4547, %v4599
      %v4601 = vpop.f32.mrb[0].mxu0
      %v4602 = vadd.f32 %v4549, %v4601
      %4603 = vmatprep.mubr.bf16.mxu0 0
      %4604 = vmatmul.mubr.bf16.gmra.mrb[0].mxu0 %v4506
      %v4605 = vpop.f32.mrb[0].mxu0
      %v4606 = vadd.f32 %v4553, %v4605
      %v4607 = vpop.f32.mrb[0].mxu0
      %v4608 = vadd.f32 %v4555, %v4607
      %v4609 = vpop.f32.mrb[0].mxu0
      %v4610 = vadd.f32 %v4557, %v4609
      %v4611 = vpop.f32.mrb[0].mxu0
      %v4612 = vadd.f32 %v4559, %v4611
      %4613 = vdwg.mxu0
      %4614 = vmatprep.subr.bf16.mxu0 %v4311
      %4615 = vmatpush1.bf16.msra.mxu0 %v4310
      %4616 = vmatprep.subr.bf16.mxu0 %v4319
      %4617 = vmatpush1.bf16.msra.mxu0 %v4318
      %4618 = vmatprep.subr.bf16.mxu0 %v4327
      %4619 = vmatpush1.bf16.msra.mxu0 %v4326
      %4620 = vmatprep.subr.bf16.mxu0 %v4335
      %4621 = vmatpush1.bf16.msra.mxu0 %v4334
      %4622 = vmatprep.subr.bf16.mxu0 %v4343
      %4623 = vmatpush1.bf16.msra.mxu0 %v4342
      %4624 = vmatprep.subr.bf16.mxu0 %v4351
      %4625 = vmatpush1.bf16.msra.mxu0 %v4350
      %4626 = vmatprep.subr.bf16.mxu0 %v4359
      %4627 = vmatpush1.bf16.msra.mxu0 %v4358
      %4628 = vmatprep.subr.bf16.mxu0 %v4367
      %4629 = vmatpush1.bf16.msra.mxu0 %v4366
      %4630 = vmatprep.subr.bf16.mxu0 %v4375
      %4631 = vmatpush1.bf16.msra.mxu0 %v4374
      %4632 = vmatprep.subr.bf16.mxu0 %v4383
      %4633 = vmatpush1.bf16.msra.mxu0 %v4382
      %4634 = vmatprep.subr.bf16.mxu0 %v4391
      %4635 = vmatpush1.bf16.msra.mxu0 %v4390
      %4636 = vmatprep.subr.bf16.mxu0 %v4399
      %4637 = vmatpush1.bf16.msra.mxu0 %v4398
      %4638 = vmatprep.subr.bf16.mxu0 %v4407
      %4639 = vmatpush1.bf16.msra.mxu0 %v4406
      %4640 = vmatprep.subr.bf16.mxu0 %v4415
      %4641 = vmatpush1.bf16.msra.mxu0 %v4414
      %4642 = vmatprep.subr.bf16.mxu0 %v4423
      %4643 = vmatpush1.bf16.msra.mxu0 %v4422
      %4644 = vmatprep.subr.bf16.mxu0 %v4431
      %4645 = vmatpush1.bf16.msra.mxu0 %v4430
      %4646 = vmatprep.mubr.bf16.mxu0 %v4493
      %4647 = vmatmul.mubr.bf16.gmra.mrb[0].mxu0 %v4492
      %v4648 = vpop.f32.mrb[0].mxu0
      %v4649 = vadd.f32 %v4455, %v4648
      %v4650 = vpop.f32.mrb[0].mxu0
      %v4651 = vadd.f32 %v4455, %v4650
      %v4652 = vpop.f32.mrb[0].mxu0
      %v4653 = vadd.f32 %v4460, %v4652
      %v4654 = vpop.f32.mrb[0].mxu0
      %v4655 = vadd.f32 %v4460, %v4654
      %4656 = vmatprep.mubr.bf16.mxu0 %v4496
      %4657 = vmatmul.mubr.bf16.gmra.mrb[0].mxu0 %v4495
      %v4658 = vpop.f32.mrb[0].mxu0
      %v4659 = vadd.f32 %v4465, %v4658
      %v4660 = vpop.f32.mrb[0].mxu0
      %v4661 = vadd.f32 %v4465, %v4660
      %v4662 = vpop.f32.mrb[0].mxu0
      %v4663 = vadd.f32 %v4470, %v4662
      %v4664 = vpop.f32.mrb[0].mxu0
      %v4665 = vadd.f32 %v4470, %v4664
      %4666 = vdwg.mxu0
      %4667 = vmatprep.subr.bf16.mxu0 %v4439
      %4668 = vmatpush1.bf16.msra.mxu0 %v4438
      %4669 = vmatprep.subr.bf16.mxu0 %v4447
      %4670 = vmatpush1.bf16.msra.mxu0 %v4446
      %4671 = vmatprep.subr.bf16.mxu0 0
      %4672 = vmatpush1.bf16.msra.mxu0 0
      %4673 = vmatprep.subr.bf16.mxu0 0
      %4674 = vmatpush1.bf16.msra.mxu0 0
      %4675 = vmatprep.subr.bf16.mxu0 0
      %4676 = vmatpush1.bf16.msra.mxu0 0
      %4677 = vmatprep.subr.bf16.mxu0 0
      %4678 = vmatpush1.bf16.msra.mxu0 0
      %4679 = vmatprep.subr.bf16.mxu0 0
      %4680 = vmatpush1.bf16.msra.mxu0 0
      %4681 = vmatprep.subr.bf16.mxu0 0
      %4682 = vmatpush1.bf16.msra.mxu0 0
      %4683 = vmatprep.subr.bf16.mxu0 0
      %4684 = vmatpush1.bf16.msra.mxu0 0
      %4685 = vmatprep.subr.bf16.mxu0 0
      %4686 = vmatpush1.bf16.msra.mxu0 0
      %4687 = vmatprep.subr.bf16.mxu0 0
      %4688 = vmatpush1.bf16.msra.mxu0 0
      %4689 = vmatprep.subr.bf16.mxu0 0
      %4690 = vmatpush1.bf16.msra.mxu0 0
      %4691 = vmatprep.subr.bf16.mxu0 0
      %4692 = vmatpush1.bf16.msra.mxu0 0
      %4693 = vmatprep.subr.bf16.mxu0 0
      %4694 = vmatpush1.bf16.msra.mxu0 0
      %4695 = vmatprep.subr.bf16.mxu0 0
      %4696 = vmatpush1.bf16.msra.mxu0 0
      %4697 = vmatprep.subr.bf16.mxu0 0
      %4698 = vmatpush1.bf16.msra.mxu0 0
      %4699 = vmatprep.mubr.bf16.mxu0 0
      %4700 = vmatmul.mubr.bf16.gmra.mrb[0].mxu0 %v4503
      %v4701 = vpop.f32.mrb[0].mxu0
      %v4702 = vadd.f32 %v4649, %v4701
      %v4703 = vpop.f32.mrb[0].mxu0
      %v4704 = vadd.f32 %v4651, %v4703
      %v4705 = vpop.f32.mrb[0].mxu0
      %v4706 = vadd.f32 %v4653, %v4705
      %v4707 = vpop.f32.mrb[0].mxu0
      %v4708 = vadd.f32 %v4655, %v4707
      %4709 = vmatprep.mubr.bf16.mxu0 0
      %4710 = vmatmul.mubr.bf16.gmra.mrb[0].mxu0 %v4506
      %v4711 = vpop.f32.mrb[0].mxu0
      %v4712 = vadd.f32 %v4659, %v4711
      %v4713 = vpop.f32.mrb[0].mxu0
      %v4714 = vadd.f32 %v4661, %v4713
      %v4715 = vpop.f32.mrb[0].mxu0
      %v4716 = vadd.f32 %v4663, %v4715
      %v4717 = vpop.f32.mrb[0].mxu0
      %v4718 = vadd.f32 %v4665, %v4717
      %4719 = vdwg.mxu0
      %4720 = vmatprep.subr.bf16.mxu0 %v4313
      %4721 = vmatpush1.bf16.msra.mxu0 %v4312
      %4722 = vmatprep.subr.bf16.mxu0 %v4321
      %4723 = vmatpush1.bf16.msra.mxu0 %v4320
      %4724 = vmatprep.subr.bf16.mxu0 %v4329
      %4725 = vmatpush1.bf16.msra.mxu0 %v4328
      %4726 = vmatprep.subr.bf16.mxu0 %v4337
      %4727 = vmatpush1.bf16.msra.mxu0 %v4336
      %4728 = vmatprep.subr.bf16.mxu0 %v4345
      %4729 = vmatpush1.bf16.msra.mxu0 %v4344
      %4730 = vmatprep.subr.bf16.mxu0 %v4353
      %4731 = vmatpush1.bf16.msra.mxu0 %v4352
      %4732 = vmatprep.subr.bf16.mxu0 %v4361
      %4733 = vmatpush1.bf16.msra.mxu0 %v4360
      %4734 = vmatprep.subr.bf16.mxu0 %v4369
      %4735 = vmatpush1.bf16.msra.mxu0 %v4368
      %4736 = vmatprep.subr.bf16.mxu0 %v4377
      %4737 = vmatpush1.bf16.msra.mxu0 %v4376
      %4738 = vmatprep.subr.bf16.mxu0 %v4385
      %4739 = vmatpush1.bf16.msra.mxu0 %v4384
      %4740 = vmatprep.subr.bf16.mxu0 %v4393
      %4741 = vmatpush1.bf16.msra.mxu0 %v4392
      %4742 = vmatprep.subr.bf16.mxu0 %v4401
      %4743 = vmatpush1.bf16.msra.mxu0 %v4400
      %4744 = vmatprep.subr.bf16.mxu0 %v4409
      %4745 = vmatpush1.bf16.msra.mxu0 %v4408
      %4746 = vmatprep.subr.bf16.mxu0 %v4417
      %4747 = vmatpush1.bf16.msra.mxu0 %v4416
      %4748 = vmatprep.subr.bf16.mxu0 %v4425
      %4749 = vmatpush1.bf16.msra.mxu0 %v4424
      %4750 = vmatprep.subr.bf16.mxu0 %v4433
      %4751 = vmatpush1.bf16.msra.mxu0 %v4432
      %4752 = vmatprep.mubr.bf16.mxu0 %v4493
      %4753 = vmatmul.mubr.bf16.gmra.mrb[0].mxu0 %v4492
      %v4754 = vpop.f32.mrb[0].mxu0
      %v4755 = vadd.f32 %v4455, %v4754
      %v4756 = vpop.f32.mrb[0].mxu0
      %v4757 = vadd.f32 %v4455, %v4756
      %v4758 = vpop.f32.mrb[0].mxu0
      %v4759 = vadd.f32 %v4460, %v4758
      %v4760 = vpop.f32.mrb[0].mxu0
      %v4761 = vadd.f32 %v4460, %v4760
      %4762 = vmatprep.mubr.bf16.mxu0 %v4496
      %4763 = vmatmul.mubr.bf16.gmra.mrb[0].mxu0 %v4495
      %v4764 = vpop.f32.mrb[0].mxu0
      %v4765 = vadd.f32 %v4465, %v4764
      %v4766 = vpop.f32.mrb[0].mxu0
      %v4767 = vadd.f32 %v4465, %v4766
      %v4768 = vpop.f32.mrb[0].mxu0
      %v4769 = vadd.f32 %v4470, %v4768
      %v4770 = vpop.f32.mrb[0].mxu0
      %v4771 = vadd.f32 %v4470, %v4770
      %4772 = vdwg.mxu0
      %4773 = vmatprep.subr.bf16.mxu0 %v4441
      %4774 = vmatpush1.bf16.msra.mxu0 %v4440
      %4775 = vmatprep.subr.bf16.mxu0 %v4449
      %4776 = vmatpush1.bf16.msra.mxu0 %v4448
      %4777 = vmatprep.subr.bf16.mxu0 0
      %4778 = vmatpush1.bf16.msra.mxu0 0
      %4779 = vmatprep.subr.bf16.mxu0 0
      %4780 = vmatpush1.bf16.msra.mxu0 0
      %4781 = vmatprep.subr.bf16.mxu0 0
      %4782 = vmatpush1.bf16.msra.mxu0 0
      %4783 = vmatprep.subr.bf16.mxu0 0
      %4784 = vmatpush1.bf16.msra.mxu0 0
      %4785 = vmatprep.subr.bf16.mxu0 0
      %4786 = vmatpush1.bf16.msra.mxu0 0
      %4787 = vmatprep.subr.bf16.mxu0 0
      %4788 = vmatpush1.bf16.msra.mxu0 0
      %4789 = vmatprep.subr.bf16.mxu0 0
      %4790 = vmatpush1.bf16.msra.mxu0 0
      %4791 = vmatprep.subr.bf16.mxu0 0
      %4792 = vmatpush1.bf16.msra.mxu0 0
      %4793 = vmatprep.subr.bf16.mxu0 0
      %4794 = vmatpush1.bf16.msra.mxu0 0
      %4795 = vmatprep.subr.bf16.mxu0 0
      %4796 = vmatpush1.bf16.msra.mxu0 0
      %4797 = vmatprep.subr.bf16.mxu0 0
      %4798 = vmatpush1.bf16.msra.mxu0 0
      %4799 = vmatprep.subr.bf16.mxu0 0
      %4800 = vmatpush1.bf16.msra.mxu0 0
      %4801 = vmatprep.subr.bf16.mxu0 0
      %4802 = vmatpush1.bf16.msra.mxu0 0
      %4803 = vmatprep.subr.bf16.mxu0 0
      %4804 = vmatpush1.bf16.msra.mxu0 0
      %4805 = vmatprep.mubr.bf16.mxu0 0
      %4806 = vmatmul.mubr.bf16.gmra.mrb[0].mxu0 %v4503
      %v4807 = vpop.f32.mrb[0].mxu0
      %v4808 = vadd.f32 %v4755, %v4807
      %v4809 = vpop.f32.mrb[0].mxu0
      %v4810 = vadd.f32 %v4757, %v4809
      %v4811 = vpop.f32.mrb[0].mxu0
      %v4812 = vadd.f32 %v4759, %v4811
      %v4813 = vpop.f32.mrb[0].mxu0
      %v4814 = vadd.f32 %v4761, %v4813
      %4815 = vmatprep.mubr.bf16.mxu0 0
      %4816 = vmatmul.mubr.bf16.gmra.mrb[0].mxu0 %v4506
      %v4817 = vpop.f32.mrb[0].mxu0
      %v4818 = vadd.f32 %v4765, %v4817
      %v4819 = vpop.f32.mrb[0].mxu0
      %v4820 = vadd.f32 %v4767, %v4819
      %v4821 = vpop.f32.mrb[0].mxu0
      %v4822 = vadd.f32 %v4769, %v4821
      %v4823 = vpop.f32.mrb[0].mxu0
      %v4824 = vadd.f32 %v4771, %v4823
      %4825 = vdwg.mxu0
      %4826 = vmatprep.subr.bf16.mxu0 %v4315
      %4827 = vmatpush1.bf16.msra.mxu0 %v4314
      %4828 = vmatprep.subr.bf16.mxu0 %v4323
      %4829 = vmatpush1.bf16.msra.mxu0 %v4322
      %4830 = vmatprep.subr.bf16.mxu0 %v4331
      %4831 = vmatpush1.bf16.msra.mxu0 %v4330
      %4832 = vmatprep.subr.bf16.mxu0 %v4339
      %4833 = vmatpush1.bf16.msra.mxu0 %v4338
      %4834 = vmatprep.subr.bf16.mxu0 %v4347
      %4835 = vmatpush1.bf16.msra.mxu0 %v4346
      %4836 = vmatprep.subr.bf16.mxu0 %v4355
      %4837 = vmatpush1.bf16.msra.mxu0 %v4354
      %4838 = vmatprep.subr.bf16.mxu0 %v4363
      %4839 = vmatpush1.bf16.msra.mxu0 %v4362
      %4840 = vmatprep.subr.bf16.mxu0 %v4371
      %4841 = vmatpush1.bf16.msra.mxu0 %v4370
      %4842 = vmatprep.subr.bf16.mxu0 %v4379
      %4843 = vmatpush1.bf16.msra.mxu0 %v4378
      %4844 = vmatprep.subr.bf16.mxu0 %v4387
      %4845 = vmatpush1.bf16.msra.mxu0 %v4386
      %4846 = vmatprep.subr.bf16.mxu0 %v4395
      %4847 = vmatpush1.bf16.msra.mxu0 %v4394
      %4848 = vmatprep.subr.bf16.mxu0 %v4403
      %4849 = vmatpush1.bf16.msra.mxu0 %v4402
      %4850 = vmatprep.subr.bf16.mxu0 %v4411
      %4851 = vmatpush1.bf16.msra.mxu0 %v4410
      %4852 = vmatprep.subr.bf16.mxu0 %v4419
      %4853 = vmatpush1.bf16.msra.mxu0 %v4418
      %4854 = vmatprep.subr.bf16.mxu0 %v4427
      %4855 = vmatpush1.bf16.msra.mxu0 %v4426
      %4856 = vmatprep.subr.bf16.mxu0 %v4435
      %4857 = vmatpush1.bf16.msra.mxu0 %v4434
      %4858 = vmatprep.mubr.bf16.mxu0 %v4493
      %4859 = vmatmul.mubr.bf16.gmra.mrb[0].mxu0 %v4492
      %v4860 = vpop.f32.mrb[0].mxu0
      %v4861 = vadd.f32 %v4455, %v4860
      %v4862 = vpop.f32.mrb[0].mxu0
      %v4863 = vadd.f32 %v4455, %v4862
      %v4864 = vpop.f32.mrb[0].mxu0
      %v4865 = vadd.f32 %v4460, %v4864
      %v4866 = vpop.f32.mrb[0].mxu0
      %v4867 = vadd.f32 %v4460, %v4866
      %4868 = vmatprep.mubr.bf16.mxu0 %v4496
      %4869 = vmatmul.mubr.bf16.gmra.mrb[0].mxu0 %v4495
      %v4870 = vpop.f32.mrb[0].mxu0
      %v4871 = vadd.f32 %v4465, %v4870
      %v4872 = vpop.f32.mrb[0].mxu0
      %v4873 = vadd.f32 %v4465, %v4872
      %v4874 = vpop.f32.mrb[0].mxu0
      %v4875 = vadd.f32 %v4470, %v4874
      %v4876 = vpop.f32.mrb[0].mxu0
      %v4877 = vadd.f32 %v4470, %v4876
      %4878 = vdwg.mxu0
      %4879 = vmatprep.subr.bf16.mxu0 %v4443
      %4880 = vmatpush1.bf16.msra.mxu0 %v4442
      %4881 = vmatprep.subr.bf16.mxu0 %v4451
      %4882 = vmatpush1.bf16.msra.mxu0 %v4450
      %4883 = vmatprep.subr.bf16.mxu0 0
      %4884 = vmatpush1.bf16.msra.mxu0 0
      %4885 = vmatprep.subr.bf16.mxu0 0
      %4886 = vmatpush1.bf16.msra.mxu0 0
      %4887 = vmatprep.subr.bf16.mxu0 0
      %4888 = vmatpush1.bf16.msra.mxu0 0
      %4889 = vmatprep.subr.bf16.mxu0 0
      %4890 = vmatpush1.bf16.msra.mxu0 0
      %4891 = vmatprep.subr.bf16.mxu0 0
      %4892 = vmatpush1.bf16.msra.mxu0 0
      %4893 = vmatprep.subr.bf16.mxu0 0
      %4894 = vmatpush1.bf16.msra.mxu0 0
      %4895 = vmatprep.subr.bf16.mxu0 0
      %4896 = vmatpush1.bf16.msra.mxu0 0
      %4897 = vmatprep.subr.bf16.mxu0 0
      %4898 = vmatpush1.bf16.msra.mxu0 0
      %4899 = vmatprep.subr.bf16.mxu0 0
      %4900 = vmatpush1.bf16.msra.mxu0 0
      %4901 = vmatprep.subr.bf16.mxu0 0
      %4902 = vmatpush1.bf16.msra.mxu0 0
      %4903 = vmatprep.subr.bf16.mxu0 0
      %4904 = vmatpush1.bf16.msra.mxu0 0
      %4905 = vmatprep.subr.bf16.mxu0 0
      %4906 = vmatpush1.bf16.msra.mxu0 0
      %4907 = vmatprep.subr.bf16.mxu0 0
      %4908 = vmatpush1.bf16.msra.mxu0 0
      %4909 = vmatprep.subr.bf16.mxu0 0
      %4910 = vmatpush1.bf16.msra.mxu0 0
      %4911 = vmatprep.mubr.bf16.mxu0 0
      %4912 = vmatmul.mubr.bf16.gmra.mrb[0].mxu0 %v4503
      %v4913 = vpop.f32.mrb[0].mxu0
      %v4914 = vadd.f32 %v4861, %v4913
      %v4915 = vpop.f32.mrb[0].mxu0
      %v4916 = vadd.f32 %v4863, %v4915
      %v4917 = vpop.f32.mrb[0].mxu0
      %v4918 = vadd.f32 %v4865, %v4917
      %v4919 = vpop.f32.mrb[0].mxu0
      %v4920 = vadd.f32 %v4867, %v4919
      %4921 = vmatprep.mubr.bf16.mxu0 0
      %4922 = vmatmul.mubr.bf16.gmra.mrb[0].mxu0 %v4506
      %v4923 = vpop.f32.mrb[0].mxu0
      %v4924 = vadd.f32 %v4871, %v4923
      %v4925 = vpop.f32.mrb[0].mxu0
      %v4926 = vadd.f32 %v4873, %v4925
      %v4927 = vpop.f32.mrb[0].mxu0
      %v4928 = vadd.f32 %v4875, %v4927
      %v4929 = vpop.f32.mrb[0].mxu0
      %v4930 = vadd.f32 %v4877, %v4929
      %4931 = vdwg.mxu0
      %v4932 = vmax.f32 %v4596, 0.0
      %v4933 = vmax.f32 %v4598, 0.0
      %v4934 = vmax.f32 %v4702, 0.0
      %v4935 = vmax.f32 %v4704, 0.0
      %v4936 = vmax.f32 %v4808, 0.0
      %v4937 = vmax.f32 %v4810, 0.0
      %v4938 = vmax.f32 %v4914, 0.0
      %v4939 = vmax.f32 %v4916, 0.0
      %v4940 = vmax.f32 %v4600, 0.0
      %v4941 = vmax.f32 %v4602, 0.0
      %v4942 = vmax.f32 %v4706, 0.0
      %v4943 = vmax.f32 %v4708, 0.0
      %v4944 = vmax.f32 %v4812, 0.0
      %v4945 = vmax.f32 %v4814, 0.0
      %v4946 = vmax.f32 %v4918, 0.0
      %v4947 = vmax.f32 %v4920, 0.0
      %v4948 = vmax.f32 %v4606, 0.0
      %v4949 = vmax.f32 %v4608, 0.0
      %v4950 = vmax.f32 %v4712, 0.0
      %v4951 = vmax.f32 %v4714, 0.0
      %v4952 = vmax.f32 %v4818, 0.0
      %v4953 = vmax.f32 %v4820, 0.0
      %v4954 = vmax.f32 %v4924, 0.0
      %v4955 = vmax.f32 %v4926, 0.0
      %v4956 = vmax.f32 %v4610, 0.0
      %v4957 = vmax.f32 %v4612, 0.0
      %v4958 = vmax.f32 %v4716, 0.0
      %v4959 = vmax.f32 %v4718, 0.0
      %v4960 = vmax.f32 %v4822, 0.0
      %v4961 = vmax.f32 %v4824, 0.0
      %v4962 = vmax.f32 %v4928, 0.0
      %v4963 = vmax.f32 %v4930, 0.0
      %4964 = vst [vmem:[%s426] sm:$0xff] %v4932
      %4965 = vst [vmem:[%s426 + $0x8] sm:$0xff] %v4933
      %4966 = vst [vmem:[%s426 + $0x10] sm:$0xff] %v4934
      %4967 = vst [vmem:[%s426 + $0x18] sm:$0xff] %v4935
      %4968 = vst [vmem:[%s426 + $0x20] sm:$0xff] %v4936
      %4969 = vst [vmem:[%s426 + $0x28] sm:$0xff] %v4937
      %4970 = vst [vmem:[%s426 + $0x30] sm:$0xff] %v4938
      %4971 = vst [vmem:[%s426 + $0x38] sm:$0xff] %v4939
      %4972 = vst [vmem:[%s426 + $0x40] sm:$0xff] %v4940
      %4973 = vst [vmem:[%s426 + $0x48] sm:$0xff] %v4941
      %4974 = vst [vmem:[%s426 + $0x50] sm:$0xff] %v4942
      %4975 = vst [vmem:[%s426 + $0x58] sm:$0xff] %v4943
      %4976 = vst [vmem:[%s426 + $0x60] sm:$0xff] %v4944
      %4977 = vst [vmem:[%s426 + $0x68] sm:$0xff] %v4945
      %4978 = vst [vmem:[%s426 + $0x70] sm:$0xff] %v4946
      %4979 = vst [vmem:[%s426 + $0x78] sm:$0xff] %v4947
      %4980 = vst [vmem:[%s426 + $0x80] sm:$0xff] %v4948
      %4981 = vst [vmem:[%s426 + $0x88] sm:$0xff] %v4949
      %4982 = vst [vmem:[%s426 + $0x90] sm:$0xff] %v4950
      %4983 = vst [vmem:[%s426 + $0x98] sm:$0xff] %v4951
      %4984 = vst [vmem:[%s426 + $0xa0] sm:$0xff] %v4952
      %4985 = vst [vmem:[%s426 + $0xa8] sm:$0xff] %v4953
      %4986 = vst [vmem:[%s426 + $0xb0] sm:$0xff] %v4954
      %4987 = vst [vmem:[%s426 + $0xb8] sm:$0xff] %v4955
      %4988 = vst [vmem:[%s426 + $0xc0] sm:$0xff] %v4956
      %4989 = vst [vmem:[%s426 + $0xc8] sm:$0xff] %v4957
      %4990 = vst [vmem:[%s426 + $0xd0] sm:$0xff] %v4958
      %4991 = vst [vmem:[%s426 + $0xd8] sm:$0xff] %v4959
      %4992 = vst [vmem:[%s426 + $0xe0] sm:$0xff] %v4960
      %4993 = vst [vmem:[%s426 + $0xe8] sm:$0xff] %v4961
      %4994 = vst [vmem:[%s426 + $0xf0] sm:$0xff] %v4962
      %4995 = vst [vmem:[%s426 + $0xf8] sm:$0xff] %v4963
      %p4996 = scmp.lt.s32.totalorder %s22, 1
      %s4997 = scalar_select %p4996, %s22, 1
      %s4998 = smul.addr %s4997, 32
      %s4999 = smul.addr %s4998, 8
      %s5000 = scalar_lea.vmem %s11, %s4999
      // Predicated region
      $region65: #{_fused_forward.1} parent=63 // pred_check
        %p5001 = pneg %p286
      $region66: #{_fused_forward.1} parent=63 // pred_check_branch
        %5003 = sbr.rel (%p5001) target = $region68
      $region67: #{_fused_forward.1} parent=63 // pred_region
        _
      $region68: #{_fused_forward.1} parent=63 // pred_fallthru
        _
    $region64: #{_fused_forward.1} parent=5 // pred_fallthru
      _
    %p5004 = scmp.le.s32.totalorder 2, %s17
    // Predicated region
    $region69: #{_fused_forward.1} parent=5 // pred_check
      %p5005 = pneg %p5004
    $region70: #{_fused_forward.1} parent=5 // pred_check_branch
      %5007 = sbr.rel (%p5005) target = $region72
    $region71: #{_fused_forward.1} parent=5 // pred_region
      %s5008 = ssub.s32 %s17, 2
      // Predicated region
      $region73: #{_fused_forward.1} parent=71 // pred_check
        %p5009 = pneg %p292
      $region74: #{_fused_forward.1} parent=71 // pred_check_branch
        %5011 = sbr.rel (%p5009) target = $region76
      $region75: #{_fused_forward.1} parent=71 // pred_region
        %p5012 = scmp.lt.s32.totalorder %s23, 1
        %s5013 = scalar_select %p5012, %s23, 1
        %s5014 = smul.addr %s5013, 32
        %s5015 = smul.addr %s5014, 8
        %s5016 = scalar_lea.vmem %s11, %s5015
      $region76: #{_fused_forward.1} parent=71 // pred_fallthru
        _
    $region72: #{_fused_forward.1} parent=5 // pred_fallthru
      _
  $region6: #{_fused_forward.1} parent=0 // loop_footer
    %s21 = sadd.s32 1, %s17
  $region7: #{_fused_forward.1} parent=0 // loop_footer_branch
    %16 = sbr.rel target = $region3
  $region8: #{_fused_forward.1} parent=0 // loop_exit
    _

</llo_original>
